<compile_context>
chip_gen: v6e
topology: v6e:2x2x1
jax: 0.10.0
libtpu: 0.0.40
codegen_flags: <defaults>
</compile_context>

<pallas_src>
import functools

import numpy as np

import jax
import jax.numpy as jnp
from jax.experimental import pallas as pl
from jax.experimental.pallas import tpu as pltpu


# ----------------------------------------------------------------------------
# Fused kernel: conv1 + relu + pool, conv2 + relu + pool, linear
# ----------------------------------------------------------------------------
def _cnn_fused_kernel(x_ref, m1a, m1b, m1c, b1, re1, ro1, ce1, co1,
                      m2a, m2b, m2c, b2, re2, ro2, ce2, co2, wl, bl, o_ref):
    f32, bf16 = jnp.float32, jnp.bfloat16

    def conv3(src, ma, mb, mc, bias):
        # src: (TB*(h+2), cin*w) f32, per-image zero pad rows top/bottom.
        # Row shifts = overlapping static slices; col shifts are folded into
        # the three pre-expanded weight matrices ma/mb/mc (cin*w, cout*w) bf16.
        j = src.shape[0] - 2
        up = src[0:j, :].astype(bf16)          # row r-1 (zero at image top)
        ct = src[1:j + 1, :].astype(bf16)      # row r
        dn = src[2:j + 2, :].astype(bf16)      # row r+1 (zero at image bottom)
        y = jnp.dot(up, ma[...], preferred_element_type=f32)
        y = y + jnp.dot(ct, mb[...], preferred_element_type=f32)
        y = y + jnp.dot(dn, mc[...], preferred_element_type=f32)
        return jnp.maximum(y + bias[...], 0.0)

    def pool(y, re, ro, ce, co):
        # 2x2 / stride-2 maxpool via bf16 0/1 selector matmuls (exact).
        yb = y.astype(bf16)
        vm = jnp.maximum(jnp.dot(re[...], yb, preferred_element_type=f32),
                         jnp.dot(ro[...], yb, preferred_element_type=f32))
        vmb = vm.astype(bf16)
        return jnp.maximum(jnp.dot(vmb, ce[...], preferred_element_type=f32),
                           jnp.dot(vmb, co[...], preferred_element_type=f32))

    x = x_ref[0]                               # (TB*(h1+2), cin*w1) f32
    y1 = conv3(x, m1a, m1b, m1c, b1)           # (TB*(h1+2)-2, c1*w1)
    a1 = pool(y1, re1, ro1, ce1, co1)          # (TB*(h2+2), c1*w2), zero pads
    y2 = conv3(a1, m2a, m2b, m2c, b2)          # (TB*(h2+2)-2, c2*w2)
    a2 = pool(y2, re2, ro2, ce2, co2)          # (TB*h3, c2*w3), rows (i, t)
    a2b = a2.astype(bf16)

    tb = o_ref.shape[1]
    h3 = a2b.shape[0] // tb
    kf = a2b.shape[1]                          # c2*w3
    acc = jnp.zeros((tb, o_ref.shape[2]), f32) + bl[...]
    for i in range(h3):                        # fused linear, M=TB per dot
        acc = acc + jnp.dot(a2b[i * tb:(i + 1) * tb, :],
                            wl[i * kf:(i + 1) * kf, :],
                            preferred_element_type=f32)
    o_ref[0] = acc                             # lane-dense (TB, 128) store


# ----------------------------------------------------------------------------
# pallas_call wrapper
# ----------------------------------------------------------------------------
_WEIGHT_KEYS = ("m1a", "m1b", "m1c", "b1", "re1", "ro1", "ce1", "co1",
                "m2a", "m2b", "m2c", "b2", "re2", "ro2", "ce2", "co2",
                "wl", "bl")


def _resident(arr):
    nd = arr.ndim
    return pl.BlockSpec(arr.shape, lambda b, _nd=nd: (0,) * _nd)


def _fused_call(xs, prep, tb):
    nblk, rows, k = xs.shape
    npad = prep["wl"].shape[1]
    weights = [prep[key] for key in _WEIGHT_KEYS]
    grid_spec = pltpu.PrefetchScalarGridSpec(
        num_scalar_prefetch=0,
        grid=(nblk,),
        in_specs=[pl.BlockSpec((1, rows, k), lambda b: (b, 0, 0))]
                 + [_resident(a) for a in weights],
        out_specs=pl.BlockSpec((1, tb, npad), lambda b: (b, 0, 0)),
    )
    return pl.pallas_call(
        _cnn_fused_kernel,
        out_shape=jax.ShapeDtypeStruct((nblk, tb, npad), jnp.float32),
        grid_spec=grid_spec,
        compiler_params=pltpu.CompilerParams(
            dimension_semantics=("parallel",)),
    )(xs, *weights)


# ----------------------------------------------------------------------------
# Parameters: PyTorch layout + one-time preprocessing
# ----------------------------------------------------------------------------
def init_params(key, in_channels, num_classes=10):
    ks = jax.random.split(key, 6)
    scale = 0.1
    return {
        "w1": scale * jax.random.normal(ks[0], (8, in_channels, 3, 3), jnp.float32),
        "b1": scale * jax.random.normal(ks[1], (8,), jnp.float32),
        "w2": scale * jax.random.normal(ks[2], (16, 8, 3, 3), jnp.float32),
        "b2": scale * jax.random.normal(ks[3], (16,), jnp.float32),
        # nn.Linear stores weight as (out_features, in_features)
        "wl": scale * jax.random.normal(ks[4], (num_classes, 16 * 7 * 7), jnp.float32),
        "bl": scale * jax.random.normal(ks[5], (num_classes,), jnp.float32),
    }


def _np_even_sel(w):
    m = np.zeros((w, w // 2), np.float32)
    m[2 * np.arange(w // 2), np.arange(w // 2)] = 1.0
    return m


def _np_odd_sel(w):
    m = np.zeros((w, w // 2), np.float32)
    m[2 * np.arange(w // 2) + 1, np.arange(w // 2)] = 1.0
    return m


def _conv_shift_weights(wt, w):
    """(Cout, Cin, 3, 3) -> 3 matrices M_di (Cin*w, Cout*w) bf16 with the
    column (dj) shifts folded in, so conv = sum_di dot(x_rowshift_di, M_di)."""
    cout, cin = wt.shape[0], wt.shape[1]
    mats = []
    for di in range(3):
        m = jnp.zeros((cin * w, cout * w), jnp.float32)
        for dj in range(3):
            w2d = wt[:, :, di, dj].T.astype(jnp.float32)        # (cin, cout)
            shift = jnp.eye(w, k=1 - dj, dtype=jnp.float32)     # S_{dj-1}
            m = m + jnp.kron(w2d, shift)
        mats.append(m.astype(jnp.bfloat16))
    return mats


def prepare_params(params, tb=4):
    """One-time weight preprocessing for the fused kernel (batch tile = tb)."""
    w1, b1 = params["w1"], params["b1"]
    w2, b2 = params["w2"], params["b2"]
    wl, bl = params["wl"], params["bl"]
    c1, c2, n = w1.shape[0], w2.shape[0], wl.shape[0]
    h1, h2, h3 = 28, 14, 7
    hp1, hp2 = h1 + 2, h2 + 2
    npad = 128 * (-(-n // 128))
    bf = lambda a: jnp.asarray(a, jnp.bfloat16)

    m1 = _conv_shift_weights(w1, h1)
    m2 = _conv_shift_weights(w2, h2)

    # Row-pool selectors (bf16).  Stage 1 maps conv1 output rows
    # (j = t*hp1 + r) into conv2's zero-padded stacked layout (q = t*hp2+1+r2,
    # pad rows are all-zero selector rows -> exact zeros).  Stage 2 maps conv2
    # output rows into (i*tb + t) order for the batched linear.
    j1 = tb * hp1 - 2
    re1 = np.zeros((tb * hp2, j1), np.float32)
    ro1 = np.zeros((tb * hp2, j1), np.float32)
    for t in range(tb):
        for r in range(h2):
            re1[t * hp2 + 1 + r, t * hp1 + 2 * r] = 1.0
            ro1[t * hp2 + 1 + r, t * hp1 + 2 * r + 1] = 1.0
    j2 = tb * hp2 - 2
    re2 = np.zeros((tb * h3, j2), np.float32)
    ro2 = np.zeros((tb * h3, j2), np.float32)
    for t in range(tb):
        for i in range(h3):
            re2[i * tb + t, t * hp2 + 2 * i] = 1.0
            ro2[i * tb + t, t * hp2 + 2 * i + 1] = 1.0

    # Column-pool selectors (per-channel even/odd columns).
    ce1 = np.kron(np.eye(c1, dtype=np.float32), _np_even_sel(h1))
    co1 = np.kron(np.eye(c1, dtype=np.float32), _np_odd_sel(h1))
    ce2 = np.kron(np.eye(c2, dtype=np.float32), _np_even_sel(h2))
    co2 = np.kron(np.eye(c2, dtype=np.float32), _np_odd_sel(h2))

    # Linear: PyTorch flatten order is (c2, i, j); kernel rows are (i, t) with
    # features (co*7 + j) -> permute wl rows to (i, co, j), pad to 128 lanes.
    wl4 = wl.reshape(n, c2, h3, h3).astype(jnp.float32)
    wl_big = wl4.transpose(2, 1, 3, 0).reshape(h3 * c2 * h3, n)
    wl_big = jnp.pad(wl_big, ((0, 0), (0, npad - n))).astype(jnp.bfloat16)
    bl_pad = jnp.pad(bl.astype(jnp.float32), (0, npad - n))[None, :]

    return {
        "m1a": m1[0], "m1b": m1[1], "m1c": m1[2],
        "b1": jnp.repeat(b1.astype(jnp.float32), h1)[None, :],
        "re1": bf(re1), "ro1": bf(ro1), "ce1": bf(ce1), "co1": bf(co1),
        "m2a": m2[0], "m2b": m2[1], "m2c": m2[2],
        "b2": jnp.repeat(b2.astype(jnp.float32), h2)[None, :],
        "re2": bf(re2), "ro2": bf(ro2), "ce2": bf(ce2), "co2": bf(co2),
        "wl": wl_big, "bl": bl_pad,
    }


# ----------------------------------------------------------------------------
# Full forward pass: exactly 1 pallas_call
# ----------------------------------------------------------------------------
@functools.partial(jax.jit, static_argnames=("num_classes",))
def cnn_forward(x, prep, num_classes=10):
    b, cin, hh, ww = x.shape                 # hh/ww must be 28 (16*7*7 linear)
    tb = prep["re2"].shape[0] // (hh // 4)   # batch tile used at prepare time
    bp = -(-b // tb) * tb                    # pad batch to a multiple of tb
    if bp != b:
        x = jnp.pad(x, ((0, bp - b), (0, 0), (0, 0), (0, 0)))
    # NCHW -> channel-blocked rows [b, h, ci*W + w], add the zero row ring,
    # then stack tb images per grid block along the matmul M dimension.
    xb = x.astype(jnp.float32).transpose(0, 2, 1, 3).reshape(bp, hh, cin * ww)
    xb = jnp.pad(xb, ((0, 0), (1, 1), (0, 0)))
    xs = xb.reshape(bp // tb, tb * (hh + 2), cin * ww)
    out = _fused_call(xs, prep, tb)          # (nblk, tb, 128) f32
    return out.reshape(bp, -1)[:b, :num_classes]


# ----------------------------------------------------------------------------
# Pure-XLA reference (loose bf16-tolerance sanity check)
# ----------------------------------------------------------------------------
def _pool_ref(y):
    b, c, h, w = y.shape
    return y.reshape(b, c, h // 2, 2, w // 2, 2).max(axis=(3, 5))


def reference_forward(x, params):
    def conv(y, wt, bias):
        dn = jax.lax.conv_dimension_numbers(y.shape, wt.shape,
                                            ("NCHW", "OIHW", "NCHW"))
        y = jax.lax.conv_general_dilated(y, wt, (1, 1), ((1, 1), (1, 1)),
                                         dimension_numbers=dn)
        return jax.nn.relu(y + bias[None, :, None, None])

    y = _pool_ref(conv(x, params["w1"], params["b1"]))
    y = _pool_ref(conv(y, params["w2"], params["b2"]))
    y = y.reshape(y.shape[0], -1)
    return y @ params["wl"].T + params["bl"][None, :]


if __name__ == "__main__":
    key = jax.random.PRNGKey(0)
    k_x, k_p = jax.random.split(key)

    # The 16*7*7 linear layer implies 28x28 spatial input (MNIST-like).
    B, in_channels, H, W = 8, 1, 28, 28
    x = jax.random.normal(k_x, (B, in_channels, H, W), jnp.float32)
    params = init_params(k_p, in_channels, num_classes=10)
    # tb=4 -> M ~ 120/64 for the convs and 2 grid steps at B=8 (feeds both
    # v7x TensorCores); bump tb to 8-16 for larger batches on v6e/v7x.
    prep = prepare_params(params, tb=4)

    logits = cnn_forward(x, prep, num_classes=10)
    logits = jax.block_until_ready(logits)
    assert logits.shape == (B, 10), logits.shape

    # Loose tolerance: all matmuls use bf16 operands with f32 accumulation.
    ref = reference_forward(x, params)
    max_err = float(jnp.max(jnp.abs(logits - ref)))
    assert max_err < 1e-1, f"max abs err vs reference: {max_err}"

    print("KERNEL_OK")
</pallas_src>

<mosaic_0001>
module attributes {stable_mosaic.version = 11 : i64} {
  func.func @_cnn_fused_kernel(%arg0: i32, %arg1: memref<1x120x28xf32, #tpu.memory_space<vmem>>, %arg2: memref<28x224xbf16, #tpu.memory_space<vmem>>, %arg3: memref<28x224xbf16, #tpu.memory_space<vmem>>, %arg4: memref<28x224xbf16, #tpu.memory_space<vmem>>, %arg5: memref<1x224xf32, #tpu.memory_space<vmem>>, %arg6: memref<64x118xbf16, #tpu.memory_space<vmem>>, %arg7: memref<64x118xbf16, #tpu.memory_space<vmem>>, %arg8: memref<224x112xbf16, #tpu.memory_space<vmem>>, %arg9: memref<224x112xbf16, #tpu.memory_space<vmem>>, %arg10: memref<112x224xbf16, #tpu.memory_space<vmem>>, %arg11: memref<112x224xbf16, #tpu.memory_space<vmem>>, %arg12: memref<112x224xbf16, #tpu.memory_space<vmem>>, %arg13: memref<1x224xf32, #tpu.memory_space<vmem>>, %arg14: memref<28x62xbf16, #tpu.memory_space<vmem>>, %arg15: memref<28x62xbf16, #tpu.memory_space<vmem>>, %arg16: memref<224x112xbf16, #tpu.memory_space<vmem>>, %arg17: memref<224x112xbf16, #tpu.memory_space<vmem>>, %arg18: memref<784x128xbf16, #tpu.memory_space<vmem>>, %arg19: memref<1x128xf32, #tpu.memory_space<vmem>>, %arg20: memref<1x4x128xf32, #tpu.memory_space<vmem>>) attributes {dimension_semantics = [#tpu.dimension_semantics<parallel>], iteration_bounds = array<i64: 2>, scalar_prefetch = 0 : i64, scratch_operands = 0 : i64, tpu.core_type = #tpu.core_type<tc>, window_params = [{transform_indices = @transform_0, window_bounds = array<i64: 1, 120, 28>}, {pipeline_mode = #tpu.pipeline_mode<synchronous>, transform_indices = @transform_1, window_bounds = array<i64: 28, 224>}, {pipeline_mode = #tpu.pipeline_mode<synchronous>, transform_indices = @transform_2, window_bounds = array<i64: 28, 224>}, {pipeline_mode = #tpu.pipeline_mode<synchronous>, transform_indices = @transform_3, window_bounds = array<i64: 28, 224>}, {pipeline_mode = #tpu.pipeline_mode<synchronous>, transform_indices = @transform_4, window_bounds = array<i64: 1, 224>}, {pipeline_mode = #tpu.pipeline_mode<synchronous>, transform_indices = @transform_5, window_bounds = array<i64: 64, 118>}, {pipeline_mode = #tpu.pipeline_mode<synchronous>, transform_indices = @transform_6, window_bounds = array<i64: 64, 118>}, {pipeline_mode = #tpu.pipeline_mode<synchronous>, transform_indices = @transform_7, window_bounds = array<i64: 224, 112>}, {pipeline_mode = #tpu.pipeline_mode<synchronous>, transform_indices = @transform_8, window_bounds = array<i64: 224, 112>}, {pipeline_mode = #tpu.pipeline_mode<synchronous>, transform_indices = @transform_9, window_bounds = array<i64: 112, 224>}, {pipeline_mode = #tpu.pipeline_mode<synchronous>, transform_indices = @transform_10, window_bounds = array<i64: 112, 224>}, {pipeline_mode = #tpu.pipeline_mode<synchronous>, transform_indices = @transform_11, window_bounds = array<i64: 112, 224>}, {pipeline_mode = #tpu.pipeline_mode<synchronous>, transform_indices = @transform_12, window_bounds = array<i64: 1, 224>}, {pipeline_mode = #tpu.pipeline_mode<synchronous>, transform_indices = @transform_13, window_bounds = array<i64: 28, 62>}, {pipeline_mode = #tpu.pipeline_mode<synchronous>, transform_indices = @transform_14, window_bounds = array<i64: 28, 62>}, {pipeline_mode = #tpu.pipeline_mode<synchronous>, transform_indices = @transform_15, window_bounds = array<i64: 224, 112>}, {pipeline_mode = #tpu.pipeline_mode<synchronous>, transform_indices = @transform_16, window_bounds = array<i64: 224, 112>}, {pipeline_mode = #tpu.pipeline_mode<synchronous>, transform_indices = @transform_17, window_bounds = array<i64: 784, 128>}, {pipeline_mode = #tpu.pipeline_mode<synchronous>, transform_indices = @transform_18, window_bounds = array<i64: 1, 128>}, {transform_indices = @transform_19, window_bounds = array<i64: 1, 4, 128>}]} {
    %c0 = arith.constant 0 : index
    %c0_0 = arith.constant 0 : index
    %c0_1 = arith.constant 0 : index
    %0 = vector.load %arg1[%c0, %c0_0, %c0_1] : memref<1x120x28xf32, #tpu.memory_space<vmem>>, vector<1x120x28xf32>
    %1 = vector.shape_cast %0 : vector<1x120x28xf32> to vector<120x28xf32>
    %2 = vector.extract_strided_slice %1 {offsets = [0, 0], sizes = [118, 28], strides = [1, 1]} : vector<120x28xf32> to vector<118x28xf32>
    %3 = arith.truncf %2 : vector<118x28xf32> to vector<118x28xbf16>
    %4 = vector.extract_strided_slice %1 {offsets = [1, 0], sizes = [118, 28], strides = [1, 1]} : vector<120x28xf32> to vector<118x28xf32>
    %5 = arith.truncf %4 : vector<118x28xf32> to vector<118x28xbf16>
    %6 = vector.extract_strided_slice %1 {offsets = [2, 0], sizes = [118, 28], strides = [1, 1]} : vector<120x28xf32> to vector<118x28xf32>
    %7 = arith.truncf %6 : vector<118x28xf32> to vector<118x28xbf16>
    %c0_2 = arith.constant 0 : index
    %c0_3 = arith.constant 0 : index
    %8 = vector.load %arg2[%c0_2, %c0_3] : memref<28x224xbf16, #tpu.memory_space<vmem>>, vector<28x224xbf16>
    %cst = arith.constant dense<0.000000e+00> : vector<118x224xf32>
    %9 = tpu.matmul %3, %8, %cst {dimension_numbers = #tpu.dot_dimension_numbers<[1], [0], [0], [1], [0, 0, 1, 1], [], []>} : vector<118x28xbf16>, vector<28x224xbf16>, vector<118x224xf32> -> vector<118x224xf32>
    %c0_4 = arith.constant 0 : index
    %c0_5 = arith.constant 0 : index
    %10 = vector.load %arg3[%c0_4, %c0_5] : memref<28x224xbf16, #tpu.memory_space<vmem>>, vector<28x224xbf16>
    %cst_6 = arith.constant dense<0.000000e+00> : vector<118x224xf32>
    %11 = tpu.matmul %5, %10, %cst_6 {dimension_numbers = #tpu.dot_dimension_numbers<[1], [0], [0], [1], [0, 0, 1, 1], [], []>} : vector<118x28xbf16>, vector<28x224xbf16>, vector<118x224xf32> -> vector<118x224xf32>
    %12 = arith.addf %9, %11 : vector<118x224xf32>
    %c0_7 = arith.constant 0 : index
    %c0_8 = arith.constant 0 : index
    %13 = vector.load %arg4[%c0_7, %c0_8] : memref<28x224xbf16, #tpu.memory_space<vmem>>, vector<28x224xbf16>
    %cst_9 = arith.constant dense<0.000000e+00> : vector<118x224xf32>
    %14 = tpu.matmul %7, %13, %cst_9 {dimension_numbers = #tpu.dot_dimension_numbers<[1], [0], [0], [1], [0, 0, 1, 1], [], []>} : vector<118x28xbf16>, vector<28x224xbf16>, vector<118x224xf32> -> vector<118x224xf32>
    %15 = arith.addf %12, %14 : vector<118x224xf32>
    %c0_10 = arith.constant 0 : index
    %c0_11 = arith.constant 0 : index
    %16 = vector.load %arg5[%c0_10, %c0_11] : memref<1x224xf32, #tpu.memory_space<vmem>>, vector<1x224xf32>
    %17 = vector.broadcast %16 : vector<1x224xf32> to vector<118x224xf32>
    %18 = arith.addf %15, %17 : vector<118x224xf32>
    %cst_12 = arith.constant 0.000000e+00 : f32
    %19 = vector.broadcast %cst_12 : f32 to vector<118x224xf32>
    %20 = arith.maximumf %18, %19 : vector<118x224xf32>
    %21 = arith.truncf %20 : vector<118x224xf32> to vector<118x224xbf16>
    %c0_13 = arith.constant 0 : index
    %c0_14 = arith.constant 0 : index
    %22 = vector.load %arg6[%c0_13, %c0_14] : memref<64x118xbf16, #tpu.memory_space<vmem>>, vector<64x118xbf16>
    %cst_15 = arith.constant dense<0.000000e+00> : vector<64x224xf32>
    %23 = tpu.matmul %22, %21, %cst_15 {dimension_numbers = #tpu.dot_dimension_numbers<[1], [0], [0], [1], [0, 0, 1, 1], [], []>} : vector<64x118xbf16>, vector<118x224xbf16>, vector<64x224xf32> -> vector<64x224xf32>
    %c0_16 = arith.constant 0 : index
    %c0_17 = arith.constant 0 : index
    %24 = vector.load %arg7[%c0_16, %c0_17] : memref<64x118xbf16, #tpu.memory_space<vmem>>, vector<64x118xbf16>
    %cst_18 = arith.constant dense<0.000000e+00> : vector<64x224xf32>
    %25 = tpu.matmul %24, %21, %cst_18 {dimension_numbers = #tpu.dot_dimension_numbers<[1], [0], [0], [1], [0, 0, 1, 1], [], []>} : vector<64x118xbf16>, vector<118x224xbf16>, vector<64x224xf32> -> vector<64x224xf32>
    %26 = arith.maximumf %23, %25 : vector<64x224xf32>
    %27 = arith.truncf %26 : vector<64x224xf32> to vector<64x224xbf16>
    %c0_19 = arith.constant 0 : index
    %c0_20 = arith.constant 0 : index
    %28 = vector.load %arg8[%c0_19, %c0_20] : memref<224x112xbf16, #tpu.memory_space<vmem>>, vector<224x112xbf16>
    %cst_21 = arith.constant dense<0.000000e+00> : vector<64x112xf32>
    %29 = tpu.matmul %27, %28, %cst_21 {dimension_numbers = #tpu.dot_dimension_numbers<[1], [0], [0], [1], [0, 0, 1, 1], [], []>} : vector<64x224xbf16>, vector<224x112xbf16>, vector<64x112xf32> -> vector<64x112xf32>
    %c0_22 = arith.constant 0 : index
    %c0_23 = arith.constant 0 : index
    %30 = vector.load %arg9[%c0_22, %c0_23] : memref<224x112xbf16, #tpu.memory_space<vmem>>, vector<224x112xbf16>
    %cst_24 = arith.constant dense<0.000000e+00> : vector<64x112xf32>
    %31 = tpu.matmul %27, %30, %cst_24 {dimension_numbers = #tpu.dot_dimension_numbers<[1], [0], [0], [1], [0, 0, 1, 1], [], []>} : vector<64x224xbf16>, vector<224x112xbf16>, vector<64x112xf32> -> vector<64x112xf32>
    %32 = arith.maximumf %29, %31 : vector<64x112xf32>
    %33 = vector.extract_strided_slice %32 {offsets = [0, 0], sizes = [62, 112], strides = [1, 1]} : vector<64x112xf32> to vector<62x112xf32>
    %34 = arith.truncf %33 : vector<62x112xf32> to vector<62x112xbf16>
    %35 = vector.extract_strided_slice %32 {offsets = [1, 0], sizes = [62, 112], strides = [1, 1]} : vector<64x112xf32> to vector<62x112xf32>
    %36 = arith.truncf %35 : vector<62x112xf32> to vector<62x112xbf16>
    %37 = vector.extract_strided_slice %32 {offsets = [2, 0], sizes = [62, 112], strides = [1, 1]} : vector<64x112xf32> to vector<62x112xf32>
    %38 = arith.truncf %37 : vector<62x112xf32> to vector<62x112xbf16>
    %c0_25 = arith.constant 0 : index
    %c0_26 = arith.constant 0 : index
    %39 = vector.load %arg10[%c0_25, %c0_26] : memref<112x224xbf16, #tpu.memory_space<vmem>>, vector<112x224xbf16>
    %cst_27 = arith.constant dense<0.000000e+00> : vector<62x224xf32>
    %40 = tpu.matmul %34, %39, %cst_27 {dimension_numbers = #tpu.dot_dimension_numbers<[1], [0], [0], [1], [0, 0, 1, 1], [], []>} : vector<62x112xbf16>, vector<112x224xbf16>, vector<62x224xf32> -> vector<62x224xf32>
    %c0_28 = arith.constant 0 : index
    %c0_29 = arith.constant 0 : index
    %41 = vector.load %arg11[%c0_28, %c0_29] : memref<112x224xbf16, #tpu.memory_space<vmem>>, vector<112x224xbf16>
    %cst_30 = arith.constant dense<0.000000e+00> : vector<62x224xf32>
    %42 = tpu.matmul %36, %41, %cst_30 {dimension_numbers = #tpu.dot_dimension_numbers<[1], [0], [0], [1], [0, 0, 1, 1], [], []>} : vector<62x112xbf16>, vector<112x224xbf16>, vector<62x224xf32> -> vector<62x224xf32>
    %43 = arith.addf %40, %42 : vector<62x224xf32>
    %c0_31 = arith.constant 0 : index
    %c0_32 = arith.constant 0 : index
    %44 = vector.load %arg12[%c0_31, %c0_32] : memref<112x224xbf16, #tpu.memory_space<vmem>>, vector<112x224xbf16>
    %cst_33 = arith.constant dense<0.000000e+00> : vector<62x224xf32>
    %45 = tpu.matmul %38, %44, %cst_33 {dimension_numbers = #tpu.dot_dimension_numbers<[1], [0], [0], [1], [0, 0, 1, 1], [], []>} : vector<62x112xbf16>, vector<112x224xbf16>, vector<62x224xf32> -> vector<62x224xf32>
    %46 = arith.addf %43, %45 : vector<62x224xf32>
    %c0_34 = arith.constant 0 : index
    %c0_35 = arith.constant 0 : index
    %47 = vector.load %arg13[%c0_34, %c0_35] : memref<1x224xf32, #tpu.memory_space<vmem>>, vector<1x224xf32>
    %48 = vector.broadcast %47 : vector<1x224xf32> to vector<62x224xf32>
    %49 = arith.addf %46, %48 : vector<62x224xf32>
    %cst_36 = arith.constant 0.000000e+00 : f32
    %50 = vector.broadcast %cst_36 : f32 to vector<62x224xf32>
    %51 = arith.maximumf %49, %50 : vector<62x224xf32>
    %52 = arith.truncf %51 : vector<62x224xf32> to vector<62x224xbf16>
    %c0_37 = arith.constant 0 : index
    %c0_38 = arith.constant 0 : index
    %53 = vector.load %arg14[%c0_37, %c0_38] : memref<28x62xbf16, #tpu.memory_space<vmem>>, vector<28x62xbf16>
    %cst_39 = arith.constant dense<0.000000e+00> : vector<28x224xf32>
    %54 = tpu.matmul %53, %52, %cst_39 {dimension_numbers = #tpu.dot_dimension_numbers<[1], [0], [0], [1], [0, 0, 1, 1], [], []>} : vector<28x62xbf16>, vector<62x224xbf16>, vector<28x224xf32> -> vector<28x224xf32>
    %c0_40 = arith.constant 0 : index
    %c0_41 = arith.constant 0 : index
    %55 = vector.load %arg15[%c0_40, %c0_41] : memref<28x62xbf16, #tpu.memory_space<vmem>>, vector<28x62xbf16>
    %cst_42 = arith.constant dense<0.000000e+00> : vector<28x224xf32>
    %56 = tpu.matmul %55, %52, %cst_42 {dimension_numbers = #tpu.dot_dimension_numbers<[1], [0], [0], [1], [0, 0, 1, 1], [], []>} : vector<28x62xbf16>, vector<62x224xbf16>, vector<28x224xf32> -> vector<28x224xf32>
    %57 = arith.maximumf %54, %56 : vector<28x224xf32>
    %58 = arith.truncf %57 : vector<28x224xf32> to vector<28x224xbf16>
    %c0_43 = arith.constant 0 : index
    %c0_44 = arith.constant 0 : index
    %59 = vector.load %arg16[%c0_43, %c0_44] : memref<224x112xbf16, #tpu.memory_space<vmem>>, vector<224x112xbf16>
    %cst_45 = arith.constant dense<0.000000e+00> : vector<28x112xf32>
    %60 = tpu.matmul %58, %59, %cst_45 {dimension_numbers = #tpu.dot_dimension_numbers<[1], [0], [0], [1], [0, 0, 1, 1], [], []>} : vector<28x224xbf16>, vector<224x112xbf16>, vector<28x112xf32> -> vector<28x112xf32>
    %c0_46 = arith.constant 0 : index
    %c0_47 = arith.constant 0 : index
    %61 = vector.load %arg17[%c0_46, %c0_47] : memref<224x112xbf16, #tpu.memory_space<vmem>>, vector<224x112xbf16>
    %cst_48 = arith.constant dense<0.000000e+00> : vector<28x112xf32>
    %62 = tpu.matmul %58, %61, %cst_48 {dimension_numbers = #tpu.dot_dimension_numbers<[1], [0], [0], [1], [0, 0, 1, 1], [], []>} : vector<28x224xbf16>, vector<224x112xbf16>, vector<28x112xf32> -> vector<28x112xf32>
    %63 = arith.maximumf %60, %62 : vector<28x112xf32>
    %64 = arith.truncf %63 : vector<28x112xf32> to vector<28x112xbf16>
    %cst_49 = arith.constant 0.000000e+00 : f32
    %65 = vector.broadcast %cst_49 : f32 to vector<4x128xf32>
    %c0_50 = arith.constant 0 : index
    %c0_51 = arith.constant 0 : index
    %66 = vector.load %arg19[%c0_50, %c0_51] : memref<1x128xf32, #tpu.memory_space<vmem>>, vector<1x128xf32>
    %67 = vector.broadcast %66 : vector<1x128xf32> to vector<4x128xf32>
    %68 = arith.addf %65, %67 : vector<4x128xf32>
    %69 = vector.extract_strided_slice %64 {offsets = [0, 0], sizes = [4, 112], strides = [1, 1]} : vector<28x112xbf16> to vector<4x112xbf16>
    %c0_52 = arith.constant 0 : index
    %c0_53 = arith.constant 0 : index
    %70 = vector.load %arg18[%c0_52, %c0_53] : memref<784x128xbf16, #tpu.memory_space<vmem>>, vector<112x128xbf16>
    %cst_54 = arith.constant dense<0.000000e+00> : vector<4x128xf32>
    %71 = tpu.matmul %69, %70, %cst_54 {dimension_numbers = #tpu.dot_dimension_numbers<[1], [0], [0], [1], [0, 0, 1, 1], [], []>} : vector<4x112xbf16>, vector<112x128xbf16>, vector<4x128xf32> -> vector<4x128xf32>
    %72 = arith.addf %68, %71 : vector<4x128xf32>
    %73 = vector.extract_strided_slice %64 {offsets = [4, 0], sizes = [4, 112], strides = [1, 1]} : vector<28x112xbf16> to vector<4x112xbf16>
    %c112 = arith.constant 112 : index
    %c0_55 = arith.constant 0 : index
    %74 = vector.load %arg18[%c112, %c0_55] : memref<784x128xbf16, #tpu.memory_space<vmem>>, vector<112x128xbf16>
    %cst_56 = arith.constant dense<0.000000e+00> : vector<4x128xf32>
    %75 = tpu.matmul %73, %74, %cst_56 {dimension_numbers = #tpu.dot_dimension_numbers<[1], [0], [0], [1], [0, 0, 1, 1], [], []>} : vector<4x112xbf16>, vector<112x128xbf16>, vector<4x128xf32> -> vector<4x128xf32>
    %76 = arith.addf %72, %75 : vector<4x128xf32>
    %77 = vector.extract_strided_slice %64 {offsets = [8, 0], sizes = [4, 112], strides = [1, 1]} : vector<28x112xbf16> to vector<4x112xbf16>
    %c224 = arith.constant 224 : index
    %c0_57 = arith.constant 0 : index
    %78 = vector.load %arg18[%c224, %c0_57] : memref<784x128xbf16, #tpu.memory_space<vmem>>, vector<112x128xbf16>
    %cst_58 = arith.constant dense<0.000000e+00> : vector<4x128xf32>
    %79 = tpu.matmul %77, %78, %cst_58 {dimension_numbers = #tpu.dot_dimension_numbers<[1], [0], [0], [1], [0, 0, 1, 1], [], []>} : vector<4x112xbf16>, vector<112x128xbf16>, vector<4x128xf32> -> vector<4x128xf32>
    %80 = arith.addf %76, %79 : vector<4x128xf32>
    %81 = vector.extract_strided_slice %64 {offsets = [12, 0], sizes = [4, 112], strides = [1, 1]} : vector<28x112xbf16> to vector<4x112xbf16>
    %c336 = arith.constant 336 : index
    %c0_59 = arith.constant 0 : index
    %82 = vector.load %arg18[%c336, %c0_59] : memref<784x128xbf16, #tpu.memory_space<vmem>>, vector<112x128xbf16>
    %cst_60 = arith.constant dense<0.000000e+00> : vector<4x128xf32>
    %83 = tpu.matmul %81, %82, %cst_60 {dimension_numbers = #tpu.dot_dimension_numbers<[1], [0], [0], [1], [0, 0, 1, 1], [], []>} : vector<4x112xbf16>, vector<112x128xbf16>, vector<4x128xf32> -> vector<4x128xf32>
    %84 = arith.addf %80, %83 : vector<4x128xf32>
    %85 = vector.extract_strided_slice %64 {offsets = [16, 0], sizes = [4, 112], strides = [1, 1]} : vector<28x112xbf16> to vector<4x112xbf16>
    %c448 = arith.constant 448 : index
    %c0_61 = arith.constant 0 : index
    %86 = vector.load %arg18[%c448, %c0_61] : memref<784x128xbf16, #tpu.memory_space<vmem>>, vector<112x128xbf16>
    %cst_62 = arith.constant dense<0.000000e+00> : vector<4x128xf32>
    %87 = tpu.matmul %85, %86, %cst_62 {dimension_numbers = #tpu.dot_dimension_numbers<[1], [0], [0], [1], [0, 0, 1, 1], [], []>} : vector<4x112xbf16>, vector<112x128xbf16>, vector<4x128xf32> -> vector<4x128xf32>
    %88 = arith.addf %84, %87 : vector<4x128xf32>
    %89 = vector.extract_strided_slice %64 {offsets = [20, 0], sizes = [4, 112], strides = [1, 1]} : vector<28x112xbf16> to vector<4x112xbf16>
    %c560 = arith.constant 560 : index
    %c0_63 = arith.constant 0 : index
    %90 = vector.load %arg18[%c560, %c0_63] : memref<784x128xbf16, #tpu.memory_space<vmem>>, vector<112x128xbf16>
    %cst_64 = arith.constant dense<0.000000e+00> : vector<4x128xf32>
    %91 = tpu.matmul %89, %90, %cst_64 {dimension_numbers = #tpu.dot_dimension_numbers<[1], [0], [0], [1], [0, 0, 1, 1], [], []>} : vector<4x112xbf16>, vector<112x128xbf16>, vector<4x128xf32> -> vector<4x128xf32>
    %92 = arith.addf %88, %91 : vector<4x128xf32>
    %93 = vector.extract_strided_slice %64 {offsets = [24, 0], sizes = [4, 112], strides = [1, 1]} : vector<28x112xbf16> to vector<4x112xbf16>
    %c672 = arith.constant 672 : index
    %c0_65 = arith.constant 0 : index
    %94 = vector.load %arg18[%c672, %c0_65] : memref<784x128xbf16, #tpu.memory_space<vmem>>, vector<112x128xbf16>
    %cst_66 = arith.constant dense<0.000000e+00> : vector<4x128xf32>
    %95 = tpu.matmul %93, %94, %cst_66 {dimension_numbers = #tpu.dot_dimension_numbers<[1], [0], [0], [1], [0, 0, 1, 1], [], []>} : vector<4x112xbf16>, vector<112x128xbf16>, vector<4x128xf32> -> vector<4x128xf32>
    %96 = arith.addf %92, %95 : vector<4x128xf32>
    %c0_67 = arith.constant 0 : index
    %c0_68 = arith.constant 0 : index
    %c0_69 = arith.constant 0 : index
    %97 = vector.load %arg20[%c0_67, %c0_68, %c0_69] : memref<1x4x128xf32, #tpu.memory_space<vmem>>, vector<1x4x128xf32>
    %98 = vector.shape_cast %97 : vector<1x4x128xf32> to vector<4x128xf32>
    %99 = vector.shape_cast %96 : vector<4x128xf32> to vector<1x4x128xf32>
    tpu.vector_store %arg20[%c0_67, %c0_68, %c0_69], %99 {strides = array<i32>} : memref<1x4x128xf32, #tpu.memory_space<vmem>>, vector<1x4x128xf32>,
    return
  }
  func.func @transform_0(%arg0: i32) -> (i32, i32, i32) {
    %c0_i32 = arith.constant 0 : i32
    %c0_i32_0 = arith.constant 0 : i32
    %c0_i32_1 = arith.constant 0 : i32
    return %arg0, %c0_i32, %c0_i32_0 : i32, i32, i32
  }
  func.func @transform_1(%arg0: i32) -> (i32, i32) {
    %c0_i32 = arith.constant 0 : i32
    %c0_i32_0 = arith.constant 0 : i32
    %c0_i32_1 = arith.constant 0 : i32
    return %c0_i32, %c0_i32_0 : i32, i32
  }
  func.func @transform_2(%arg0: i32) -> (i32, i32) {
    %c0_i32 = arith.constant 0 : i32
    %c0_i32_0 = arith.constant 0 : i32
    %c0_i32_1 = arith.constant 0 : i32
    return %c0_i32, %c0_i32_0 : i32, i32
  }
  func.func @transform_3(%arg0: i32) -> (i32, i32) {
    %c0_i32 = arith.constant 0 : i32
    %c0_i32_0 = arith.constant 0 : i32
    %c0_i32_1 = arith.constant 0 : i32
    return %c0_i32, %c0_i32_0 : i32, i32
  }
  func.func @transform_4(%arg0: i32) -> (i32, i32) {
    %c0_i32 = arith.constant 0 : i32
    %c0_i32_0 = arith.constant 0 : i32
    %c0_i32_1 = arith.constant 0 : i32
    return %c0_i32, %c0_i32_0 : i32, i32
  }
  func.func @transform_5(%arg0: i32) -> (i32, i32) {
    %c0_i32 = arith.constant 0 : i32
    %c0_i32_0 = arith.constant 0 : i32
    %c0_i32_1 = arith.constant 0 : i32
    return %c0_i32, %c0_i32_0 : i32, i32
  }
  func.func @transform_6(%arg0: i32) -> (i32, i32) {
    %c0_i32 = arith.constant 0 : i32
    %c0_i32_0 = arith.constant 0 : i32
    %c0_i32_1 = arith.constant 0 : i32
    return %c0_i32, %c0_i32_0 : i32, i32
  }
  func.func @transform_7(%arg0: i32) -> (i32, i32) {
    %c0_i32 = arith.constant 0 : i32
    %c0_i32_0 = arith.constant 0 : i32
    %c0_i32_1 = arith.constant 0 : i32
    return %c0_i32, %c0_i32_0 : i32, i32
  }
  func.func @transform_8(%arg0: i32) -> (i32, i32) {
    %c0_i32 = arith.constant 0 : i32
    %c0_i32_0 = arith.constant 0 : i32
    %c0_i32_1 = arith.constant 0 : i32
    return %c0_i32, %c0_i32_0 : i32, i32
  }
  func.func @transform_9(%arg0: i32) -> (i32, i32) {
    %c0_i32 = arith.constant 0 : i32
    %c0_i32_0 = arith.constant 0 : i32
    %c0_i32_1 = arith.constant 0 : i32
    return %c0_i32, %c0_i32_0 : i32, i32
  }
  func.func @transform_10(%arg0: i32) -> (i32, i32) {
    %c0_i32 = arith.constant 0 : i32
    %c0_i32_0 = arith.constant 0 : i32
    %c0_i32_1 = arith.constant 0 : i32
    return %c0_i32, %c0_i32_0 : i32, i32
  }
  func.func @transform_11(%arg0: i32) -> (i32, i32) {
    %c0_i32 = arith.constant 0 : i32
    %c0_i32_0 = arith.constant 0 : i32
    %c0_i32_1 = arith.constant 0 : i32
    return %c0_i32, %c0_i32_0 : i32, i32
  }
  func.func @transform_12(%arg0: i32) -> (i32, i32) {
    %c0_i32 = arith.constant 0 : i32
    %c0_i32_0 = arith.constant 0 : i32
    %c0_i32_1 = arith.constant 0 : i32
    return %c0_i32, %c0_i32_0 : i32, i32
  }
  func.func @transform_13(%arg0: i32) -> (i32, i32) {
    %c0_i32 = arith.constant 0 : i32
    %c0_i32_0 = arith.constant 0 : i32
    %c0_i32_1 = arith.constant 0 : i32
    return %c0_i32, %c0_i32_0 : i32, i32
  }
  func.func @transform_14(%arg0: i32) -> (i32, i32) {
    %c0_i32 = arith.constant 0 : i32
    %c0_i32_0 = arith.constant 0 : i32
    %c0_i32_1 = arith.constant 0 : i32
    return %c0_i32, %c0_i32_0 : i32, i32
  }
  func.func @transform_15(%arg0: i32) -> (i32, i32) {
    %c0_i32 = arith.constant 0 : i32
    %c0_i32_0 = arith.constant 0 : i32
    %c0_i32_1 = arith.constant 0 : i32
    return %c0_i32, %c0_i32_0 : i32, i32
  }
  func.func @transform_16(%arg0: i32) -> (i32, i32) {
    %c0_i32 = arith.constant 0 : i32
    %c0_i32_0 = arith.constant 0 : i32
    %c0_i32_1 = arith.constant 0 : i32
    return %c0_i32, %c0_i32_0 : i32, i32
  }
  func.func @transform_17(%arg0: i32) -> (i32, i32) {
    %c0_i32 = arith.constant 0 : i32
    %c0_i32_0 = arith.constant 0 : i32
    %c0_i32_1 = arith.constant 0 : i32
    return %c0_i32, %c0_i32_0 : i32, i32
  }
  func.func @transform_18(%arg0: i32) -> (i32, i32) {
    %c0_i32 = arith.constant 0 : i32
    %c0_i32_0 = arith.constant 0 : i32
    %c0_i32_1 = arith.constant 0 : i32
    return %c0_i32, %c0_i32_0 : i32, i32
  }
  func.func @transform_19(%arg0: i32) -> (i32, i32, i32) {
    %c0_i32 = arith.constant 0 : i32
    %c0_i32_0 = arith.constant 0 : i32
    %c0_i32_1 = arith.constant 0 : i32
    return %arg0, %c0_i32, %c0_i32_0 : i32, i32, i32
  }
}

</mosaic_0001>

<llo_original>
// kernel: cnn_forward.1
$region0: #{cnn_forward.1}
  #allocation0 [shape = 'u32[]', space=smem, size = 0x4, offset = 0x4, fixed_abs, tag = 'smem constant byte address 0x4 - core index']
  #allocation1 [shape = 'u32[144,128]{1,0:T(1,128)}', space=vmem, size = 0x12000, scoped, tag = 'internal scratch']
  %s0 = inlined_call_operand.vmem [shape: f32[2,120,28], index: 0, kind: input, shape index: {}]
  %s1 = inlined_call_operand.vmem [shape: bf16[28,224], index: 1, kind: input, shape index: {}]
  %s2 = inlined_call_operand.vmem [shape: bf16[28,224], index: 2, kind: input, shape index: {}]
  %s3 = inlined_call_operand.vmem [shape: bf16[28,224], index: 3, kind: input, shape index: {}]
  %s4 = inlined_call_operand.vmem [shape: f32[1,224], index: 4, kind: input, shape index: {}]
  %s5 = inlined_call_operand.vmem [shape: bf16[64,118], index: 5, kind: input, shape index: {}]
  %s6 = inlined_call_operand.vmem [shape: bf16[64,118], index: 6, kind: input, shape index: {}]
  %s7 = inlined_call_operand.vmem [shape: bf16[224,112], index: 7, kind: input, shape index: {}]
  %s8 = inlined_call_operand.vmem [shape: bf16[224,112], index: 8, kind: input, shape index: {}]
  %s9 = inlined_call_operand.vmem [shape: bf16[112,224], index: 9, kind: input, shape index: {}]
  %s10 = inlined_call_operand.vmem [shape: bf16[112,224], index: 10, kind: input, shape index: {}]
  %s11 = inlined_call_operand.vmem [shape: bf16[112,224], index: 11, kind: input, shape index: {}]
  %s12 = inlined_call_operand.vmem [shape: f32[1,224], index: 12, kind: input, shape index: {}]
  %s13 = inlined_call_operand.vmem [shape: bf16[28,62], index: 13, kind: input, shape index: {}]
  %s14 = inlined_call_operand.vmem [shape: bf16[28,62], index: 14, kind: input, shape index: {}]
  %s15 = inlined_call_operand.vmem [shape: bf16[224,112], index: 15, kind: input, shape index: {}]
  %s16 = inlined_call_operand.vmem [shape: bf16[224,112], index: 16, kind: input, shape index: {}]
  %s17 = inlined_call_operand.vmem [shape: bf16[784,128], index: 17, kind: input, shape index: {}]
  %s18 = inlined_call_operand.vmem [shape: f32[1,128], index: 18, kind: input, shape index: {}]
  %s19 = inlined_call_operand.hbm [shape: f32[2,4,128], index: 19, kind: output, shape index: {}]
  %s20 = sld [smem:[#allocation0]]
  $region109: #{cnn_forward.1} parent=0
    _
  %s22 = ssub.s32 1, %s20
  %s23 = scalar_select 0, %s22, %s20
  $region1: #{cnn_forward.1} parent=0
    #allocation2 [shape = 'u8[4096]{0}', space=vmem, size = 0x1000, scoped, tag = 'output window, operand 0']
    #allocation3 [shape = 's32[2]{0}', space=sflag, size = 0x8, scoped, tag = 'scoped memory for cnn_forward.1']
    %24 = vsyncpa [#allocation3], 0
    %s25 = scalar_lea.sflag [#allocation3], 1
    %26 = vsyncpa %s25, 0
    loop: start=0, step=1, limit=4
    $region2: #{cnn_forward.1} parent=1 // loop_pre_header
      _
    $region3: #{cnn_forward.1} parent=1 // loop_header
      %s28 = sphi 0, %s32
      %p29 = scmp.ge.s32.totalorder %s28, 4
      %s38 = sphi 0, %s40
      %s41 = sphi 0, %s38
      %s42 = sphi 0, %s41
      %s58 = sphi 0, %s42
      %s62 = sphi 0, %s62
      %s64 = sphi 0, %s62
      %s65 = sphi 0, %s64
      %s79 = sphi 0, %s65
      %s83 = sphi 0, %s83
      %s85 = sphi 0, %s83
      %s86 = sphi 0, %s85
      %s100 = sphi 0, %s86
      %s104 = sphi 0, %s104
      %s106 = sphi 0, %s104
      %s107 = sphi 0, %s106
      %s121 = sphi 0, %s107
      %s125 = sphi 0, %s125
      %s127 = sphi 0, %s125
      %s128 = sphi 0, %s127
      %s142 = sphi 0, %s128
      %s146 = sphi 0, %s146
      %s148 = sphi 0, %s146
      %s149 = sphi 0, %s148
      %s163 = sphi 0, %s149
      %s167 = sphi 0, %s167
      %s169 = sphi 0, %s167
      %s170 = sphi 0, %s169
      %s184 = sphi 0, %s170
      %s188 = sphi 0, %s188
      %s190 = sphi 0, %s188
      %s191 = sphi 0, %s190
      %s205 = sphi 0, %s191
      %s209 = sphi 0, %s209
      %s211 = sphi 0, %s209
      %s212 = sphi 0, %s211
      %s226 = sphi 0, %s212
      %s230 = sphi 0, %s230
      %s232 = sphi 0, %s230
      %s233 = sphi 0, %s232
      %s247 = sphi 0, %s233
      %s251 = sphi 0, %s251
      %s253 = sphi 0, %s251
      %s254 = sphi 0, %s253
      %s268 = sphi 0, %s254
      %s272 = sphi 0, %s272
      %s274 = sphi 0, %s272
      %s275 = sphi 0, %s274
      %s289 = sphi 0, %s275
      %s293 = sphi 0, %s293
      %s295 = sphi 0, %s293
      %s296 = sphi 0, %s295
      %s310 = sphi 0, %s296
      %s314 = sphi 0, %s314
      %s316 = sphi 0, %s314
      %s317 = sphi 0, %s316
      %s331 = sphi 0, %s317
      %s335 = sphi 0, %s335
      %s337 = sphi 0, %s335
      %s338 = sphi 0, %s337
      %s352 = sphi 0, %s338
      %s356 = sphi 0, %s356
      %s358 = sphi 0, %s356
      %s359 = sphi 0, %s358
      %s373 = sphi 0, %s359
      %s377 = sphi 0, %s377
      %s379 = sphi 0, %s377
      %s380 = sphi 0, %s379
      %s394 = sphi 0, %s380
      %s398 = sphi 0, %s398
      %s400 = sphi 0, %s398
      %s401 = sphi 0, %s400
      %s415 = sphi 0, %s401
      %s419 = sphi 0, %s419
      %s421 = sphi 0, %s419
      %s422 = sphi 0, %s421
      %s436 = sphi 0, %s422
      %s442 = sphi 0, %s444
      %s445 = sphi 0, %s442
      %s446 = sphi 0, %s445
      %s462 = sphi 0, %s446
    $region4: #{cnn_forward.1} parent=1 // loop_header_branch
      %31 = sbr.rel (%p29) target = $region8
    $region5: #{cnn_forward.1} parent=1 // loop_body
      %s33 = ssub.s32 %s28, 1
      %s34 = ssub.s32 %s28, 2
      %s35 = sadd.s32 %s28, 1
      %s36 = ssub.s32 %s28, %s35
      %p37 = scmp.eq.s32.totalorder %s36, 0
      %s39 = sadd.s32 %s38, 1
      %s40 = scalar_select %p37, %s38, %s39
      %p43 = pneg %p37
      %p44 = scmp.eq.s32.totalorder %s28, 1
      %p45 = por %p43, %p44
      %p46 = scmp.ne.s32.totalorder %s38, %s41
      %p47 = scmp.eq.s32.totalorder %s28, 0
      %p48 = por %p46, %p47
      %p49 = scmp.ne.s32.totalorder %s38, %s41
      %p50 = scmp.eq.s32.totalorder %s33, 1
      %p51 = por %p49, %p50
      %p52 = scmp.ne.s32.totalorder %s41, %s42
      %p53 = scmp.eq.s32.totalorder %s33, 0
      %p54 = por %p52, %p53
      %p55 = scmp.ne.s32.totalorder %s41, %s42
      %p56 = scmp.eq.s32.totalorder %s34, 1
      %p57 = por %p55, %p56
      %p59 = scmp.ne.s32.totalorder %s42, %s58
      %p60 = scmp.eq.s32.totalorder %s34, 0
      %p61 = por %p59, %p60
      %s63 = sadd.s32 %s62, 1
      %p66 = scmp.eq.s32.totalorder %s28, 1
      %p67 = scmp.ne.s32.totalorder %s62, %s64
      %p68 = scmp.eq.s32.totalorder %s28, 0
      %p69 = por %p67, %p68
      %p70 = scmp.ne.s32.totalorder %s62, %s64
      %p71 = scmp.eq.s32.totalorder %s33, 1
      %p72 = por %p70, %p71
      %p73 = scmp.ne.s32.totalorder %s64, %s65
      %p74 = scmp.eq.s32.totalorder %s33, 0
      %p75 = por %p73, %p74
      %p76 = scmp.ne.s32.totalorder %s64, %s65
      %p77 = scmp.eq.s32.totalorder %s34, 1
      %p78 = por %p76, %p77
      %p80 = scmp.ne.s32.totalorder %s65, %s79
      %p81 = scmp.eq.s32.totalorder %s34, 0
      %p82 = por %p80, %p81
      %s84 = sadd.s32 %s83, 1
      %p87 = scmp.eq.s32.totalorder %s28, 1
      %p88 = scmp.ne.s32.totalorder %s83, %s85
      %p89 = scmp.eq.s32.totalorder %s28, 0
      %p90 = por %p88, %p89
      %p91 = scmp.ne.s32.totalorder %s83, %s85
      %p92 = scmp.eq.s32.totalorder %s33, 1
      %p93 = por %p91, %p92
      %p94 = scmp.ne.s32.totalorder %s85, %s86
      %p95 = scmp.eq.s32.totalorder %s33, 0
      %p96 = por %p94, %p95
      %p97 = scmp.ne.s32.totalorder %s85, %s86
      %p98 = scmp.eq.s32.totalorder %s34, 1
      %p99 = por %p97, %p98
      %p101 = scmp.ne.s32.totalorder %s86, %s100
      %p102 = scmp.eq.s32.totalorder %s34, 0
      %p103 = por %p101, %p102
      %s105 = sadd.s32 %s104, 1
      %p108 = scmp.eq.s32.totalorder %s28, 1
      %p109 = scmp.ne.s32.totalorder %s104, %s106
      %p110 = scmp.eq.s32.totalorder %s28, 0
      %p111 = por %p109, %p110
      %p112 = scmp.ne.s32.totalorder %s104, %s106
      %p113 = scmp.eq.s32.totalorder %s33, 1
      %p114 = por %p112, %p113
      %p115 = scmp.ne.s32.totalorder %s106, %s107
      %p116 = scmp.eq.s32.totalorder %s33, 0
      %p117 = por %p115, %p116
      %p118 = scmp.ne.s32.totalorder %s106, %s107
      %p119 = scmp.eq.s32.totalorder %s34, 1
      %p120 = por %p118, %p119
      %p122 = scmp.ne.s32.totalorder %s107, %s121
      %p123 = scmp.eq.s32.totalorder %s34, 0
      %p124 = por %p122, %p123
      %s126 = sadd.s32 %s125, 1
      %p129 = scmp.eq.s32.totalorder %s28, 1
      %p130 = scmp.ne.s32.totalorder %s125, %s127
      %p131 = scmp.eq.s32.totalorder %s28, 0
      %p132 = por %p130, %p131
      %p133 = scmp.ne.s32.totalorder %s125, %s127
      %p134 = scmp.eq.s32.totalorder %s33, 1
      %p135 = por %p133, %p134
      %p136 = scmp.ne.s32.totalorder %s127, %s128
      %p137 = scmp.eq.s32.totalorder %s33, 0
      %p138 = por %p136, %p137
      %p139 = scmp.ne.s32.totalorder %s127, %s128
      %p140 = scmp.eq.s32.totalorder %s34, 1
      %p141 = por %p139, %p140
      %p143 = scmp.ne.s32.totalorder %s128, %s142
      %p144 = scmp.eq.s32.totalorder %s34, 0
      %p145 = por %p143, %p144
      %s147 = sadd.s32 %s146, 1
      %p150 = scmp.eq.s32.totalorder %s28, 1
      %p151 = scmp.ne.s32.totalorder %s146, %s148
      %p152 = scmp.eq.s32.totalorder %s28, 0
      %p153 = por %p151, %p152
      %p154 = scmp.ne.s32.totalorder %s146, %s148
      %p155 = scmp.eq.s32.totalorder %s33, 1
      %p156 = por %p154, %p155
      %p157 = scmp.ne.s32.totalorder %s148, %s149
      %p158 = scmp.eq.s32.totalorder %s33, 0
      %p159 = por %p157, %p158
      %p160 = scmp.ne.s32.totalorder %s148, %s149
      %p161 = scmp.eq.s32.totalorder %s34, 1
      %p162 = por %p160, %p161
      %p164 = scmp.ne.s32.totalorder %s149, %s163
      %p165 = scmp.eq.s32.totalorder %s34, 0
      %p166 = por %p164, %p165
      %s168 = sadd.s32 %s167, 1
      %p171 = scmp.eq.s32.totalorder %s28, 1
      %p172 = scmp.ne.s32.totalorder %s167, %s169
      %p173 = scmp.eq.s32.totalorder %s28, 0
      %p174 = por %p172, %p173
      %p175 = scmp.ne.s32.totalorder %s167, %s169
      %p176 = scmp.eq.s32.totalorder %s33, 1
      %p177 = por %p175, %p176
      %p178 = scmp.ne.s32.totalorder %s169, %s170
      %p179 = scmp.eq.s32.totalorder %s33, 0
      %p180 = por %p178, %p179
      %p181 = scmp.ne.s32.totalorder %s169, %s170
      %p182 = scmp.eq.s32.totalorder %s34, 1
      %p183 = por %p181, %p182
      %p185 = scmp.ne.s32.totalorder %s170, %s184
      %p186 = scmp.eq.s32.totalorder %s34, 0
      %p187 = por %p185, %p186
      %s189 = sadd.s32 %s188, 1
      %p192 = scmp.eq.s32.totalorder %s28, 1
      %p193 = scmp.ne.s32.totalorder %s188, %s190
      %p194 = scmp.eq.s32.totalorder %s28, 0
      %p195 = por %p193, %p194
      %p196 = scmp.ne.s32.totalorder %s188, %s190
      %p197 = scmp.eq.s32.totalorder %s33, 1
      %p198 = por %p196, %p197
      %p199 = scmp.ne.s32.totalorder %s190, %s191
      %p200 = scmp.eq.s32.totalorder %s33, 0
      %p201 = por %p199, %p200
      %p202 = scmp.ne.s32.totalorder %s190, %s191
      %p203 = scmp.eq.s32.totalorder %s34, 1
      %p204 = por %p202, %p203
      %p206 = scmp.ne.s32.totalorder %s191, %s205
      %p207 = scmp.eq.s32.totalorder %s34, 0
      %p208 = por %p206, %p207
      %s210 = sadd.s32 %s209, 1
      %p213 = scmp.eq.s32.totalorder %s28, 1
      %p214 = scmp.ne.s32.totalorder %s209, %s211
      %p215 = scmp.eq.s32.totalorder %s28, 0
      %p216 = por %p214, %p215
      %p217 = scmp.ne.s32.totalorder %s209, %s211
      %p218 = scmp.eq.s32.totalorder %s33, 1
      %p219 = por %p217, %p218
      %p220 = scmp.ne.s32.totalorder %s211, %s212
      %p221 = scmp.eq.s32.totalorder %s33, 0
      %p222 = por %p220, %p221
      %p223 = scmp.ne.s32.totalorder %s211, %s212
      %p224 = scmp.eq.s32.totalorder %s34, 1
      %p225 = por %p223, %p224
      %p227 = scmp.ne.s32.totalorder %s212, %s226
      %p228 = scmp.eq.s32.totalorder %s34, 0
      %p229 = por %p227, %p228
      %s231 = sadd.s32 %s230, 1
      %p234 = scmp.eq.s32.totalorder %s28, 1
      %p235 = scmp.ne.s32.totalorder %s230, %s232
      %p236 = scmp.eq.s32.totalorder %s28, 0
      %p237 = por %p235, %p236
      %p238 = scmp.ne.s32.totalorder %s230, %s232
      %p239 = scmp.eq.s32.totalorder %s33, 1
      %p240 = por %p238, %p239
      %p241 = scmp.ne.s32.totalorder %s232, %s233
      %p242 = scmp.eq.s32.totalorder %s33, 0
      %p243 = por %p241, %p242
      %p244 = scmp.ne.s32.totalorder %s232, %s233
      %p245 = scmp.eq.s32.totalorder %s34, 1
      %p246 = por %p244, %p245
      %p248 = scmp.ne.s32.totalorder %s233, %s247
      %p249 = scmp.eq.s32.totalorder %s34, 0
      %p250 = por %p248, %p249
      %s252 = sadd.s32 %s251, 1
      %p255 = scmp.eq.s32.totalorder %s28, 1
      %p256 = scmp.ne.s32.totalorder %s251, %s253
      %p257 = scmp.eq.s32.totalorder %s28, 0
      %p258 = por %p256, %p257
      %p259 = scmp.ne.s32.totalorder %s251, %s253
      %p260 = scmp.eq.s32.totalorder %s33, 1
      %p261 = por %p259, %p260
      %p262 = scmp.ne.s32.totalorder %s253, %s254
      %p263 = scmp.eq.s32.totalorder %s33, 0
      %p264 = por %p262, %p263
      %p265 = scmp.ne.s32.totalorder %s253, %s254
      %p266 = scmp.eq.s32.totalorder %s34, 1
      %p267 = por %p265, %p266
      %p269 = scmp.ne.s32.totalorder %s254, %s268
      %p270 = scmp.eq.s32.totalorder %s34, 0
      %p271 = por %p269, %p270
      %s273 = sadd.s32 %s272, 1
      %p276 = scmp.eq.s32.totalorder %s28, 1
      %p277 = scmp.ne.s32.totalorder %s272, %s274
      %p278 = scmp.eq.s32.totalorder %s28, 0
      %p279 = por %p277, %p278
      %p280 = scmp.ne.s32.totalorder %s272, %s274
      %p281 = scmp.eq.s32.totalorder %s33, 1
      %p282 = por %p280, %p281
      %p283 = scmp.ne.s32.totalorder %s274, %s275
      %p284 = scmp.eq.s32.totalorder %s33, 0
      %p285 = por %p283, %p284
      %p286 = scmp.ne.s32.totalorder %s274, %s275
      %p287 = scmp.eq.s32.totalorder %s34, 1
      %p288 = por %p286, %p287
      %p290 = scmp.ne.s32.totalorder %s275, %s289
      %p291 = scmp.eq.s32.totalorder %s34, 0
      %p292 = por %p290, %p291
      %s294 = sadd.s32 %s293, 1
      %p297 = scmp.eq.s32.totalorder %s28, 1
      %p298 = scmp.ne.s32.totalorder %s293, %s295
      %p299 = scmp.eq.s32.totalorder %s28, 0
      %p300 = por %p298, %p299
      %p301 = scmp.ne.s32.totalorder %s293, %s295
      %p302 = scmp.eq.s32.totalorder %s33, 1
      %p303 = por %p301, %p302
      %p304 = scmp.ne.s32.totalorder %s295, %s296
      %p305 = scmp.eq.s32.totalorder %s33, 0
      %p306 = por %p304, %p305
      %p307 = scmp.ne.s32.totalorder %s295, %s296
      %p308 = scmp.eq.s32.totalorder %s34, 1
      %p309 = por %p307, %p308
      %p311 = scmp.ne.s32.totalorder %s296, %s310
      %p312 = scmp.eq.s32.totalorder %s34, 0
      %p313 = por %p311, %p312
      %s315 = sadd.s32 %s314, 1
      %p318 = scmp.eq.s32.totalorder %s28, 1
      %p319 = scmp.ne.s32.totalorder %s314, %s316
      %p320 = scmp.eq.s32.totalorder %s28, 0
      %p321 = por %p319, %p320
      %p322 = scmp.ne.s32.totalorder %s314, %s316
      %p323 = scmp.eq.s32.totalorder %s33, 1
      %p324 = por %p322, %p323
      %p325 = scmp.ne.s32.totalorder %s316, %s317
      %p326 = scmp.eq.s32.totalorder %s33, 0
      %p327 = por %p325, %p326
      %p328 = scmp.ne.s32.totalorder %s316, %s317
      %p329 = scmp.eq.s32.totalorder %s34, 1
      %p330 = por %p328, %p329
      %p332 = scmp.ne.s32.totalorder %s317, %s331
      %p333 = scmp.eq.s32.totalorder %s34, 0
      %p334 = por %p332, %p333
      %s336 = sadd.s32 %s335, 1
      %p339 = scmp.eq.s32.totalorder %s28, 1
      %p340 = scmp.ne.s32.totalorder %s335, %s337
      %p341 = scmp.eq.s32.totalorder %s28, 0
      %p342 = por %p340, %p341
      %p343 = scmp.ne.s32.totalorder %s335, %s337
      %p344 = scmp.eq.s32.totalorder %s33, 1
      %p345 = por %p343, %p344
      %p346 = scmp.ne.s32.totalorder %s337, %s338
      %p347 = scmp.eq.s32.totalorder %s33, 0
      %p348 = por %p346, %p347
      %p349 = scmp.ne.s32.totalorder %s337, %s338
      %p350 = scmp.eq.s32.totalorder %s34, 1
      %p351 = por %p349, %p350
      %p353 = scmp.ne.s32.totalorder %s338, %s352
      %p354 = scmp.eq.s32.totalorder %s34, 0
      %p355 = por %p353, %p354
      %s357 = sadd.s32 %s356, 1
      %p360 = scmp.eq.s32.totalorder %s28, 1
      %p361 = scmp.ne.s32.totalorder %s356, %s358
      %p362 = scmp.eq.s32.totalorder %s28, 0
      %p363 = por %p361, %p362
      %p364 = scmp.ne.s32.totalorder %s356, %s358
      %p365 = scmp.eq.s32.totalorder %s33, 1
      %p366 = por %p364, %p365
      %p367 = scmp.ne.s32.totalorder %s358, %s359
      %p368 = scmp.eq.s32.totalorder %s33, 0
      %p369 = por %p367, %p368
      %p370 = scmp.ne.s32.totalorder %s358, %s359
      %p371 = scmp.eq.s32.totalorder %s34, 1
      %p372 = por %p370, %p371
      %p374 = scmp.ne.s32.totalorder %s359, %s373
      %p375 = scmp.eq.s32.totalorder %s34, 0
      %p376 = por %p374, %p375
      %s378 = sadd.s32 %s377, 1
      %p381 = scmp.eq.s32.totalorder %s28, 1
      %p382 = scmp.ne.s32.totalorder %s377, %s379
      %p383 = scmp.eq.s32.totalorder %s28, 0
      %p384 = por %p382, %p383
      %p385 = scmp.ne.s32.totalorder %s377, %s379
      %p386 = scmp.eq.s32.totalorder %s33, 1
      %p387 = por %p385, %p386
      %p388 = scmp.ne.s32.totalorder %s379, %s380
      %p389 = scmp.eq.s32.totalorder %s33, 0
      %p390 = por %p388, %p389
      %p391 = scmp.ne.s32.totalorder %s379, %s380
      %p392 = scmp.eq.s32.totalorder %s34, 1
      %p393 = por %p391, %p392
      %p395 = scmp.ne.s32.totalorder %s380, %s394
      %p396 = scmp.eq.s32.totalorder %s34, 0
      %p397 = por %p395, %p396
      %s399 = sadd.s32 %s398, 1
      %p402 = scmp.eq.s32.totalorder %s28, 1
      %p403 = scmp.ne.s32.totalorder %s398, %s400
      %p404 = scmp.eq.s32.totalorder %s28, 0
      %p405 = por %p403, %p404
      %p406 = scmp.ne.s32.totalorder %s398, %s400
      %p407 = scmp.eq.s32.totalorder %s33, 1
      %p408 = por %p406, %p407
      %p409 = scmp.ne.s32.totalorder %s400, %s401
      %p410 = scmp.eq.s32.totalorder %s33, 0
      %p411 = por %p409, %p410
      %p412 = scmp.ne.s32.totalorder %s400, %s401
      %p413 = scmp.eq.s32.totalorder %s34, 1
      %p414 = por %p412, %p413
      %p416 = scmp.ne.s32.totalorder %s401, %s415
      %p417 = scmp.eq.s32.totalorder %s34, 0
      %p418 = por %p416, %p417
      %s420 = sadd.s32 %s419, 1
      %p423 = scmp.eq.s32.totalorder %s28, 1
      %p424 = scmp.ne.s32.totalorder %s419, %s421
      %p425 = scmp.eq.s32.totalorder %s28, 0
      %p426 = por %p424, %p425
      %p427 = scmp.ne.s32.totalorder %s419, %s421
      %p428 = scmp.eq.s32.totalorder %s33, 1
      %p429 = por %p427, %p428
      %p430 = scmp.ne.s32.totalorder %s421, %s422
      %p431 = scmp.eq.s32.totalorder %s33, 0
      %p432 = por %p430, %p431
      %p433 = scmp.ne.s32.totalorder %s421, %s422
      %p434 = scmp.eq.s32.totalorder %s34, 1
      %p435 = por %p433, %p434
      %p437 = scmp.ne.s32.totalorder %s422, %s436
      %p438 = scmp.eq.s32.totalorder %s34, 0
      %p439 = por %p437, %p438
      %s440 = ssub.s32 %s28, %s35
      %p441 = scmp.eq.s32.totalorder %s440, 0
      %s443 = sadd.s32 %s442, 1
      %s444 = scalar_select %p441, %s442, %s443
      %p447 = pneg %p441
      %p448 = scmp.eq.s32.totalorder %s28, 1
      %p449 = por %p447, %p448
      %p450 = scmp.ne.s32.totalorder %s442, %s445
      %p451 = scmp.eq.s32.totalorder %s28, 0
      %p452 = por %p450, %p451
      %p453 = scmp.ne.s32.totalorder %s442, %s445
      %p454 = scmp.eq.s32.totalorder %s33, 1
      %p455 = por %p453, %p454
      %p456 = scmp.ne.s32.totalorder %s445, %s446
      %p457 = scmp.eq.s32.totalorder %s33, 0
      %p458 = por %p456, %p457
      %p459 = scmp.ne.s32.totalorder %s445, %s446
      %p460 = scmp.eq.s32.totalorder %s34, 1
      %p461 = por %p459, %p460
      %p463 = scmp.ne.s32.totalorder %s446, %s462
      %p464 = scmp.eq.s32.totalorder %s34, 0
      %p465 = por %p463, %p464
      %p466 = scmp.le.s32.totalorder 1, %s28
      %p467 = scmp.lt.s32.totalorder %s28, 3
      %p468 = pnand %p466, %p467
      %p469 = pneg %p468
      // Predicated region
      $region9: #{cnn_forward.1} parent=5 // pred_check
        _
      $region10: #{cnn_forward.1} parent=5 // pred_check_branch
        %471 = sbr.rel (%p468) target = $region12
      $region11: #{cnn_forward.1} parent=5 // pred_region
        %s472 = ssub.s32 %s28, 1
        // Predicated region
        $region13: #{cnn_forward.1} parent=11 // pred_check
          %p473 = pneg %p75
        $region14: #{cnn_forward.1} parent=11 // pred_check_branch
          %475 = sbr.rel (%p473) target = $region16
        $region15: #{cnn_forward.1} parent=11 // pred_region
          _
        $region16: #{cnn_forward.1} parent=11 // pred_fallthru
          _
        // Predicated region
        $region17: #{cnn_forward.1} parent=11 // pred_check
          %p476 = pneg %p96
        $region18: #{cnn_forward.1} parent=11 // pred_check_branch
          %478 = sbr.rel (%p476) target = $region20
        $region19: #{cnn_forward.1} parent=11 // pred_region
          _
        $region20: #{cnn_forward.1} parent=11 // pred_fallthru
          _
        // Predicated region
        $region21: #{cnn_forward.1} parent=11 // pred_check
          %p479 = pneg %p117
        $region22: #{cnn_forward.1} parent=11 // pred_check_branch
          %481 = sbr.rel (%p479) target = $region24
        $region23: #{cnn_forward.1} parent=11 // pred_region
          _
        $region24: #{cnn_forward.1} parent=11 // pred_fallthru
          _
        // Predicated region
        $region25: #{cnn_forward.1} parent=11 // pred_check
          %p482 = pneg %p138
        $region26: #{cnn_forward.1} parent=11 // pred_check_branch
          %484 = sbr.rel (%p482) target = $region28
        $region27: #{cnn_forward.1} parent=11 // pred_region
          _
        $region28: #{cnn_forward.1} parent=11 // pred_fallthru
          _
        // Predicated region
        $region29: #{cnn_forward.1} parent=11 // pred_check
          %p485 = pneg %p159
        $region30: #{cnn_forward.1} parent=11 // pred_check_branch
          %487 = sbr.rel (%p485) target = $region32
        $region31: #{cnn_forward.1} parent=11 // pred_region
          _
        $region32: #{cnn_forward.1} parent=11 // pred_fallthru
          _
        // Predicated region
        $region33: #{cnn_forward.1} parent=11 // pred_check
          %p488 = pneg %p180
        $region34: #{cnn_forward.1} parent=11 // pred_check_branch
          %490 = sbr.rel (%p488) target = $region36
        $region35: #{cnn_forward.1} parent=11 // pred_region
          _
        $region36: #{cnn_forward.1} parent=11 // pred_fallthru
          _
        // Predicated region
        $region37: #{cnn_forward.1} parent=11 // pred_check
          %p491 = pneg %p201
        $region38: #{cnn_forward.1} parent=11 // pred_check_branch
          %493 = sbr.rel (%p491) target = $region40
        $region39: #{cnn_forward.1} parent=11 // pred_region
          _
        $region40: #{cnn_forward.1} parent=11 // pred_fallthru
          _
        // Predicated region
        $region41: #{cnn_forward.1} parent=11 // pred_check
          %p494 = pneg %p222
        $region42: #{cnn_forward.1} parent=11 // pred_check_branch
          %496 = sbr.rel (%p494) target = $region44
        $region43: #{cnn_forward.1} parent=11 // pred_region
          _
        $region44: #{cnn_forward.1} parent=11 // pred_fallthru
          _
        // Predicated region
        $region45: #{cnn_forward.1} parent=11 // pred_check
          %p497 = pneg %p243
        $region46: #{cnn_forward.1} parent=11 // pred_check_branch
          %499 = sbr.rel (%p497) target = $region48
        $region47: #{cnn_forward.1} parent=11 // pred_region
          _
        $region48: #{cnn_forward.1} parent=11 // pred_fallthru
          _
        // Predicated region
        $region49: #{cnn_forward.1} parent=11 // pred_check
          %p500 = pneg %p264
        $region50: #{cnn_forward.1} parent=11 // pred_check_branch
          %502 = sbr.rel (%p500) target = $region52
        $region51: #{cnn_forward.1} parent=11 // pred_region
          _
        $region52: #{cnn_forward.1} parent=11 // pred_fallthru
          _
        // Predicated region
        $region53: #{cnn_forward.1} parent=11 // pred_check
          %p503 = pneg %p285
        $region54: #{cnn_forward.1} parent=11 // pred_check_branch
          %505 = sbr.rel (%p503) target = $region56
        $region55: #{cnn_forward.1} parent=11 // pred_region
          _
        $region56: #{cnn_forward.1} parent=11 // pred_fallthru
          _
        // Predicated region
        $region57: #{cnn_forward.1} parent=11 // pred_check
          %p506 = pneg %p306
        $region58: #{cnn_forward.1} parent=11 // pred_check_branch
          %508 = sbr.rel (%p506) target = $region60
        $region59: #{cnn_forward.1} parent=11 // pred_region
          _
        $region60: #{cnn_forward.1} parent=11 // pred_fallthru
          _
        // Predicated region
        $region61: #{cnn_forward.1} parent=11 // pred_check
          %p509 = pneg %p327
        $region62: #{cnn_forward.1} parent=11 // pred_check_branch
          %511 = sbr.rel (%p509) target = $region64
        $region63: #{cnn_forward.1} parent=11 // pred_region
          _
        $region64: #{cnn_forward.1} parent=11 // pred_fallthru
          _
        // Predicated region
        $region65: #{cnn_forward.1} parent=11 // pred_check
          %p512 = pneg %p348
        $region66: #{cnn_forward.1} parent=11 // pred_check_branch
          %514 = sbr.rel (%p512) target = $region68
        $region67: #{cnn_forward.1} parent=11 // pred_region
          _
        $region68: #{cnn_forward.1} parent=11 // pred_fallthru
          _
        // Predicated region
        $region69: #{cnn_forward.1} parent=11 // pred_check
          %p515 = pneg %p369
        $region70: #{cnn_forward.1} parent=11 // pred_check_branch
          %517 = sbr.rel (%p515) target = $region72
        $region71: #{cnn_forward.1} parent=11 // pred_region
          _
        $region72: #{cnn_forward.1} parent=11 // pred_fallthru
          _
        // Predicated region
        $region73: #{cnn_forward.1} parent=11 // pred_check
          %p518 = pneg %p390
        $region74: #{cnn_forward.1} parent=11 // pred_check_branch
          %520 = sbr.rel (%p518) target = $region76
        $region75: #{cnn_forward.1} parent=11 // pred_region
          _
        $region76: #{cnn_forward.1} parent=11 // pred_fallthru
          _
        // Predicated region
        $region77: #{cnn_forward.1} parent=11 // pred_check
          %p521 = pneg %p411
        $region78: #{cnn_forward.1} parent=11 // pred_check_branch
          %523 = sbr.rel (%p521) target = $region80
        $region79: #{cnn_forward.1} parent=11 // pred_region
          _
        $region80: #{cnn_forward.1} parent=11 // pred_fallthru
          _
        // Predicated region
        $region81: #{cnn_forward.1} parent=11 // pred_check
          %p524 = pneg %p432
        $region82: #{cnn_forward.1} parent=11 // pred_check_branch
          %526 = sbr.rel (%p524) target = $region84
        $region83: #{cnn_forward.1} parent=11 // pred_region
          _
        $region84: #{cnn_forward.1} parent=11 // pred_fallthru
          _
      $region12: #{cnn_forward.1} parent=5 // pred_fallthru
        _
      %p527 = scmp.lt.s32.totalorder %s28, 2
      // Predicated region
      $region85: #{cnn_forward.1} parent=5 // pred_check
        %p528 = pneg %p527
      $region86: #{cnn_forward.1} parent=5 // pred_check_branch
        %530 = sbr.rel (%p528) target = $region88
      $region87: #{cnn_forward.1} parent=5 // pred_region
        // Predicated region
        $region89: #{cnn_forward.1} parent=87 // pred_check
          %p531 = pneg %p48
        $region90: #{cnn_forward.1} parent=87 // pred_check_branch
          %533 = sbr.rel (%p531) target = $region92
        $region91: #{cnn_forward.1} parent=87 // pred_region
          %p534 = scmp.lt.s32.totalorder %s28, 1
          %s535 = scalar_select %p534, %s28, 1
          %s536 = smul.addr %s535, 15
          %s537 = smul.addr %s536, 8
          %s538 = scalar_lea.vmem %s0, %s537
        $region92: #{cnn_forward.1} parent=87 // pred_fallthru
          _
      $region88: #{cnn_forward.1} parent=5 // pred_fallthru
        _
      %p539 = scmp.le.s32.totalorder 1, %s28
      %p540 = scmp.lt.s32.totalorder %s28, 3
      %p541 = pnand %p539, %p540
      %p542 = pneg %p541
      // Predicated region
      $region93: #{cnn_forward.1} parent=5 // pred_check
        _
      $region94: #{cnn_forward.1} parent=5 // pred_check_branch
        %544 = sbr.rel (%p541) target = $region96
      $region95: #{cnn_forward.1} parent=5 // pred_region
        %s545 = ssub.s32 %s28, 1
        %p546 = scmp.lt.s32.totalorder %s33, 1
        %s547 = scalar_select %p546, %s33, 1
        %s548 = smul.addr %s547, 15
        %s549 = smul.addr %s548, 8
        %s550 = scalar_lea.vmem %s0, %s549
        %p551 = pneg %p54
        %p552 = pneg %p51
        %p553 = pneg %p75
        %p554 = pneg %p72
        %p555 = pneg %p96
        %p556 = pneg %p93
        %p557 = pneg %p117
        %p558 = pneg %p114
        %p559 = pneg %p138
        %p560 = pneg %p135
        %p561 = pneg %p159
        %p562 = pneg %p156
        %p563 = pneg %p180
        %p564 = pneg %p177
        %p565 = pneg %p201
        %p566 = pneg %p198
        %p567 = pneg %p222
        %p568 = pneg %p219
        %p569 = pneg %p243
        %p570 = pneg %p240
        %p571 = pneg %p264
        %p572 = pneg %p261
        %p573 = pneg %p285
        %p574 = pneg %p282
        %p575 = pneg %p306
        %p576 = pneg %p303
        %p577 = pneg %p327
        %p578 = pneg %p324
        %p579 = pneg %p348
        %p580 = pneg %p345
        %p581 = pneg %p369
        %p582 = pneg %p366
        %p583 = pneg %p390
        %p584 = pneg %p387
        %p585 = pneg %p411
        %p586 = pneg %p408
        %p587 = pneg %p432
        %p588 = pneg %p429
        %p589 = pneg %p458
        %p590 = pneg %p455
        %s591 = sand.u32 %s445, 1
        %s592 = scalar_lea.sflag [#allocation3], %s591
        %s593 = sand.u32 %s445, 1
        %s594 = smul.addr %s593, 4
        %s595 = scalar_lea.vmem [#allocation2], %s594
        %p596 = scmp.lt.s32.totalorder %s33, 1
        %s597 = scalar_select %p596, %s33, 1
        %s598 = smul.addr %s597, 15
        %s599 = smul.addr %s598, 8
        %s600 = scalar_lea.vmem %s0, %s599
        %v602 = vld [vmem:[%s600] sm:$0xff]
        %v603 = vld [vmem:[%s600 + $0x8] sm:$0xff]
        %v604 = vld [vmem:[%s600 + $0x10] sm:$0xff]
        %v605 = vld [vmem:[%s600 + $0x18] sm:$0xff]
        %v606 = vld [vmem:[%s600 + $0x20] sm:$0xff]
        %v607 = vld [vmem:[%s600 + $0x28] sm:$0xff]
        %v608 = vld [vmem:[%s600 + $0x30] sm:$0xff]
        %v609 = vld [vmem:[%s600 + $0x38] sm:$0xff]
        %v610 = vld [vmem:[%s600 + $0x40] sm:$0xff]
        %v611 = vld [vmem:[%s600 + $0x48] sm:$0xff]
        %v612 = vld [vmem:[%s600 + $0x50] sm:$0xff]
        %v613 = vld [vmem:[%s600 + $0x58] sm:$0xff]
        %v614 = vld [vmem:[%s600 + $0x60] sm:$0xff]
        %v615 = vld [vmem:[%s600 + $0x68] sm:$0xff]
        %v616 = vld [vmem:[%s600 + $0x70] sm:$0xff]
        %v617 = vpack.c.bf16 %v603, %v602
        %v618 = vpack.c.bf16 %v605, %v604
        %v619 = vpack.c.bf16 %v607, %v606
        %v620 = vpack.c.bf16 %v609, %v608
        %v621 = vpack.c.bf16 %v611, %v610
        %v622 = vpack.c.bf16 %v613, %v612
        %v623 = vpack.c.bf16 %v615, %v614
        %v624 = vpack.c.bf16 %v616, %v616
        %v625 = vld [vmem:[%s1] sm:$0xff]
        %v626 = vld [vmem:[%s1 + $0x8] sm:$0xff]
        %v627 = vld [vmem:[%s1 + $0x10] sm:$0xff]
        %v628 = vld [vmem:[%s1 + $0x18] sm:$0x33]
        %v629 = vld [vmem:[%s2] sm:$0xff]
        %v630 = vld [vmem:[%s2 + $0x8] sm:$0xff]
        %v631 = vld [vmem:[%s2 + $0x10] sm:$0xff]
        %v632 = vld [vmem:[%s2 + $0x18] sm:$0x33]
        %vm633 = vsmask.f32 7424
        %v635 = vshrl.u32 %v617, 16
        %v637 = vshll.u32 %v617, 16
        %v639 = vrot.slane %v637, 1
        %v640 = vor.u32 %v635, %v639
        %v642 = vshll.u32 %v618, 16
        %v644 = vrot.slane %v642, 1
        %v645 = vsel %vm633, %v640, %v644
        %v646 = vshrl.u32 %v618, 16
        %v648 = vor.u32 %v646, %v644
        %v650 = vshll.u32 %v619, 16
        %v652 = vrot.slane %v650, 1
        %v653 = vsel %vm633, %v648, %v652
        %v654 = vshrl.u32 %v619, 16
        %v656 = vor.u32 %v654, %v652
        %v658 = vshll.u32 %v620, 16
        %v660 = vrot.slane %v658, 1
        %v661 = vsel %vm633, %v656, %v660
        %v662 = vshrl.u32 %v620, 16
        %v664 = vor.u32 %v662, %v660
        %v666 = vshll.u32 %v621, 16
        %v668 = vrot.slane %v666, 1
        %v669 = vsel %vm633, %v664, %v668
        %v670 = vshrl.u32 %v621, 16
        %v672 = vor.u32 %v670, %v668
        %v674 = vshll.u32 %v622, 16
        %v676 = vrot.slane %v674, 1
        %v677 = vsel %vm633, %v672, %v676
        %v678 = vshrl.u32 %v622, 16
        %v680 = vor.u32 %v678, %v676
        %v682 = vshll.u32 %v623, 16
        %v684 = vrot.slane %v682, 1
        %v685 = vsel %vm633, %v680, %v684
        %v686 = vshrl.u32 %v623, 16
        %v688 = vor.u32 %v686, %v684
        %v690 = vshll.u32 %v624, 16
        %v692 = vrot.slane %v690, 1
        %v693 = vsel %vm633, %v688, %v692
        %v694 = vshrl.u32 %v624, 16
        %v696 = vor.u32 %v694, %v692
        %v701 = vunpack.c.l.b16 %v629
        %v702 = vunpack.c.h.b16 %v629
        %v703 = vunpack.c.l.b16 %v630
        %v704 = vunpack.c.h.b16 %v630
        %v705 = vunpack.c.l.b16 %v631
        %v706 = vunpack.c.h.b16 %v631
        %v707 = vunpack.c.l.b16 %v632
        %v708 = vunpack.c.h.b16 %v632
        %v709 = vpack.c.b16 %v703, %v701
        %v710 = vpack.c.b16 %v704, %v702
        %v711 = vpack.c.b16 %v707, %v705
        %v712 = vpack.c.b16 %v708, %v706
        %vm715 = vcmask 228352
        %v717 = vsel %vm715, %v645, 0
        %v720 = vsel %vm715, %v653, 0
        %v723 = vsel %vm715, %v661, 0
        %v726 = vsel %vm715, %v669, 0
        %v729 = vsel %vm715, %v677, 0
        %v732 = vsel %vm715, %v685, 0
        %v735 = vsel %vm715, %v693, 0
        %v738 = vsel %vm715, %v696, 0
        %vm740 = vcmask 1045504
        %v742 = vsel %vm740, %v711, 0
        %v745 = vsel %vm740, %v712, 0
        %747 = vmatprep.subr.bf16.mxu0 0
        %748 = vmatpush1.bf16.msra.mxu0 0
        %749 = vmatprep.subr.bf16.mxu0 0
        %750 = vmatpush1.bf16.msra.mxu0 0
        %751 = vmatprep.subr.bf16.mxu0 0
        %752 = vmatpush1.bf16.msra.mxu0 0
        %753 = vmatprep.subr.bf16.mxu0 0
        %754 = vmatpush1.bf16.msra.mxu0 0
        %755 = vmatprep.subr.bf16.mxu0 0
        %756 = vmatpush1.bf16.msra.mxu0 0
        %757 = vmatprep.subr.bf16.mxu0 0
        %758 = vmatpush1.bf16.msra.mxu0 0
        %759 = vmatprep.subr.bf16.mxu0 %v745
        %760 = vmatpush1.bf16.msra.mxu0 %v742
        %761 = vmatprep.subr.bf16.mxu0 %v710
        %762 = vmatpush1.bf16.msra.mxu0 %v709
        %763 = vmatprep.subr.bf16.mxu0 0
        %764 = vmatpush2.bf16.msra.mxu0 0
        %765 = vmatprep.subr.bf16.mxu0 0
        %766 = vmatpush2.bf16.msra.mxu0 0
        %767 = vmatprep.subr.bf16.mxu0 0
        %768 = vmatpush2.bf16.msra.mxu0 0
        %769 = vmatprep.subr.bf16.mxu0 0
        %770 = vmatpush2.bf16.msra.mxu0 0
        %771 = vmatprep.subr.bf16.mxu0 0
        %772 = vmatpush2.bf16.msra.mxu0 0
        %773 = vmatprep.subr.bf16.mxu0 0
        %774 = vmatpush2.bf16.msra.mxu0 0
        %775 = vmatprep.subr.bf16.mxu0 0
        %776 = vmatpush2.bf16.msra.mxu0 0
        %777 = vmatprep.subr.bf16.mxu0 0
        %778 = vmatpush2.bf16.msra.mxu0 0
        %779 = vmatprep.mubr.bf16.mxu0 0
        %780 = vmatmul.mubr.bf16.gmra.mxu0 %v717
        %v781 = vpop.f32.mrf.mxu0
        %v782 = vadd.f32 0.0, %v781
        %v783 = vpop.f32.mrf.mxu0
        %v784 = vadd.f32 0.0, %v783
        %v785 = vpop.f32.mrf.mxu0
        %v786 = vadd.f32 0.0, %v785
        %v787 = vpop.f32.mrf.mxu0
        %v788 = vadd.f32 0.0, %v787
        %789 = vmatprep.mubr.bf16.mxu0 0
        %790 = vmatmul.mubr.bf16.gmra.mxu0 %v720
        %v791 = vpop.f32.mrf.mxu0
        %v792 = vadd.f32 0.0, %v791
        %v793 = vpop.f32.mrf.mxu0
        %v794 = vadd.f32 0.0, %v793
        %v795 = vpop.f32.mrf.mxu0
        %v796 = vadd.f32 0.0, %v795
        %v797 = vpop.f32.mrf.mxu0
        %v798 = vadd.f32 0.0, %v797
        %799 = vmatprep.mubr.bf16.mxu0 0
        %800 = vmatmul.mubr.bf16.gmra.mxu0 %v723
        %v801 = vpop.f32.mrf.mxu0
        %v802 = vadd.f32 0.0, %v801
        %v803 = vpop.f32.mrf.mxu0
        %v804 = vadd.f32 0.0, %v803
        %v805 = vpop.f32.mrf.mxu0
        %v806 = vadd.f32 0.0, %v805
        %v807 = vpop.f32.mrf.mxu0
        %v808 = vadd.f32 0.0, %v807
        %809 = vmatprep.mubr.bf16.mxu0 0
        %810 = vmatmul.mubr.bf16.gmra.mxu0 %v726
        %v811 = vpop.f32.mrf.mxu0
        %v812 = vadd.f32 0.0, %v811
        %v813 = vpop.f32.mrf.mxu0
        %v814 = vadd.f32 0.0, %v813
        %v815 = vpop.f32.mrf.mxu0
        %v816 = vadd.f32 0.0, %v815
        %v817 = vpop.f32.mrf.mxu0
        %v818 = vadd.f32 0.0, %v817
        %819 = vmatprep.mubr.bf16.mxu0 0
        %820 = vmatmul.mubr.bf16.gmra.mxu0 %v729
        %v821 = vpop.f32.mrf.mxu0
        %v822 = vadd.f32 0.0, %v821
        %v823 = vpop.f32.mrf.mxu0
        %v824 = vadd.f32 0.0, %v823
        %v825 = vpop.f32.mrf.mxu0
        %v826 = vadd.f32 0.0, %v825
        %v827 = vpop.f32.mrf.mxu0
        %v828 = vadd.f32 0.0, %v827
        %829 = vmatprep.mubr.bf16.mxu0 0
        %830 = vmatmul.mubr.bf16.gmra.mxu0 %v732
        %v831 = vpop.f32.mrf.mxu0
        %v832 = vadd.f32 0.0, %v831
        %v833 = vpop.f32.mrf.mxu0
        %v834 = vadd.f32 0.0, %v833
        %v835 = vpop.f32.mrf.mxu0
        %v836 = vadd.f32 0.0, %v835
        %v837 = vpop.f32.mrf.mxu0
        %v838 = vadd.f32 0.0, %v837
        %839 = vmatprep.mubr.bf16.mxu0 0
        %840 = vmatmul.mubr.bf16.gmra.mxu0 %v735
        %v841 = vpop.f32.mrf.mxu0
        %v842 = vadd.f32 0.0, %v841
        %v843 = vpop.f32.mrf.mxu0
        %v844 = vadd.f32 0.0, %v843
        %v845 = vpop.f32.mrf.mxu0
        %v846 = vadd.f32 0.0, %v845
        %v847 = vpop.f32.mrf.mxu0
        %v848 = vadd.f32 0.0, %v847
        %849 = vmatprep.mubr.bf16.mxu0 0
        %850 = vmatmul.mubr.bf16.gmra.mxu0 %v738
        %v851 = vpop.f32.mrf.mxu0
        %v852 = vadd.f32 0.0, %v851
        %v853 = vpop.f32.mrf.mxu0
        %v854 = vadd.f32 0.0, %v853
        %v855 = vpop.f32.mrf.mxu0
        %v856 = vpop.f32.mrf.mxu0
        %857 = vdwg.mxu0
        %v862 = vunpack.c.l.b16 %v625
        %v863 = vunpack.c.h.b16 %v625
        %v864 = vunpack.c.l.b16 %v626
        %v865 = vunpack.c.h.b16 %v626
        %v866 = vunpack.c.l.b16 %v627
        %v867 = vunpack.c.h.b16 %v627
        %v868 = vunpack.c.l.b16 %v628
        %v869 = vunpack.c.h.b16 %v628
        %v870 = vpack.c.b16 %v864, %v862
        %v871 = vpack.c.b16 %v865, %v863
        %v872 = vpack.c.b16 %v868, %v866
        %v873 = vpack.c.b16 %v869, %v867
        %v876 = vsel %vm715, %v617, 0
        %v878 = vsel %vm715, %v618, 0
        %v880 = vsel %vm715, %v619, 0
        %v882 = vsel %vm715, %v620, 0
        %v884 = vsel %vm715, %v621, 0
        %v886 = vsel %vm715, %v622, 0
        %v888 = vsel %vm715, %v623, 0
        %v890 = vsel %vm715, %v624, 0
        %v893 = vsel %vm740, %v872, 0
        %v896 = vsel %vm740, %v873, 0
        %898 = vmatprep.subr.bf16.mxu0 0
        %899 = vmatpush1.bf16.msra.mxu0 0
        %900 = vmatprep.subr.bf16.mxu0 0
        %901 = vmatpush1.bf16.msra.mxu0 0
        %902 = vmatprep.subr.bf16.mxu0 0
        %903 = vmatpush1.bf16.msra.mxu0 0
        %904 = vmatprep.subr.bf16.mxu0 0
        %905 = vmatpush1.bf16.msra.mxu0 0
        %906 = vmatprep.subr.bf16.mxu0 0
        %907 = vmatpush1.bf16.msra.mxu0 0
        %908 = vmatprep.subr.bf16.mxu0 0
        %909 = vmatpush1.bf16.msra.mxu0 0
        %910 = vmatprep.subr.bf16.mxu0 %v896
        %911 = vmatpush1.bf16.msra.mxu0 %v893
        %912 = vmatprep.subr.bf16.mxu0 %v871
        %913 = vmatpush1.bf16.msra.mxu0 %v870
        %914 = vmatprep.subr.bf16.mxu0 0
        %915 = vmatpush2.bf16.msra.mxu0 0
        %916 = vmatprep.subr.bf16.mxu0 0
        %917 = vmatpush2.bf16.msra.mxu0 0
        %918 = vmatprep.subr.bf16.mxu0 0
        %919 = vmatpush2.bf16.msra.mxu0 0
        %920 = vmatprep.subr.bf16.mxu0 0
        %921 = vmatpush2.bf16.msra.mxu0 0
        %922 = vmatprep.subr.bf16.mxu0 0
        %923 = vmatpush2.bf16.msra.mxu0 0
        %924 = vmatprep.subr.bf16.mxu0 0
        %925 = vmatpush2.bf16.msra.mxu0 0
        %926 = vmatprep.subr.bf16.mxu0 0
        %927 = vmatpush2.bf16.msra.mxu0 0
        %928 = vmatprep.subr.bf16.mxu0 0
        %929 = vmatpush2.bf16.msra.mxu0 0
        %930 = vmatprep.mubr.bf16.mxu0 0
        %931 = vmatmul.mubr.bf16.gmra.mxu0 %v876
        %v932 = vpop.f32.mrf.mxu0
        %v933 = vadd.f32 %v782, %v932
        %v934 = vpop.f32.mrf.mxu0
        %v935 = vadd.f32 %v784, %v934
        %v936 = vpop.f32.mrf.mxu0
        %v937 = vadd.f32 %v786, %v936
        %v938 = vpop.f32.mrf.mxu0
        %v939 = vadd.f32 %v788, %v938
        %940 = vmatprep.mubr.bf16.mxu0 0
        %941 = vmatmul.mubr.bf16.gmra.mxu0 %v878
        %v942 = vpop.f32.mrf.mxu0
        %v943 = vadd.f32 %v792, %v942
        %v944 = vpop.f32.mrf.mxu0
        %v945 = vadd.f32 %v794, %v944
        %v946 = vpop.f32.mrf.mxu0
        %v947 = vadd.f32 %v796, %v946
        %v948 = vpop.f32.mrf.mxu0
        %v949 = vadd.f32 %v798, %v948
        %950 = vmatprep.mubr.bf16.mxu0 0
        %951 = vmatmul.mubr.bf16.gmra.mxu0 %v880
        %v952 = vpop.f32.mrf.mxu0
        %v953 = vadd.f32 %v802, %v952
        %v954 = vpop.f32.mrf.mxu0
        %v955 = vadd.f32 %v804, %v954
        %v956 = vpop.f32.mrf.mxu0
        %v957 = vadd.f32 %v806, %v956
        %v958 = vpop.f32.mrf.mxu0
        %v959 = vadd.f32 %v808, %v958
        %960 = vmatprep.mubr.bf16.mxu0 0
        %961 = vmatmul.mubr.bf16.gmra.mxu0 %v882
        %v962 = vpop.f32.mrf.mxu0
        %v963 = vadd.f32 %v812, %v962
        %v964 = vpop.f32.mrf.mxu0
        %v965 = vadd.f32 %v814, %v964
        %v966 = vpop.f32.mrf.mxu0
        %v967 = vadd.f32 %v816, %v966
        %v968 = vpop.f32.mrf.mxu0
        %v969 = vadd.f32 %v818, %v968
        %970 = vmatprep.mubr.bf16.mxu0 0
        %971 = vmatmul.mubr.bf16.gmra.mxu0 %v884
        %v972 = vpop.f32.mrf.mxu0
        %v973 = vadd.f32 %v822, %v972
        %v974 = vpop.f32.mrf.mxu0
        %v975 = vadd.f32 %v824, %v974
        %v976 = vpop.f32.mrf.mxu0
        %v977 = vadd.f32 %v826, %v976
        %v978 = vpop.f32.mrf.mxu0
        %v979 = vadd.f32 %v828, %v978
        %980 = vmatprep.mubr.bf16.mxu0 0
        %981 = vmatmul.mubr.bf16.gmra.mxu0 %v886
        %v982 = vpop.f32.mrf.mxu0
        %v983 = vadd.f32 %v832, %v982
        %v984 = vpop.f32.mrf.mxu0
        %v985 = vadd.f32 %v834, %v984
        %v986 = vpop.f32.mrf.mxu0
        %v987 = vadd.f32 %v836, %v986
        %v988 = vpop.f32.mrf.mxu0
        %v989 = vadd.f32 %v838, %v988
        %990 = vmatprep.mubr.bf16.mxu0 0
        %991 = vmatmul.mubr.bf16.gmra.mxu0 %v888
        %v992 = vpop.f32.mrf.mxu0
        %v993 = vadd.f32 %v842, %v992
        %v994 = vpop.f32.mrf.mxu0
        %v995 = vadd.f32 %v844, %v994
        %v996 = vpop.f32.mrf.mxu0
        %v997 = vadd.f32 %v846, %v996
        %v998 = vpop.f32.mrf.mxu0
        %v999 = vadd.f32 %v848, %v998
        %1000 = vmatprep.mubr.bf16.mxu0 0
        %1001 = vmatmul.mubr.bf16.gmra.mxu0 %v890
        %v1002 = vpop.f32.mrf.mxu0
        %v1003 = vadd.f32 %v852, %v1002
        %v1004 = vpop.f32.mrf.mxu0
        %v1005 = vadd.f32 %v854, %v1004
        %v1006 = vpop.f32.mrf.mxu0
        %v1007 = vpop.f32.mrf.mxu0
        %1008 = vdwg.mxu0
        %v1009 = vld [vmem:[%s3] sm:$0xff]
        %v1010 = vld [vmem:[%s3 + $0x8] sm:$0xff]
        %v1011 = vld [vmem:[%s3 + $0x10] sm:$0xff]
        %v1012 = vld [vmem:[%s3 + $0x18] sm:$0x33]
        %vm1021 = vcmask 1046528
        %v1022 = vrot.slane %v617, 1
        %v1023 = vrot.slane %v618, 1
        %v1024 = vsel %vm1021, %v1022, %v1023
        %v1025 = vrot.slane %v619, 1
        %v1026 = vsel %vm1021, %v1023, %v1025
        %v1027 = vrot.slane %v620, 1
        %v1028 = vsel %vm1021, %v1025, %v1027
        %v1029 = vrot.slane %v621, 1
        %v1030 = vsel %vm1021, %v1027, %v1029
        %v1031 = vrot.slane %v622, 1
        %v1032 = vsel %vm1021, %v1029, %v1031
        %v1033 = vrot.slane %v623, 1
        %v1034 = vsel %vm1021, %v1031, %v1033
        %v1035 = vrot.slane %v624, 1
        %v1036 = vsel %vm1021, %v1033, %v1035
        %v1041 = vunpack.c.l.b16 %v1009
        %v1042 = vunpack.c.h.b16 %v1009
        %v1043 = vunpack.c.l.b16 %v1010
        %v1044 = vunpack.c.h.b16 %v1010
        %v1045 = vunpack.c.l.b16 %v1011
        %v1046 = vunpack.c.h.b16 %v1011
        %v1047 = vunpack.c.l.b16 %v1012
        %v1048 = vunpack.c.h.b16 %v1012
        %v1049 = vpack.c.b16 %v1043, %v1041
        %v1050 = vpack.c.b16 %v1044, %v1042
        %v1051 = vpack.c.b16 %v1047, %v1045
        %v1052 = vpack.c.b16 %v1048, %v1046
        %v1056 = vsel %vm715, %v1024, 0
        %v1059 = vsel %vm715, %v1026, 0
        %v1062 = vsel %vm715, %v1028, 0
        %v1065 = vsel %vm715, %v1030, 0
        %v1068 = vsel %vm715, %v1032, 0
        %v1071 = vsel %vm715, %v1034, 0
        %v1074 = vsel %vm715, %v1036, 0
        %v1077 = vsel %vm715, %v1035, 0
        %v1080 = vsel %vm740, %v1051, 0
        %v1083 = vsel %vm740, %v1052, 0
        %1085 = vmatprep.subr.bf16.mxu0 0
        %1086 = vmatpush1.bf16.msra.mxu0 0
        %1087 = vmatprep.subr.bf16.mxu0 0
        %1088 = vmatpush1.bf16.msra.mxu0 0
        %1089 = vmatprep.subr.bf16.mxu0 0
        %1090 = vmatpush1.bf16.msra.mxu0 0
        %1091 = vmatprep.subr.bf16.mxu0 0
        %1092 = vmatpush1.bf16.msra.mxu0 0
        %1093 = vmatprep.subr.bf16.mxu0 0
        %1094 = vmatpush1.bf16.msra.mxu0 0
        %1095 = vmatprep.subr.bf16.mxu0 0
        %1096 = vmatpush1.bf16.msra.mxu0 0
        %1097 = vmatprep.subr.bf16.mxu0 %v1083
        %1098 = vmatpush1.bf16.msra.mxu0 %v1080
        %1099 = vmatprep.subr.bf16.mxu0 %v1050
        %1100 = vmatpush1.bf16.msra.mxu0 %v1049
        %1101 = vmatprep.subr.bf16.mxu0 0
        %1102 = vmatpush2.bf16.msra.mxu0 0
        %1103 = vmatprep.subr.bf16.mxu0 0
        %1104 = vmatpush2.bf16.msra.mxu0 0
        %1105 = vmatprep.subr.bf16.mxu0 0
        %1106 = vmatpush2.bf16.msra.mxu0 0
        %1107 = vmatprep.subr.bf16.mxu0 0
        %1108 = vmatpush2.bf16.msra.mxu0 0
        %1109 = vmatprep.subr.bf16.mxu0 0
        %1110 = vmatpush2.bf16.msra.mxu0 0
        %1111 = vmatprep.subr.bf16.mxu0 0
        %1112 = vmatpush2.bf16.msra.mxu0 0
        %1113 = vmatprep.subr.bf16.mxu0 0
        %1114 = vmatpush2.bf16.msra.mxu0 0
        %1115 = vmatprep.subr.bf16.mxu0 0
        %1116 = vmatpush2.bf16.msra.mxu0 0
        %1117 = vmatprep.mubr.bf16.mxu0 0
        %1118 = vmatmul.mubr.bf16.gmra.mxu0 %v1056
        %v1119 = vpop.f32.mrf.mxu0
        %v1120 = vadd.f32 0.0, %v1119
        %v1121 = vpop.f32.mrf.mxu0
        %v1122 = vadd.f32 0.0, %v1121
        %v1123 = vpop.f32.mrf.mxu0
        %v1124 = vadd.f32 0.0, %v1123
        %v1125 = vpop.f32.mrf.mxu0
        %v1126 = vadd.f32 0.0, %v1125
        %1127 = vmatprep.mubr.bf16.mxu0 0
        %1128 = vmatmul.mubr.bf16.gmra.mxu0 %v1059
        %v1129 = vpop.f32.mrf.mxu0
        %v1130 = vadd.f32 0.0, %v1129
        %v1131 = vpop.f32.mrf.mxu0
        %v1132 = vadd.f32 0.0, %v1131
        %v1133 = vpop.f32.mrf.mxu0
        %v1134 = vadd.f32 0.0, %v1133
        %v1135 = vpop.f32.mrf.mxu0
        %v1136 = vadd.f32 0.0, %v1135
        %1137 = vmatprep.mubr.bf16.mxu0 0
        %1138 = vmatmul.mubr.bf16.gmra.mxu0 %v1062
        %v1139 = vpop.f32.mrf.mxu0
        %v1140 = vadd.f32 0.0, %v1139
        %v1141 = vpop.f32.mrf.mxu0
        %v1142 = vadd.f32 0.0, %v1141
        %v1143 = vpop.f32.mrf.mxu0
        %v1144 = vadd.f32 0.0, %v1143
        %v1145 = vpop.f32.mrf.mxu0
        %v1146 = vadd.f32 0.0, %v1145
        %1147 = vmatprep.mubr.bf16.mxu0 0
        %1148 = vmatmul.mubr.bf16.gmra.mxu0 %v1065
        %v1149 = vpop.f32.mrf.mxu0
        %v1150 = vadd.f32 0.0, %v1149
        %v1151 = vpop.f32.mrf.mxu0
        %v1152 = vadd.f32 0.0, %v1151
        %v1153 = vpop.f32.mrf.mxu0
        %v1154 = vadd.f32 0.0, %v1153
        %v1155 = vpop.f32.mrf.mxu0
        %v1156 = vadd.f32 0.0, %v1155
        %1157 = vmatprep.mubr.bf16.mxu0 0
        %1158 = vmatmul.mubr.bf16.gmra.mxu0 %v1068
        %v1159 = vpop.f32.mrf.mxu0
        %v1160 = vadd.f32 0.0, %v1159
        %v1161 = vpop.f32.mrf.mxu0
        %v1162 = vadd.f32 0.0, %v1161
        %v1163 = vpop.f32.mrf.mxu0
        %v1164 = vadd.f32 0.0, %v1163
        %v1165 = vpop.f32.mrf.mxu0
        %v1166 = vadd.f32 0.0, %v1165
        %1167 = vmatprep.mubr.bf16.mxu0 0
        %1168 = vmatmul.mubr.bf16.gmra.mxu0 %v1071
        %v1169 = vpop.f32.mrf.mxu0
        %v1170 = vadd.f32 0.0, %v1169
        %v1171 = vpop.f32.mrf.mxu0
        %v1172 = vadd.f32 0.0, %v1171
        %v1173 = vpop.f32.mrf.mxu0
        %v1174 = vadd.f32 0.0, %v1173
        %v1175 = vpop.f32.mrf.mxu0
        %v1176 = vadd.f32 0.0, %v1175
        %1177 = vmatprep.mubr.bf16.mxu0 0
        %1178 = vmatmul.mubr.bf16.gmra.mxu0 %v1074
        %v1179 = vpop.f32.mrf.mxu0
        %v1180 = vadd.f32 0.0, %v1179
        %v1181 = vpop.f32.mrf.mxu0
        %v1182 = vadd.f32 0.0, %v1181
        %v1183 = vpop.f32.mrf.mxu0
        %v1184 = vadd.f32 0.0, %v1183
        %v1185 = vpop.f32.mrf.mxu0
        %v1186 = vadd.f32 0.0, %v1185
        %1187 = vmatprep.mubr.bf16.mxu0 0
        %1188 = vmatmul.mubr.bf16.gmra.mxu0 %v1077
        %v1189 = vpop.f32.mrf.mxu0
        %v1190 = vadd.f32 0.0, %v1189
        %v1191 = vpop.f32.mrf.mxu0
        %v1192 = vadd.f32 0.0, %v1191
        %v1193 = vpop.f32.mrf.mxu0
        %v1194 = vpop.f32.mrf.mxu0
        %1195 = vdwg.mxu0
        %v1196 = vadd.f32 %v933, %v1120
        %v1197 = vadd.f32 %v935, %v1122
        %v1198 = vadd.f32 %v937, %v1124
        %v1199 = vadd.f32 %v939, %v1126
        %v1200 = vadd.f32 %v943, %v1130
        %v1201 = vadd.f32 %v945, %v1132
        %v1202 = vadd.f32 %v947, %v1134
        %v1203 = vadd.f32 %v949, %v1136
        %v1204 = vadd.f32 %v953, %v1140
        %v1205 = vadd.f32 %v955, %v1142
        %v1206 = vadd.f32 %v957, %v1144
        %v1207 = vadd.f32 %v959, %v1146
        %v1208 = vadd.f32 %v963, %v1150
        %v1209 = vadd.f32 %v965, %v1152
        %v1210 = vadd.f32 %v967, %v1154
        %v1211 = vadd.f32 %v969, %v1156
        %v1212 = vadd.f32 %v973, %v1160
        %v1213 = vadd.f32 %v975, %v1162
        %v1214 = vadd.f32 %v977, %v1164
        %v1215 = vadd.f32 %v979, %v1166
        %v1216 = vadd.f32 %v983, %v1170
        %v1217 = vadd.f32 %v985, %v1172
        %v1218 = vadd.f32 %v987, %v1174
        %v1219 = vadd.f32 %v989, %v1176
        %v1220 = vadd.f32 %v993, %v1180
        %v1221 = vadd.f32 %v995, %v1182
        %v1222 = vadd.f32 %v997, %v1184
        %v1223 = vadd.f32 %v999, %v1186
        %v1224 = vadd.f32 %v1003, %v1190
        %v1225 = vadd.f32 %v1005, %v1192
        %v1226 = vld [vmem:[%s4] sm:$0x3]
        %v1228 = vlaneseq
        %v1229 = vshrl.u32 %v1228, 7
        %v1230 = vsub.s32 0, %v1229
        %v1231 = vrot.slane %v1226, %v1230
        %v1232 = vlaneseq
        %v1233 = vshrl.u32 %v1232, 7
        %v1234 = vsub.s32 1, %v1233
        %v1235 = vrot.slane %v1226, %v1234
        %v1238 = vadd.f32 %v1196, %v1231
        %v1239 = vadd.f32 %v1197, %v1235
        %v1240 = vadd.f32 %v1198, %v1231
        %v1241 = vadd.f32 %v1199, %v1235
        %v1242 = vadd.f32 %v1200, %v1231
        %v1243 = vadd.f32 %v1201, %v1235
        %v1244 = vadd.f32 %v1202, %v1231
        %v1245 = vadd.f32 %v1203, %v1235
        %v1246 = vadd.f32 %v1204, %v1231
        %v1247 = vadd.f32 %v1205, %v1235
        %v1248 = vadd.f32 %v1206, %v1231
        %v1249 = vadd.f32 %v1207, %v1235
        %v1250 = vadd.f32 %v1208, %v1231
        %v1251 = vadd.f32 %v1209, %v1235
        %v1252 = vadd.f32 %v1210, %v1231
        %v1253 = vadd.f32 %v1211, %v1235
        %v1254 = vadd.f32 %v1212, %v1231
        %v1255 = vadd.f32 %v1213, %v1235
        %v1256 = vadd.f32 %v1214, %v1231
        %v1257 = vadd.f32 %v1215, %v1235
        %v1258 = vadd.f32 %v1216, %v1231
        %v1259 = vadd.f32 %v1217, %v1235
        %v1260 = vadd.f32 %v1218, %v1231
        %v1261 = vadd.f32 %v1219, %v1235
        %v1262 = vadd.f32 %v1220, %v1231
        %v1263 = vadd.f32 %v1221, %v1235
        %v1264 = vadd.f32 %v1222, %v1231
        %v1265 = vadd.f32 %v1223, %v1235
        %v1266 = vadd.f32 %v1224, %v1231
        %v1267 = vadd.f32 %v1225, %v1235
        %v1268 = vmax.f32 %v1238, 0.0
        %v1269 = vmax.f32 %v1239, 0.0
        %v1270 = vmax.f32 %v1240, 0.0
        %v1271 = vmax.f32 %v1241, 0.0
        %v1272 = vmax.f32 %v1242, 0.0
        %v1273 = vmax.f32 %v1243, 0.0
        %v1274 = vmax.f32 %v1244, 0.0
        %v1275 = vmax.f32 %v1245, 0.0
        %v1276 = vmax.f32 %v1246, 0.0
        %v1277 = vmax.f32 %v1247, 0.0
        %v1278 = vmax.f32 %v1248, 0.0
        %v1279 = vmax.f32 %v1249, 0.0
        %v1280 = vmax.f32 %v1250, 0.0
        %v1281 = vmax.f32 %v1251, 0.0
        %v1282 = vmax.f32 %v1252, 0.0
        %v1283 = vmax.f32 %v1253, 0.0
        %v1284 = vmax.f32 %v1254, 0.0
        %v1285 = vmax.f32 %v1255, 0.0
        %v1286 = vmax.f32 %v1256, 0.0
        %v1287 = vmax.f32 %v1257, 0.0
        %v1288 = vmax.f32 %v1258, 0.0
        %v1289 = vmax.f32 %v1259, 0.0
        %v1290 = vmax.f32 %v1260, 0.0
        %v1291 = vmax.f32 %v1261, 0.0
        %v1292 = vmax.f32 %v1262, 0.0
        %v1293 = vmax.f32 %v1263, 0.0
        %v1294 = vmax.f32 %v1264, 0.0
        %v1295 = vmax.f32 %v1265, 0.0
        %v1296 = vmax.f32 %v1266, 0.0
        %v1297 = vmax.f32 %v1267, 0.0
        %v1298 = vpack.c.bf16 %v1270, %v1268
        %v1299 = vpack.c.bf16 %v1271, %v1269
        %v1300 = vpack.c.bf16 %v1274, %v1272
        %v1301 = vpack.c.bf16 %v1275, %v1273
        %v1302 = vpack.c.bf16 %v1278, %v1276
        %v1303 = vpack.c.bf16 %v1279, %v1277
        %v1304 = vpack.c.bf16 %v1282, %v1280
        %v1305 = vpack.c.bf16 %v1283, %v1281
        %v1306 = vpack.c.bf16 %v1286, %v1284
        %v1307 = vpack.c.bf16 %v1287, %v1285
        %v1308 = vpack.c.bf16 %v1290, %v1288
        %v1309 = vpack.c.bf16 %v1291, %v1289
        %v1310 = vpack.c.bf16 %v1294, %v1292
        %v1311 = vpack.c.bf16 %v1295, %v1293
        %v1312 = vpack.c.bf16 %v1296, %v1296
        %v1313 = vpack.c.bf16 %v1297, %v1297
        %v1314 = vld [vmem:[%s5] sm:$0xf]
        %v1315 = vld [vmem:[%s5 + $0x4] sm:$0xf]
        %v1316 = vld [vmem:[%s5 + $0x8] sm:$0xf]
        %v1317 = vld [vmem:[%s5 + $0xc] sm:$0xf]
        %v1318 = vld [vmem:[%s5 + $0x10] sm:$0xf]
        %v1319 = vld [vmem:[%s5 + $0x14] sm:$0xf]
        %v1320 = vld [vmem:[%s5 + $0x18] sm:$0xf]
        %v1321 = vld [vmem:[%s5 + $0x1c] sm:$0xf]
        %v1330 = vunpack.c.l.b16 %v1314
        %v1331 = vunpack.c.l.b16 %v1315
        %v1332 = vunpack.c.l.b16 %v1316
        %v1333 = vunpack.c.l.b16 %v1317
        %v1334 = vunpack.c.l.b16 %v1318
        %v1335 = vunpack.c.l.b16 %v1319
        %v1336 = vunpack.c.l.b16 %v1320
        %v1337 = vunpack.c.l.b16 %v1321
        %v1338 = vpack.c.b16 %v1331, %v1330
        %v1339 = vpack.c.b16 %v1333, %v1332
        %v1340 = vpack.c.b16 %v1335, %v1334
        %v1341 = vpack.c.b16 %v1337, %v1336
        %vm1342 = vcmask 965632
        %v1344 = vsel %vm1342, %v1338, 0
        %v1347 = vsel %vm1342, %v1339, 0
        %v1350 = vsel %vm1342, %v1340, 0
        %v1353 = vsel %vm1342, %v1341, 0
        %vm1355 = vcmask 1042432
        %v1357 = vsel %vm1355, %v1312, 0
        %v1360 = vsel %vm1355, %v1313, 0
        %1362 = vmatprep.subr.bf16.mxu0 %v1360
        %1363 = vmatpush1.bf16.msra.mxu0 %v1357
        %1364 = vmatprep.subr.bf16.mxu0 %v1311
        %1365 = vmatpush1.bf16.msra.mxu0 %v1310
        %1366 = vmatprep.subr.bf16.mxu0 %v1309
        %1367 = vmatpush1.bf16.msra.mxu0 %v1308
        %1368 = vmatprep.subr.bf16.mxu0 %v1307
        %1369 = vmatpush1.bf16.msra.mxu0 %v1306
        %1370 = vmatprep.subr.bf16.mxu0 %v1305
        %1371 = vmatpush1.bf16.msra.mxu0 %v1304
        %1372 = vmatprep.subr.bf16.mxu0 %v1303
        %1373 = vmatpush1.bf16.msra.mxu0 %v1302
        %1374 = vmatprep.subr.bf16.mxu0 %v1301
        %1375 = vmatpush1.bf16.msra.mxu0 %v1300
        %1376 = vmatprep.subr.bf16.mxu0 %v1299
        %1377 = vmatpush1.bf16.msra.mxu0 %v1298
        %1378 = vmatprep.subr.bf16.mxu0 0
        %1379 = vmatpush2.bf16.msra.mxu0 0
        %1380 = vmatprep.subr.bf16.mxu0 0
        %1381 = vmatpush2.bf16.msra.mxu0 0
        %1382 = vmatprep.subr.bf16.mxu0 0
        %1383 = vmatpush2.bf16.msra.mxu0 0
        %1384 = vmatprep.subr.bf16.mxu0 0
        %1385 = vmatpush2.bf16.msra.mxu0 0
        %1386 = vmatprep.subr.bf16.mxu0 0
        %1387 = vmatpush2.bf16.msra.mxu0 0
        %1388 = vmatprep.subr.bf16.mxu0 0
        %1389 = vmatpush2.bf16.msra.mxu0 0
        %1390 = vmatprep.subr.bf16.mxu0 0
        %1391 = vmatpush2.bf16.msra.mxu0 0
        %1392 = vmatprep.subr.bf16.mxu0 0
        %1393 = vmatpush2.bf16.msra.mxu0 0
        %1394 = vmatprep.mubr.bf16.mxu0 0
        %1395 = vmatmul.mubr.bf16.gmra.mxu0 %v1344
        %v1396 = vpop.f32.mrf.mxu0
        %v1397 = vadd.f32 0.0, %v1396
        %v1398 = vpop.f32.mrf.mxu0
        %v1399 = vadd.f32 0.0, %v1398
        %v1400 = vpop.f32.mrf.mxu0
        %v1401 = vadd.f32 0.0, %v1400
        %v1402 = vpop.f32.mrf.mxu0
        %v1403 = vadd.f32 0.0, %v1402
        %1404 = vmatprep.mubr.bf16.mxu0 0
        %1405 = vmatmul.mubr.bf16.gmra.mxu0 %v1347
        %v1406 = vpop.f32.mrf.mxu0
        %v1407 = vadd.f32 0.0, %v1406
        %v1408 = vpop.f32.mrf.mxu0
        %v1409 = vadd.f32 0.0, %v1408
        %v1410 = vpop.f32.mrf.mxu0
        %v1411 = vadd.f32 0.0, %v1410
        %v1412 = vpop.f32.mrf.mxu0
        %v1413 = vadd.f32 0.0, %v1412
        %1414 = vmatprep.mubr.bf16.mxu0 0
        %1415 = vmatmul.mubr.bf16.gmra.mxu0 %v1350
        %v1416 = vpop.f32.mrf.mxu0
        %v1417 = vadd.f32 0.0, %v1416
        %v1418 = vpop.f32.mrf.mxu0
        %v1419 = vadd.f32 0.0, %v1418
        %v1420 = vpop.f32.mrf.mxu0
        %v1421 = vadd.f32 0.0, %v1420
        %v1422 = vpop.f32.mrf.mxu0
        %v1423 = vadd.f32 0.0, %v1422
        %1424 = vmatprep.mubr.bf16.mxu0 0
        %1425 = vmatmul.mubr.bf16.gmra.mxu0 %v1353
        %v1426 = vpop.f32.mrf.mxu0
        %v1427 = vadd.f32 0.0, %v1426
        %v1428 = vpop.f32.mrf.mxu0
        %v1429 = vadd.f32 0.0, %v1428
        %v1430 = vpop.f32.mrf.mxu0
        %v1431 = vadd.f32 0.0, %v1430
        %v1432 = vpop.f32.mrf.mxu0
        %v1433 = vadd.f32 0.0, %v1432
        %1434 = vdwg.mxu0
        %v1435 = vld [vmem:[%s6] sm:$0xf]
        %v1436 = vld [vmem:[%s6 + $0x4] sm:$0xf]
        %v1437 = vld [vmem:[%s6 + $0x8] sm:$0xf]
        %v1438 = vld [vmem:[%s6 + $0xc] sm:$0xf]
        %v1439 = vld [vmem:[%s6 + $0x10] sm:$0xf]
        %v1440 = vld [vmem:[%s6 + $0x14] sm:$0xf]
        %v1441 = vld [vmem:[%s6 + $0x18] sm:$0xf]
        %v1442 = vld [vmem:[%s6 + $0x1c] sm:$0xf]
        %v1451 = vunpack.c.l.b16 %v1435
        %v1452 = vunpack.c.l.b16 %v1436
        %v1453 = vunpack.c.l.b16 %v1437
        %v1454 = vunpack.c.l.b16 %v1438
        %v1455 = vunpack.c.l.b16 %v1439
        %v1456 = vunpack.c.l.b16 %v1440
        %v1457 = vunpack.c.l.b16 %v1441
        %v1458 = vunpack.c.l.b16 %v1442
        %v1459 = vpack.c.b16 %v1452, %v1451
        %v1460 = vpack.c.b16 %v1454, %v1453
        %v1461 = vpack.c.b16 %v1456, %v1455
        %v1462 = vpack.c.b16 %v1458, %v1457
        %v1464 = vsel %vm1342, %v1459, 0
        %v1467 = vsel %vm1342, %v1460, 0
        %v1470 = vsel %vm1342, %v1461, 0
        %v1473 = vsel %vm1342, %v1462, 0
        %1475 = vmatprep.subr.bf16.mxu0 %v1360
        %1476 = vmatpush1.bf16.msra.mxu0 %v1357
        %1477 = vmatprep.subr.bf16.mxu0 %v1311
        %1478 = vmatpush1.bf16.msra.mxu0 %v1310
        %1479 = vmatprep.subr.bf16.mxu0 %v1309
        %1480 = vmatpush1.bf16.msra.mxu0 %v1308
        %1481 = vmatprep.subr.bf16.mxu0 %v1307
        %1482 = vmatpush1.bf16.msra.mxu0 %v1306
        %1483 = vmatprep.subr.bf16.mxu0 %v1305
        %1484 = vmatpush1.bf16.msra.mxu0 %v1304
        %1485 = vmatprep.subr.bf16.mxu0 %v1303
        %1486 = vmatpush1.bf16.msra.mxu0 %v1302
        %1487 = vmatprep.subr.bf16.mxu0 %v1301
        %1488 = vmatpush1.bf16.msra.mxu0 %v1300
        %1489 = vmatprep.subr.bf16.mxu0 %v1299
        %1490 = vmatpush1.bf16.msra.mxu0 %v1298
        %1491 = vmatprep.subr.bf16.mxu0 0
        %1492 = vmatpush2.bf16.msra.mxu0 0
        %1493 = vmatprep.subr.bf16.mxu0 0
        %1494 = vmatpush2.bf16.msra.mxu0 0
        %1495 = vmatprep.subr.bf16.mxu0 0
        %1496 = vmatpush2.bf16.msra.mxu0 0
        %1497 = vmatprep.subr.bf16.mxu0 0
        %1498 = vmatpush2.bf16.msra.mxu0 0
        %1499 = vmatprep.subr.bf16.mxu0 0
        %1500 = vmatpush2.bf16.msra.mxu0 0
        %1501 = vmatprep.subr.bf16.mxu0 0
        %1502 = vmatpush2.bf16.msra.mxu0 0
        %1503 = vmatprep.subr.bf16.mxu0 0
        %1504 = vmatpush2.bf16.msra.mxu0 0
        %1505 = vmatprep.subr.bf16.mxu0 0
        %1506 = vmatpush2.bf16.msra.mxu0 0
        %1507 = vmatprep.mubr.bf16.mxu0 0
        %1508 = vmatmul.mubr.bf16.gmra.mxu0 %v1464
        %v1509 = vpop.f32.mrf.mxu0
        %v1510 = vadd.f32 0.0, %v1509
        %v1511 = vpop.f32.mrf.mxu0
        %v1512 = vadd.f32 0.0, %v1511
        %v1513 = vpop.f32.mrf.mxu0
        %v1514 = vadd.f32 0.0, %v1513
        %v1515 = vpop.f32.mrf.mxu0
        %v1516 = vadd.f32 0.0, %v1515
        %1517 = vmatprep.mubr.bf16.mxu0 0
        %1518 = vmatmul.mubr.bf16.gmra.mxu0 %v1467
        %v1519 = vpop.f32.mrf.mxu0
        %v1520 = vadd.f32 0.0, %v1519
        %v1521 = vpop.f32.mrf.mxu0
        %v1522 = vadd.f32 0.0, %v1521
        %v1523 = vpop.f32.mrf.mxu0
        %v1524 = vadd.f32 0.0, %v1523
        %v1525 = vpop.f32.mrf.mxu0
        %v1526 = vadd.f32 0.0, %v1525
        %1527 = vmatprep.mubr.bf16.mxu0 0
        %1528 = vmatmul.mubr.bf16.gmra.mxu0 %v1470
        %v1529 = vpop.f32.mrf.mxu0
        %v1530 = vadd.f32 0.0, %v1529
        %v1531 = vpop.f32.mrf.mxu0
        %v1532 = vadd.f32 0.0, %v1531
        %v1533 = vpop.f32.mrf.mxu0
        %v1534 = vadd.f32 0.0, %v1533
        %v1535 = vpop.f32.mrf.mxu0
        %v1536 = vadd.f32 0.0, %v1535
        %1537 = vmatprep.mubr.bf16.mxu0 0
        %1538 = vmatmul.mubr.bf16.gmra.mxu0 %v1473
        %v1539 = vpop.f32.mrf.mxu0
        %v1540 = vadd.f32 0.0, %v1539
        %v1541 = vpop.f32.mrf.mxu0
        %v1542 = vadd.f32 0.0, %v1541
        %v1543 = vpop.f32.mrf.mxu0
        %v1544 = vadd.f32 0.0, %v1543
        %v1545 = vpop.f32.mrf.mxu0
        %v1546 = vadd.f32 0.0, %v1545
        %1547 = vdwg.mxu0
        %v1548 = vmax.f32 %v1397, %v1510
        %v1549 = vmax.f32 %v1399, %v1512
        %v1550 = vmax.f32 %v1401, %v1514
        %v1551 = vmax.f32 %v1403, %v1516
        %v1552 = vmax.f32 %v1407, %v1520
        %v1553 = vmax.f32 %v1409, %v1522
        %v1554 = vmax.f32 %v1411, %v1524
        %v1555 = vmax.f32 %v1413, %v1526
        %v1556 = vmax.f32 %v1417, %v1530
        %v1557 = vmax.f32 %v1419, %v1532
        %v1558 = vmax.f32 %v1421, %v1534
        %v1559 = vmax.f32 %v1423, %v1536
        %v1560 = vmax.f32 %v1427, %v1540
        %v1561 = vmax.f32 %v1429, %v1542
        %v1562 = vmax.f32 %v1431, %v1544
        %v1563 = vmax.f32 %v1433, %v1546
        %v1564 = vpack.c.bf16 %v1550, %v1548
        %v1565 = vpack.c.bf16 %v1551, %v1549
        %v1566 = vpack.c.bf16 %v1554, %v1552
        %v1567 = vpack.c.bf16 %v1555, %v1553
        %v1568 = vpack.c.bf16 %v1558, %v1556
        %v1569 = vpack.c.bf16 %v1559, %v1557
        %v1570 = vpack.c.bf16 %v1562, %v1560
        %v1571 = vpack.c.bf16 %v1563, %v1561
        %v1572 = vld [vmem:[%s7] sm:$0xf]
        %v1573 = vld [vmem:[%s7 + $0x4] sm:$0xf]
        %v1574 = vld [vmem:[%s7 + $0x8] sm:$0xf]
        %v1575 = vld [vmem:[%s7 + $0xc] sm:$0xf]
        %v1576 = vld [vmem:[%s7 + $0x10] sm:$0xf]
        %v1577 = vld [vmem:[%s7 + $0x14] sm:$0xf]
        %v1578 = vld [vmem:[%s7 + $0x18] sm:$0xf]
        %v1579 = vld [vmem:[%s7 + $0x1c] sm:$0xf]
        %v1580 = vld [vmem:[%s7 + $0x20] sm:$0xf]
        %v1581 = vld [vmem:[%s7 + $0x24] sm:$0xf]
        %v1582 = vld [vmem:[%s7 + $0x28] sm:$0xf]
        %v1583 = vld [vmem:[%s7 + $0x2c] sm:$0xf]
        %v1584 = vld [vmem:[%s7 + $0x30] sm:$0xf]
        %v1585 = vld [vmem:[%s7 + $0x34] sm:$0xf]
        %v1586 = vld [vmem:[%s7 + $0x38] sm:$0xf]
        %v1587 = vld [vmem:[%s7 + $0x3c] sm:$0xf]
        %v1588 = vld [vmem:[%s7 + $0x40] sm:$0xf]
        %v1589 = vld [vmem:[%s7 + $0x44] sm:$0xf]
        %v1590 = vld [vmem:[%s7 + $0x48] sm:$0xf]
        %v1591 = vld [vmem:[%s7 + $0x4c] sm:$0xf]
        %v1592 = vld [vmem:[%s7 + $0x50] sm:$0xf]
        %v1593 = vld [vmem:[%s7 + $0x54] sm:$0xf]
        %v1594 = vld [vmem:[%s7 + $0x58] sm:$0xf]
        %v1595 = vld [vmem:[%s7 + $0x5c] sm:$0xf]
        %v1596 = vld [vmem:[%s7 + $0x60] sm:$0xf]
        %v1597 = vld [vmem:[%s7 + $0x64] sm:$0xf]
        %v1598 = vld [vmem:[%s7 + $0x68] sm:$0xf]
        %v1599 = vld [vmem:[%s7 + $0x6c] sm:$0xf]
        %v1628 = vunpack.c.l.b16 %v1572
        %v1629 = vunpack.c.l.b16 %v1573
        %v1630 = vunpack.c.l.b16 %v1574
        %v1631 = vunpack.c.l.b16 %v1575
        %v1632 = vunpack.c.l.b16 %v1576
        %v1633 = vunpack.c.l.b16 %v1577
        %v1634 = vunpack.c.l.b16 %v1578
        %v1635 = vunpack.c.l.b16 %v1579
        %v1636 = vunpack.c.l.b16 %v1580
        %v1637 = vunpack.c.l.b16 %v1581
        %v1638 = vunpack.c.l.b16 %v1582
        %v1639 = vunpack.c.l.b16 %v1583
        %v1640 = vunpack.c.l.b16 %v1584
        %v1641 = vunpack.c.l.b16 %v1585
        %v1642 = vunpack.c.l.b16 %v1586
        %v1643 = vunpack.c.l.b16 %v1587
        %v1644 = vunpack.c.l.b16 %v1588
        %v1645 = vunpack.c.l.b16 %v1589
        %v1646 = vunpack.c.l.b16 %v1590
        %v1647 = vunpack.c.l.b16 %v1591
        %v1648 = vunpack.c.l.b16 %v1592
        %v1649 = vunpack.c.l.b16 %v1593
        %v1650 = vunpack.c.l.b16 %v1594
        %v1651 = vunpack.c.l.b16 %v1595
        %v1652 = vunpack.c.l.b16 %v1596
        %v1653 = vunpack.c.l.b16 %v1597
        %v1654 = vunpack.c.l.b16 %v1598
        %v1655 = vunpack.c.l.b16 %v1599
        %v1656 = vpack.c.b16 %v1629, %v1628
        %v1657 = vpack.c.b16 %v1631, %v1630
        %v1658 = vpack.c.b16 %v1633, %v1632
        %v1659 = vpack.c.b16 %v1635, %v1634
        %v1660 = vpack.c.b16 %v1637, %v1636
        %v1661 = vpack.c.b16 %v1639, %v1638
        %v1662 = vpack.c.b16 %v1641, %v1640
        %v1663 = vpack.c.b16 %v1643, %v1642
        %v1664 = vpack.c.b16 %v1645, %v1644
        %v1665 = vpack.c.b16 %v1647, %v1646
        %v1666 = vpack.c.b16 %v1649, %v1648
        %v1667 = vpack.c.b16 %v1651, %v1650
        %v1668 = vpack.c.b16 %v1653, %v1652
        %v1669 = vpack.c.b16 %v1655, %v1654
        %vm1684 = vcmask 785408
        %v1686 = vsel %vm1684, %v1565, 0
        %v1689 = vsel %vm1684, %v1567, 0
        %v1692 = vsel %vm1684, %v1569, 0
        %v1695 = vsel %vm1684, %v1571, 0
        %1697 = vmatprep.subr.bf16.mxu0 0
        %1698 = vmatpush1.bf16.msra.mxu0 %v1663
        %1699 = vmatprep.subr.bf16.mxu0 0
        %1700 = vmatpush1.bf16.msra.mxu0 %v1662
        %1701 = vmatprep.subr.bf16.mxu0 0
        %1702 = vmatpush1.bf16.msra.mxu0 %v1661
        %1703 = vmatprep.subr.bf16.mxu0 0
        %1704 = vmatpush1.bf16.msra.mxu0 %v1660
        %1705 = vmatprep.subr.bf16.mxu0 0
        %1706 = vmatpush1.bf16.msra.mxu0 %v1659
        %1707 = vmatprep.subr.bf16.mxu0 0
        %1708 = vmatpush1.bf16.msra.mxu0 %v1658
        %1709 = vmatprep.subr.bf16.mxu0 0
        %1710 = vmatpush1.bf16.msra.mxu0 %v1657
        %1711 = vmatprep.subr.bf16.mxu0 0
        %1712 = vmatpush1.bf16.msra.mxu0 %v1656
        %1713 = vmatprep.subr.bf16.mxu0 0
        %1714 = vmatpush2.bf16.msra.mxu0 0
        %1715 = vmatprep.subr.bf16.mxu0 0
        %1716 = vmatpush2.bf16.msra.mxu0 0
        %1717 = vmatprep.subr.bf16.mxu0 0
        %1718 = vmatpush2.bf16.msra.mxu0 %v1669
        %1719 = vmatprep.subr.bf16.mxu0 0
        %1720 = vmatpush2.bf16.msra.mxu0 %v1668
        %1721 = vmatprep.subr.bf16.mxu0 0
        %1722 = vmatpush2.bf16.msra.mxu0 %v1667
        %1723 = vmatprep.subr.bf16.mxu0 0
        %1724 = vmatpush2.bf16.msra.mxu0 %v1666
        %1725 = vmatprep.subr.bf16.mxu0 0
        %1726 = vmatpush2.bf16.msra.mxu0 %v1665
        %1727 = vmatprep.subr.bf16.mxu0 0
        %1728 = vmatpush2.bf16.msra.mxu0 %v1664
        %1729 = vmatprep.mubr.bf16.mxu0 %v1686
        %1730 = vmatmul.mubr.bf16.gmra.mxu0 %v1564
        %v1731 = vpop.f32.mrf.mxu0
        %v1732 = vadd.f32 0.0, %v1731
        %v1733 = vpop.f32.mrf.mxu0
        %v1734 = vpop.f32.mrf.mxu0
        %v1735 = vadd.f32 0.0, %v1734
        %v1736 = vpop.f32.mrf.mxu0
        %1737 = vmatprep.mubr.bf16.mxu0 %v1689
        %1738 = vmatmul.mubr.bf16.gmra.mxu0 %v1566
        %v1739 = vpop.f32.mrf.mxu0
        %v1740 = vadd.f32 0.0, %v1739
        %v1741 = vpop.f32.mrf.mxu0
        %v1742 = vpop.f32.mrf.mxu0
        %v1743 = vadd.f32 0.0, %v1742
        %v1744 = vpop.f32.mrf.mxu0
        %1745 = vmatprep.mubr.bf16.mxu0 %v1692
        %1746 = vmatmul.mubr.bf16.gmra.mxu0 %v1568
        %v1747 = vpop.f32.mrf.mxu0
        %v1748 = vadd.f32 0.0, %v1747
        %v1749 = vpop.f32.mrf.mxu0
        %v1750 = vpop.f32.mrf.mxu0
        %v1751 = vadd.f32 0.0, %v1750
        %v1752 = vpop.f32.mrf.mxu0
        %1753 = vmatprep.mubr.bf16.mxu0 %v1695
        %1754 = vmatmul.mubr.bf16.gmra.mxu0 %v1570
        %v1755 = vpop.f32.mrf.mxu0
        %v1756 = vadd.f32 0.0, %v1755
        %v1757 = vpop.f32.mrf.mxu0
        %v1758 = vpop.f32.mrf.mxu0
        %v1759 = vadd.f32 0.0, %v1758
        %v1760 = vpop.f32.mrf.mxu0
        %1761 = vdwg.mxu0
        %v1762 = vld [vmem:[%s8] sm:$0xf]
        %v1763 = vld [vmem:[%s8 + $0x4] sm:$0xf]
        %v1764 = vld [vmem:[%s8 + $0x8] sm:$0xf]
        %v1765 = vld [vmem:[%s8 + $0xc] sm:$0xf]
        %v1766 = vld [vmem:[%s8 + $0x10] sm:$0xf]
        %v1767 = vld [vmem:[%s8 + $0x14] sm:$0xf]
        %v1768 = vld [vmem:[%s8 + $0x18] sm:$0xf]
        %v1769 = vld [vmem:[%s8 + $0x1c] sm:$0xf]
        %v1770 = vld [vmem:[%s8 + $0x20] sm:$0xf]
        %v1771 = vld [vmem:[%s8 + $0x24] sm:$0xf]
        %v1772 = vld [vmem:[%s8 + $0x28] sm:$0xf]
        %v1773 = vld [vmem:[%s8 + $0x2c] sm:$0xf]
        %v1774 = vld [vmem:[%s8 + $0x30] sm:$0xf]
        %v1775 = vld [vmem:[%s8 + $0x34] sm:$0xf]
        %v1776 = vld [vmem:[%s8 + $0x38] sm:$0xf]
        %v1777 = vld [vmem:[%s8 + $0x3c] sm:$0xf]
        %v1778 = vld [vmem:[%s8 + $0x40] sm:$0xf]
        %v1779 = vld [vmem:[%s8 + $0x44] sm:$0xf]
        %v1780 = vld [vmem:[%s8 + $0x48] sm:$0xf]
        %v1781 = vld [vmem:[%s8 + $0x4c] sm:$0xf]
        %v1782 = vld [vmem:[%s8 + $0x50] sm:$0xf]
        %v1783 = vld [vmem:[%s8 + $0x54] sm:$0xf]
        %v1784 = vld [vmem:[%s8 + $0x58] sm:$0xf]
        %v1785 = vld [vmem:[%s8 + $0x5c] sm:$0xf]
        %v1786 = vld [vmem:[%s8 + $0x60] sm:$0xf]
        %v1787 = vld [vmem:[%s8 + $0x64] sm:$0xf]
        %v1788 = vld [vmem:[%s8 + $0x68] sm:$0xf]
        %v1789 = vld [vmem:[%s8 + $0x6c] sm:$0xf]
        %v1818 = vunpack.c.l.b16 %v1762
        %v1819 = vunpack.c.l.b16 %v1763
        %v1820 = vunpack.c.l.b16 %v1764
        %v1821 = vunpack.c.l.b16 %v1765
        %v1822 = vunpack.c.l.b16 %v1766
        %v1823 = vunpack.c.l.b16 %v1767
        %v1824 = vunpack.c.l.b16 %v1768
        %v1825 = vunpack.c.l.b16 %v1769
        %v1826 = vunpack.c.l.b16 %v1770
        %v1827 = vunpack.c.l.b16 %v1771
        %v1828 = vunpack.c.l.b16 %v1772
        %v1829 = vunpack.c.l.b16 %v1773
        %v1830 = vunpack.c.l.b16 %v1774
        %v1831 = vunpack.c.l.b16 %v1775
        %v1832 = vunpack.c.l.b16 %v1776
        %v1833 = vunpack.c.l.b16 %v1777
        %v1834 = vunpack.c.l.b16 %v1778
        %v1835 = vunpack.c.l.b16 %v1779
        %v1836 = vunpack.c.l.b16 %v1780
        %v1837 = vunpack.c.l.b16 %v1781
        %v1838 = vunpack.c.l.b16 %v1782
        %v1839 = vunpack.c.l.b16 %v1783
        %v1840 = vunpack.c.l.b16 %v1784
        %v1841 = vunpack.c.l.b16 %v1785
        %v1842 = vunpack.c.l.b16 %v1786
        %v1843 = vunpack.c.l.b16 %v1787
        %v1844 = vunpack.c.l.b16 %v1788
        %v1845 = vunpack.c.l.b16 %v1789
        %v1846 = vpack.c.b16 %v1819, %v1818
        %v1847 = vpack.c.b16 %v1821, %v1820
        %v1848 = vpack.c.b16 %v1823, %v1822
        %v1849 = vpack.c.b16 %v1825, %v1824
        %v1850 = vpack.c.b16 %v1827, %v1826
        %v1851 = vpack.c.b16 %v1829, %v1828
        %v1852 = vpack.c.b16 %v1831, %v1830
        %v1853 = vpack.c.b16 %v1833, %v1832
        %v1854 = vpack.c.b16 %v1835, %v1834
        %v1855 = vpack.c.b16 %v1837, %v1836
        %v1856 = vpack.c.b16 %v1839, %v1838
        %v1857 = vpack.c.b16 %v1841, %v1840
        %v1858 = vpack.c.b16 %v1843, %v1842
        %v1859 = vpack.c.b16 %v1845, %v1844
        %1874 = vmatprep.subr.bf16.mxu0 0
        %1875 = vmatpush1.bf16.msra.mxu0 %v1853
        %1876 = vmatprep.subr.bf16.mxu0 0
        %1877 = vmatpush1.bf16.msra.mxu0 %v1852
        %1878 = vmatprep.subr.bf16.mxu0 0
        %1879 = vmatpush1.bf16.msra.mxu0 %v1851
        %1880 = vmatprep.subr.bf16.mxu0 0
        %1881 = vmatpush1.bf16.msra.mxu0 %v1850
        %1882 = vmatprep.subr.bf16.mxu0 0
        %1883 = vmatpush1.bf16.msra.mxu0 %v1849
        %1884 = vmatprep.subr.bf16.mxu0 0
        %1885 = vmatpush1.bf16.msra.mxu0 %v1848
        %1886 = vmatprep.subr.bf16.mxu0 0
        %1887 = vmatpush1.bf16.msra.mxu0 %v1847
        %1888 = vmatprep.subr.bf16.mxu0 0
        %1889 = vmatpush1.bf16.msra.mxu0 %v1846
        %1890 = vmatprep.subr.bf16.mxu0 0
        %1891 = vmatpush2.bf16.msra.mxu0 0
        %1892 = vmatprep.subr.bf16.mxu0 0
        %1893 = vmatpush2.bf16.msra.mxu0 0
        %1894 = vmatprep.subr.bf16.mxu0 0
        %1895 = vmatpush2.bf16.msra.mxu0 %v1859
        %1896 = vmatprep.subr.bf16.mxu0 0
        %1897 = vmatpush2.bf16.msra.mxu0 %v1858
        %1898 = vmatprep.subr.bf16.mxu0 0
        %1899 = vmatpush2.bf16.msra.mxu0 %v1857
        %1900 = vmatprep.subr.bf16.mxu0 0
        %1901 = vmatpush2.bf16.msra.mxu0 %v1856
        %1902 = vmatprep.subr.bf16.mxu0 0
        %1903 = vmatpush2.bf16.msra.mxu0 %v1855
        %1904 = vmatprep.subr.bf16.mxu0 0
        %1905 = vmatpush2.bf16.msra.mxu0 %v1854
        %1906 = vmatprep.mubr.bf16.mxu0 %v1686
        %1907 = vmatmul.mubr.bf16.gmra.mxu0 %v1564
        %v1908 = vpop.f32.mrf.mxu0
        %v1909 = vadd.f32 0.0, %v1908
        %v1910 = vpop.f32.mrf.mxu0
        %v1911 = vpop.f32.mrf.mxu0
        %v1912 = vadd.f32 0.0, %v1911
        %v1913 = vpop.f32.mrf.mxu0
        %1914 = vmatprep.mubr.bf16.mxu0 %v1689
        %1915 = vmatmul.mubr.bf16.gmra.mxu0 %v1566
        %v1916 = vpop.f32.mrf.mxu0
        %v1917 = vadd.f32 0.0, %v1916
        %v1918 = vpop.f32.mrf.mxu0
        %v1919 = vpop.f32.mrf.mxu0
        %v1920 = vadd.f32 0.0, %v1919
        %v1921 = vpop.f32.mrf.mxu0
        %1922 = vmatprep.mubr.bf16.mxu0 %v1692
        %1923 = vmatmul.mubr.bf16.gmra.mxu0 %v1568
        %v1924 = vpop.f32.mrf.mxu0
        %v1925 = vadd.f32 0.0, %v1924
        %v1926 = vpop.f32.mrf.mxu0
        %v1927 = vpop.f32.mrf.mxu0
        %v1928 = vadd.f32 0.0, %v1927
        %v1929 = vpop.f32.mrf.mxu0
        %1930 = vmatprep.mubr.bf16.mxu0 %v1695
        %1931 = vmatmul.mubr.bf16.gmra.mxu0 %v1570
        %v1932 = vpop.f32.mrf.mxu0
        %v1933 = vadd.f32 0.0, %v1932
        %v1934 = vpop.f32.mrf.mxu0
        %v1935 = vpop.f32.mrf.mxu0
        %v1936 = vadd.f32 0.0, %v1935
        %v1937 = vpop.f32.mrf.mxu0
        %1938 = vdwg.mxu0
        %v1939 = vmax.f32 %v1732, %v1909
        %v1940 = vmax.f32 %v1735, %v1912
        %v1941 = vmax.f32 %v1740, %v1917
        %v1942 = vmax.f32 %v1743, %v1920
        %v1943 = vmax.f32 %v1748, %v1925
        %v1944 = vmax.f32 %v1751, %v1928
        %v1945 = vmax.f32 %v1756, %v1933
        %v1946 = vmax.f32 %v1759, %v1936
        %v1947 = vpack.c.bf16 %v1940, %v1939
        %v1948 = vpack.c.bf16 %v1942, %v1941
        %v1949 = vpack.c.bf16 %v1944, %v1943
        %v1950 = vpack.c.bf16 %v1946, %v1945
        %v1951 = vld [vmem:[%s9] sm:$0xff]
        %v1952 = vld [vmem:[%s9 + $0x8] sm:$0xff]
        %v1953 = vld [vmem:[%s9 + $0x10] sm:$0xff]
        %v1954 = vld [vmem:[%s9 + $0x18] sm:$0xff]
        %v1955 = vld [vmem:[%s9 + $0x20] sm:$0xff]
        %v1956 = vld [vmem:[%s9 + $0x28] sm:$0xff]
        %v1957 = vld [vmem:[%s9 + $0x30] sm:$0xff]
        %v1958 = vld [vmem:[%s9 + $0x38] sm:$0xff]
        %v1959 = vld [vmem:[%s9 + $0x40] sm:$0xff]
        %v1960 = vld [vmem:[%s9 + $0x48] sm:$0xff]
        %v1961 = vld [vmem:[%s9 + $0x50] sm:$0xff]
        %v1962 = vld [vmem:[%s9 + $0x58] sm:$0xff]
        %v1963 = vld [vmem:[%s9 + $0x60] sm:$0xff]
        %v1964 = vld [vmem:[%s9 + $0x68] sm:$0xff]
        %v1965 = vld [vmem:[%s10] sm:$0xff]
        %v1966 = vld [vmem:[%s10 + $0x8] sm:$0xff]
        %v1967 = vld [vmem:[%s10 + $0x10] sm:$0xff]
        %v1968 = vld [vmem:[%s10 + $0x18] sm:$0xff]
        %v1969 = vld [vmem:[%s10 + $0x20] sm:$0xff]
        %v1970 = vld [vmem:[%s10 + $0x28] sm:$0xff]
        %v1971 = vld [vmem:[%s10 + $0x30] sm:$0xff]
        %v1972 = vld [vmem:[%s10 + $0x38] sm:$0xff]
        %v1973 = vld [vmem:[%s10 + $0x40] sm:$0xff]
        %v1974 = vld [vmem:[%s10 + $0x48] sm:$0xff]
        %v1975 = vld [vmem:[%s10 + $0x50] sm:$0xff]
        %v1976 = vld [vmem:[%s10 + $0x58] sm:$0xff]
        %v1977 = vld [vmem:[%s10 + $0x60] sm:$0xff]
        %v1978 = vld [vmem:[%s10 + $0x68] sm:$0xff]
        %v1980 = vshrl.u32 %v1947, 16
        %v1982 = vshll.u32 %v1947, 16
        %v1984 = vrot.slane %v1982, 1
        %v1985 = vor.u32 %v1980, %v1984
        %v1987 = vshll.u32 %v1948, 16
        %v1989 = vrot.slane %v1987, 1
        %v1990 = vsel %vm633, %v1985, %v1989
        %v1991 = vshrl.u32 %v1948, 16
        %v1993 = vor.u32 %v1991, %v1989
        %v1995 = vshll.u32 %v1949, 16
        %v1997 = vrot.slane %v1995, 1
        %v1998 = vsel %vm633, %v1993, %v1997
        %v1999 = vshrl.u32 %v1949, 16
        %v2001 = vor.u32 %v1999, %v1997
        %v2003 = vshll.u32 %v1950, 16
        %v2005 = vrot.slane %v2003, 1
        %v2006 = vsel %vm633, %v2001, %v2005
        %v2007 = vshrl.u32 %v1950, 16
        %v2009 = vor.u32 %v2007, %v2005
        %v2024 = vunpack.c.l.b16 %v1965
        %v2025 = vunpack.c.h.b16 %v1965
        %v2026 = vunpack.c.l.b16 %v1966
        %v2027 = vunpack.c.h.b16 %v1966
        %v2028 = vunpack.c.l.b16 %v1967
        %v2029 = vunpack.c.h.b16 %v1967
        %v2030 = vunpack.c.l.b16 %v1968
        %v2031 = vunpack.c.h.b16 %v1968
        %v2032 = vunpack.c.l.b16 %v1969
        %v2033 = vunpack.c.h.b16 %v1969
        %v2034 = vunpack.c.l.b16 %v1970
        %v2035 = vunpack.c.h.b16 %v1970
        %v2036 = vunpack.c.l.b16 %v1971
        %v2037 = vunpack.c.h.b16 %v1971
        %v2038 = vunpack.c.l.b16 %v1972
        %v2039 = vunpack.c.h.b16 %v1972
        %v2040 = vunpack.c.l.b16 %v1973
        %v2041 = vunpack.c.h.b16 %v1973
        %v2042 = vunpack.c.l.b16 %v1974
        %v2043 = vunpack.c.h.b16 %v1974
        %v2044 = vunpack.c.l.b16 %v1975
        %v2045 = vunpack.c.h.b16 %v1975
        %v2046 = vunpack.c.l.b16 %v1976
        %v2047 = vunpack.c.h.b16 %v1976
        %v2048 = vunpack.c.l.b16 %v1977
        %v2049 = vunpack.c.h.b16 %v1977
        %v2050 = vunpack.c.l.b16 %v1978
        %v2051 = vunpack.c.h.b16 %v1978
        %v2052 = vpack.c.b16 %v2026, %v2024
        %v2053 = vpack.c.b16 %v2027, %v2025
        %v2054 = vpack.c.b16 %v2030, %v2028
        %v2055 = vpack.c.b16 %v2031, %v2029
        %v2056 = vpack.c.b16 %v2034, %v2032
        %v2057 = vpack.c.b16 %v2035, %v2033
        %v2058 = vpack.c.b16 %v2038, %v2036
        %v2059 = vpack.c.b16 %v2039, %v2037
        %v2060 = vpack.c.b16 %v2042, %v2040
        %v2061 = vpack.c.b16 %v2043, %v2041
        %v2062 = vpack.c.b16 %v2046, %v2044
        %v2063 = vpack.c.b16 %v2047, %v2045
        %v2064 = vpack.c.b16 %v2050, %v2048
        %v2065 = vpack.c.b16 %v2051, %v2049
        %vm2080 = vcmask 916480
        %v2082 = vsel %vm2080, %v1990, 0
        %v2085 = vsel %vm2080, %v1998, 0
        %v2088 = vsel %vm2080, %v2006, 0
        %v2091 = vsel %vm2080, %v2009, 0
        %2093 = vmatprep.subr.bf16.mxu0 0
        %2094 = vmatpush1.bf16.msra.mxu0 0
        %2095 = vmatprep.subr.bf16.mxu0 %v2065
        %2096 = vmatpush1.bf16.msra.mxu0 %v2064
        %2097 = vmatprep.subr.bf16.mxu0 %v2063
        %2098 = vmatpush1.bf16.msra.mxu0 %v2062
        %2099 = vmatprep.subr.bf16.mxu0 %v2061
        %2100 = vmatpush1.bf16.msra.mxu0 %v2060
        %2101 = vmatprep.subr.bf16.mxu0 %v2059
        %2102 = vmatpush1.bf16.msra.mxu0 %v2058
        %2103 = vmatprep.subr.bf16.mxu0 %v2057
        %2104 = vmatpush1.bf16.msra.mxu0 %v2056
        %2105 = vmatprep.subr.bf16.mxu0 %v2055
        %2106 = vmatpush1.bf16.msra.mxu0 %v2054
        %2107 = vmatprep.subr.bf16.mxu0 %v2053
        %2108 = vmatpush1.bf16.msra.mxu0 %v2052
        %2109 = vmatprep.subr.bf16.mxu0 0
        %2110 = vmatpush2.bf16.msra.mxu0 0
        %2111 = vmatprep.subr.bf16.mxu0 0
        %2112 = vmatpush2.bf16.msra.mxu0 0
        %2113 = vmatprep.subr.bf16.mxu0 0
        %2114 = vmatpush2.bf16.msra.mxu0 0
        %2115 = vmatprep.subr.bf16.mxu0 0
        %2116 = vmatpush2.bf16.msra.mxu0 0
        %2117 = vmatprep.subr.bf16.mxu0 0
        %2118 = vmatpush2.bf16.msra.mxu0 0
        %2119 = vmatprep.subr.bf16.mxu0 0
        %2120 = vmatpush2.bf16.msra.mxu0 0
        %2121 = vmatprep.subr.bf16.mxu0 0
        %2122 = vmatpush2.bf16.msra.mxu0 0
        %2123 = vmatprep.subr.bf16.mxu0 0
        %2124 = vmatpush2.bf16.msra.mxu0 0
        %2125 = vmatprep.mubr.bf16.mxu0 0
        %2126 = vmatmul.mubr.bf16.gmra.mxu0 %v2082
        %v2127 = vpop.f32.mrf.mxu0
        %v2128 = vadd.f32 0.0, %v2127
        %v2129 = vpop.f32.mrf.mxu0
        %v2130 = vadd.f32 0.0, %v2129
        %v2131 = vpop.f32.mrf.mxu0
        %v2132 = vadd.f32 0.0, %v2131
        %v2133 = vpop.f32.mrf.mxu0
        %v2134 = vadd.f32 0.0, %v2133
        %2135 = vmatprep.mubr.bf16.mxu0 0
        %2136 = vmatmul.mubr.bf16.gmra.mxu0 %v2085
        %v2137 = vpop.f32.mrf.mxu0
        %v2138 = vadd.f32 0.0, %v2137
        %v2139 = vpop.f32.mrf.mxu0
        %v2140 = vadd.f32 0.0, %v2139
        %v2141 = vpop.f32.mrf.mxu0
        %v2142 = vadd.f32 0.0, %v2141
        %v2143 = vpop.f32.mrf.mxu0
        %v2144 = vadd.f32 0.0, %v2143
        %2145 = vmatprep.mubr.bf16.mxu0 0
        %2146 = vmatmul.mubr.bf16.gmra.mxu0 %v2088
        %v2147 = vpop.f32.mrf.mxu0
        %v2148 = vadd.f32 0.0, %v2147
        %v2149 = vpop.f32.mrf.mxu0
        %v2150 = vadd.f32 0.0, %v2149
        %v2151 = vpop.f32.mrf.mxu0
        %v2152 = vadd.f32 0.0, %v2151
        %v2153 = vpop.f32.mrf.mxu0
        %v2154 = vadd.f32 0.0, %v2153
        %2155 = vmatprep.mubr.bf16.mxu0 0
        %2156 = vmatmul.mubr.bf16.gmra.mxu0 %v2091
        %v2157 = vpop.f32.mrf.mxu0
        %v2158 = vadd.f32 0.0, %v2157
        %v2159 = vpop.f32.mrf.mxu0
        %v2160 = vadd.f32 0.0, %v2159
        %v2161 = vpop.f32.mrf.mxu0
        %v2162 = vadd.f32 0.0, %v2161
        %v2163 = vpop.f32.mrf.mxu0
        %v2164 = vadd.f32 0.0, %v2163
        %2165 = vdwg.mxu0
        %v2180 = vunpack.c.l.b16 %v1951
        %v2181 = vunpack.c.h.b16 %v1951
        %v2182 = vunpack.c.l.b16 %v1952
        %v2183 = vunpack.c.h.b16 %v1952
        %v2184 = vunpack.c.l.b16 %v1953
        %v2185 = vunpack.c.h.b16 %v1953
        %v2186 = vunpack.c.l.b16 %v1954
        %v2187 = vunpack.c.h.b16 %v1954
        %v2188 = vunpack.c.l.b16 %v1955
        %v2189 = vunpack.c.h.b16 %v1955
        %v2190 = vunpack.c.l.b16 %v1956
        %v2191 = vunpack.c.h.b16 %v1956
        %v2192 = vunpack.c.l.b16 %v1957
        %v2193 = vunpack.c.h.b16 %v1957
        %v2194 = vunpack.c.l.b16 %v1958
        %v2195 = vunpack.c.h.b16 %v1958
        %v2196 = vunpack.c.l.b16 %v1959
        %v2197 = vunpack.c.h.b16 %v1959
        %v2198 = vunpack.c.l.b16 %v1960
        %v2199 = vunpack.c.h.b16 %v1960
        %v2200 = vunpack.c.l.b16 %v1961
        %v2201 = vunpack.c.h.b16 %v1961
        %v2202 = vunpack.c.l.b16 %v1962
        %v2203 = vunpack.c.h.b16 %v1962
        %v2204 = vunpack.c.l.b16 %v1963
        %v2205 = vunpack.c.h.b16 %v1963
        %v2206 = vunpack.c.l.b16 %v1964
        %v2207 = vunpack.c.h.b16 %v1964
        %v2208 = vpack.c.b16 %v2182, %v2180
        %v2209 = vpack.c.b16 %v2183, %v2181
        %v2210 = vpack.c.b16 %v2186, %v2184
        %v2211 = vpack.c.b16 %v2187, %v2185
        %v2212 = vpack.c.b16 %v2190, %v2188
        %v2213 = vpack.c.b16 %v2191, %v2189
        %v2214 = vpack.c.b16 %v2194, %v2192
        %v2215 = vpack.c.b16 %v2195, %v2193
        %v2216 = vpack.c.b16 %v2198, %v2196
        %v2217 = vpack.c.b16 %v2199, %v2197
        %v2218 = vpack.c.b16 %v2202, %v2200
        %v2219 = vpack.c.b16 %v2203, %v2201
        %v2220 = vpack.c.b16 %v2206, %v2204
        %v2221 = vpack.c.b16 %v2207, %v2205
        %v2236 = vsel %vm2080, %v1947, 0
        %v2238 = vsel %vm2080, %v1948, 0
        %v2240 = vsel %vm2080, %v1949, 0
        %v2242 = vsel %vm2080, %v1950, 0
        %2244 = vmatprep.subr.bf16.mxu0 0
        %2245 = vmatpush1.bf16.msra.mxu0 0
        %2246 = vmatprep.subr.bf16.mxu0 %v2221
        %2247 = vmatpush1.bf16.msra.mxu0 %v2220
        %2248 = vmatprep.subr.bf16.mxu0 %v2219
        %2249 = vmatpush1.bf16.msra.mxu0 %v2218
        %2250 = vmatprep.subr.bf16.mxu0 %v2217
        %2251 = vmatpush1.bf16.msra.mxu0 %v2216
        %2252 = vmatprep.subr.bf16.mxu0 %v2215
        %2253 = vmatpush1.bf16.msra.mxu0 %v2214
        %2254 = vmatprep.subr.bf16.mxu0 %v2213
        %2255 = vmatpush1.bf16.msra.mxu0 %v2212
        %2256 = vmatprep.subr.bf16.mxu0 %v2211
        %2257 = vmatpush1.bf16.msra.mxu0 %v2210
        %2258 = vmatprep.subr.bf16.mxu0 %v2209
        %2259 = vmatpush1.bf16.msra.mxu0 %v2208
        %2260 = vmatprep.subr.bf16.mxu0 0
        %2261 = vmatpush2.bf16.msra.mxu0 0
        %2262 = vmatprep.subr.bf16.mxu0 0
        %2263 = vmatpush2.bf16.msra.mxu0 0
        %2264 = vmatprep.subr.bf16.mxu0 0
        %2265 = vmatpush2.bf16.msra.mxu0 0
        %2266 = vmatprep.subr.bf16.mxu0 0
        %2267 = vmatpush2.bf16.msra.mxu0 0
        %2268 = vmatprep.subr.bf16.mxu0 0
        %2269 = vmatpush2.bf16.msra.mxu0 0
        %2270 = vmatprep.subr.bf16.mxu0 0
        %2271 = vmatpush2.bf16.msra.mxu0 0
        %2272 = vmatprep.subr.bf16.mxu0 0
        %2273 = vmatpush2.bf16.msra.mxu0 0
        %2274 = vmatprep.subr.bf16.mxu0 0
        %2275 = vmatpush2.bf16.msra.mxu0 0
        %2276 = vmatprep.mubr.bf16.mxu0 0
        %2277 = vmatmul.mubr.bf16.gmra.mxu0 %v2236
        %v2278 = vpop.f32.mrf.mxu0
        %v2279 = vadd.f32 %v2128, %v2278
        %v2280 = vpop.f32.mrf.mxu0
        %v2281 = vadd.f32 %v2130, %v2280
        %v2282 = vpop.f32.mrf.mxu0
        %v2283 = vadd.f32 %v2132, %v2282
        %v2284 = vpop.f32.mrf.mxu0
        %v2285 = vadd.f32 %v2134, %v2284
        %2286 = vmatprep.mubr.bf16.mxu0 0
        %2287 = vmatmul.mubr.bf16.gmra.mxu0 %v2238
        %v2288 = vpop.f32.mrf.mxu0
        %v2289 = vadd.f32 %v2138, %v2288
        %v2290 = vpop.f32.mrf.mxu0
        %v2291 = vadd.f32 %v2140, %v2290
        %v2292 = vpop.f32.mrf.mxu0
        %v2293 = vadd.f32 %v2142, %v2292
        %v2294 = vpop.f32.mrf.mxu0
        %v2295 = vadd.f32 %v2144, %v2294
        %2296 = vmatprep.mubr.bf16.mxu0 0
        %2297 = vmatmul.mubr.bf16.gmra.mxu0 %v2240
        %v2298 = vpop.f32.mrf.mxu0
        %v2299 = vadd.f32 %v2148, %v2298
        %v2300 = vpop.f32.mrf.mxu0
        %v2301 = vadd.f32 %v2150, %v2300
        %v2302 = vpop.f32.mrf.mxu0
        %v2303 = vadd.f32 %v2152, %v2302
        %v2304 = vpop.f32.mrf.mxu0
        %v2305 = vadd.f32 %v2154, %v2304
        %2306 = vmatprep.mubr.bf16.mxu0 0
        %2307 = vmatmul.mubr.bf16.gmra.mxu0 %v2242
        %v2308 = vpop.f32.mrf.mxu0
        %v2309 = vadd.f32 %v2158, %v2308
        %v2310 = vpop.f32.mrf.mxu0
        %v2311 = vadd.f32 %v2160, %v2310
        %v2312 = vpop.f32.mrf.mxu0
        %v2313 = vadd.f32 %v2162, %v2312
        %v2314 = vpop.f32.mrf.mxu0
        %v2315 = vadd.f32 %v2164, %v2314
        %2316 = vdwg.mxu0
        %v2317 = vld [vmem:[%s11] sm:$0xff]
        %v2318 = vld [vmem:[%s11 + $0x8] sm:$0xff]
        %v2319 = vld [vmem:[%s11 + $0x10] sm:$0xff]
        %v2320 = vld [vmem:[%s11 + $0x18] sm:$0xff]
        %v2321 = vld [vmem:[%s11 + $0x20] sm:$0xff]
        %v2322 = vld [vmem:[%s11 + $0x28] sm:$0xff]
        %v2323 = vld [vmem:[%s11 + $0x30] sm:$0xff]
        %v2324 = vld [vmem:[%s11 + $0x38] sm:$0xff]
        %v2325 = vld [vmem:[%s11 + $0x40] sm:$0xff]
        %v2326 = vld [vmem:[%s11 + $0x48] sm:$0xff]
        %v2327 = vld [vmem:[%s11 + $0x50] sm:$0xff]
        %v2328 = vld [vmem:[%s11 + $0x58] sm:$0xff]
        %v2329 = vld [vmem:[%s11 + $0x60] sm:$0xff]
        %v2330 = vld [vmem:[%s11 + $0x68] sm:$0xff]
        %v2335 = vrot.slane %v1947, 1
        %v2336 = vrot.slane %v1948, 1
        %v2337 = vsel %vm1021, %v2335, %v2336
        %v2338 = vrot.slane %v1949, 1
        %v2339 = vsel %vm1021, %v2336, %v2338
        %v2340 = vrot.slane %v1950, 1
        %v2341 = vsel %vm1021, %v2338, %v2340
        %v2356 = vunpack.c.l.b16 %v2317
        %v2357 = vunpack.c.h.b16 %v2317
        %v2358 = vunpack.c.l.b16 %v2318
        %v2359 = vunpack.c.h.b16 %v2318
        %v2360 = vunpack.c.l.b16 %v2319
        %v2361 = vunpack.c.h.b16 %v2319
        %v2362 = vunpack.c.l.b16 %v2320
        %v2363 = vunpack.c.h.b16 %v2320
        %v2364 = vunpack.c.l.b16 %v2321
        %v2365 = vunpack.c.h.b16 %v2321
        %v2366 = vunpack.c.l.b16 %v2322
        %v2367 = vunpack.c.h.b16 %v2322
        %v2368 = vunpack.c.l.b16 %v2323
        %v2369 = vunpack.c.h.b16 %v2323
        %v2370 = vunpack.c.l.b16 %v2324
        %v2371 = vunpack.c.h.b16 %v2324
        %v2372 = vunpack.c.l.b16 %v2325
        %v2373 = vunpack.c.h.b16 %v2325
        %v2374 = vunpack.c.l.b16 %v2326
        %v2375 = vunpack.c.h.b16 %v2326
        %v2376 = vunpack.c.l.b16 %v2327
        %v2377 = vunpack.c.h.b16 %v2327
        %v2378 = vunpack.c.l.b16 %v2328
        %v2379 = vunpack.c.h.b16 %v2328
        %v2380 = vunpack.c.l.b16 %v2329
        %v2381 = vunpack.c.h.b16 %v2329
        %v2382 = vunpack.c.l.b16 %v2330
        %v2383 = vunpack.c.h.b16 %v2330
        %v2384 = vpack.c.b16 %v2358, %v2356
        %v2385 = vpack.c.b16 %v2359, %v2357
        %v2386 = vpack.c.b16 %v2362, %v2360
        %v2387 = vpack.c.b16 %v2363, %v2361
        %v2388 = vpack.c.b16 %v2366, %v2364
        %v2389 = vpack.c.b16 %v2367, %v2365
        %v2390 = vpack.c.b16 %v2370, %v2368
        %v2391 = vpack.c.b16 %v2371, %v2369
        %v2392 = vpack.c.b16 %v2374, %v2372
        %v2393 = vpack.c.b16 %v2375, %v2373
        %v2394 = vpack.c.b16 %v2378, %v2376
        %v2395 = vpack.c.b16 %v2379, %v2377
        %v2396 = vpack.c.b16 %v2382, %v2380
        %v2397 = vpack.c.b16 %v2383, %v2381
        %v2413 = vsel %vm2080, %v2337, 0
        %v2416 = vsel %vm2080, %v2339, 0
        %v2419 = vsel %vm2080, %v2341, 0
        %v2422 = vsel %vm2080, %v2340, 0
        %2424 = vmatprep.subr.bf16.mxu0 0
        %2425 = vmatpush1.bf16.msra.mxu0 0
        %2426 = vmatprep.subr.bf16.mxu0 %v2397
        %2427 = vmatpush1.bf16.msra.mxu0 %v2396
        %2428 = vmatprep.subr.bf16.mxu0 %v2395
        %2429 = vmatpush1.bf16.msra.mxu0 %v2394
        %2430 = vmatprep.subr.bf16.mxu0 %v2393
        %2431 = vmatpush1.bf16.msra.mxu0 %v2392
        %2432 = vmatprep.subr.bf16.mxu0 %v2391
        %2433 = vmatpush1.bf16.msra.mxu0 %v2390
        %2434 = vmatprep.subr.bf16.mxu0 %v2389
        %2435 = vmatpush1.bf16.msra.mxu0 %v2388
        %2436 = vmatprep.subr.bf16.mxu0 %v2387
        %2437 = vmatpush1.bf16.msra.mxu0 %v2386
        %2438 = vmatprep.subr.bf16.mxu0 %v2385
        %2439 = vmatpush1.bf16.msra.mxu0 %v2384
        %2440 = vmatprep.subr.bf16.mxu0 0
        %2441 = vmatpush2.bf16.msra.mxu0 0
        %2442 = vmatprep.subr.bf16.mxu0 0
        %2443 = vmatpush2.bf16.msra.mxu0 0
        %2444 = vmatprep.subr.bf16.mxu0 0
        %2445 = vmatpush2.bf16.msra.mxu0 0
        %2446 = vmatprep.subr.bf16.mxu0 0
        %2447 = vmatpush2.bf16.msra.mxu0 0
        %2448 = vmatprep.subr.bf16.mxu0 0
        %2449 = vmatpush2.bf16.msra.mxu0 0
        %2450 = vmatprep.subr.bf16.mxu0 0
        %2451 = vmatpush2.bf16.msra.mxu0 0
        %2452 = vmatprep.subr.bf16.mxu0 0
        %2453 = vmatpush2.bf16.msra.mxu0 0
        %2454 = vmatprep.subr.bf16.mxu0 0
        %2455 = vmatpush2.bf16.msra.mxu0 0
        %2456 = vmatprep.mubr.bf16.mxu0 0
        %2457 = vmatmul.mubr.bf16.gmra.mxu0 %v2413
        %v2458 = vpop.f32.mrf.mxu0
        %v2459 = vadd.f32 0.0, %v2458
        %v2460 = vpop.f32.mrf.mxu0
        %v2461 = vadd.f32 0.0, %v2460
        %v2462 = vpop.f32.mrf.mxu0
        %v2463 = vadd.f32 0.0, %v2462
        %v2464 = vpop.f32.mrf.mxu0
        %v2465 = vadd.f32 0.0, %v2464
        %2466 = vmatprep.mubr.bf16.mxu0 0
        %2467 = vmatmul.mubr.bf16.gmra.mxu0 %v2416
        %v2468 = vpop.f32.mrf.mxu0
        %v2469 = vadd.f32 0.0, %v2468
        %v2470 = vpop.f32.mrf.mxu0
        %v2471 = vadd.f32 0.0, %v2470
        %v2472 = vpop.f32.mrf.mxu0
        %v2473 = vadd.f32 0.0, %v2472
        %v2474 = vpop.f32.mrf.mxu0
        %v2475 = vadd.f32 0.0, %v2474
        %2476 = vmatprep.mubr.bf16.mxu0 0
        %2477 = vmatmul.mubr.bf16.gmra.mxu0 %v2419
        %v2478 = vpop.f32.mrf.mxu0
        %v2479 = vadd.f32 0.0, %v2478
        %v2480 = vpop.f32.mrf.mxu0
        %v2481 = vadd.f32 0.0, %v2480
        %v2482 = vpop.f32.mrf.mxu0
        %v2483 = vadd.f32 0.0, %v2482
        %v2484 = vpop.f32.mrf.mxu0
        %v2485 = vadd.f32 0.0, %v2484
        %2486 = vmatprep.mubr.bf16.mxu0 0
        %2487 = vmatmul.mubr.bf16.gmra.mxu0 %v2422
        %v2488 = vpop.f32.mrf.mxu0
        %v2489 = vadd.f32 0.0, %v2488
        %v2490 = vpop.f32.mrf.mxu0
        %v2491 = vadd.f32 0.0, %v2490
        %v2492 = vpop.f32.mrf.mxu0
        %v2493 = vadd.f32 0.0, %v2492
        %v2494 = vpop.f32.mrf.mxu0
        %v2495 = vadd.f32 0.0, %v2494
        %2496 = vdwg.mxu0
        %v2497 = vadd.f32 %v2279, %v2459
        %v2498 = vadd.f32 %v2281, %v2461
        %v2499 = vadd.f32 %v2283, %v2463
        %v2500 = vadd.f32 %v2285, %v2465
        %v2501 = vadd.f32 %v2289, %v2469
        %v2502 = vadd.f32 %v2291, %v2471
        %v2503 = vadd.f32 %v2293, %v2473
        %v2504 = vadd.f32 %v2295, %v2475
        %v2505 = vadd.f32 %v2299, %v2479
        %v2506 = vadd.f32 %v2301, %v2481
        %v2507 = vadd.f32 %v2303, %v2483
        %v2508 = vadd.f32 %v2305, %v2485
        %v2509 = vadd.f32 %v2309, %v2489
        %v2510 = vadd.f32 %v2311, %v2491
        %v2511 = vadd.f32 %v2313, %v2493
        %v2512 = vadd.f32 %v2315, %v2495
        %v2513 = vld [vmem:[%s12] sm:$0x3]
        %v2515 = vlaneseq
        %v2516 = vshrl.u32 %v2515, 7
        %v2517 = vsub.s32 0, %v2516
        %v2518 = vrot.slane %v2513, %v2517
        %v2519 = vlaneseq
        %v2520 = vshrl.u32 %v2519, 7
        %v2521 = vsub.s32 1, %v2520
        %v2522 = vrot.slane %v2513, %v2521
        %v2525 = vadd.f32 %v2497, %v2518
        %v2526 = vadd.f32 %v2498, %v2522
        %v2527 = vadd.f32 %v2499, %v2518
        %v2528 = vadd.f32 %v2500, %v2522
        %v2529 = vadd.f32 %v2501, %v2518
        %v2530 = vadd.f32 %v2502, %v2522
        %v2531 = vadd.f32 %v2503, %v2518
        %v2532 = vadd.f32 %v2504, %v2522
        %v2533 = vadd.f32 %v2505, %v2518
        %v2534 = vadd.f32 %v2506, %v2522
        %v2535 = vadd.f32 %v2507, %v2518
        %v2536 = vadd.f32 %v2508, %v2522
        %v2537 = vadd.f32 %v2509, %v2518
        %v2538 = vadd.f32 %v2510, %v2522
        %v2539 = vadd.f32 %v2511, %v2518
        %v2540 = vadd.f32 %v2512, %v2522
        %v2541 = vmax.f32 %v2525, 0.0
        %v2542 = vmax.f32 %v2526, 0.0
        %v2543 = vmax.f32 %v2527, 0.0
        %v2544 = vmax.f32 %v2528, 0.0
        %v2545 = vmax.f32 %v2529, 0.0
        %v2546 = vmax.f32 %v2530, 0.0
        %v2547 = vmax.f32 %v2531, 0.0
        %v2548 = vmax.f32 %v2532, 0.0
        %v2549 = vmax.f32 %v2533, 0.0
        %v2550 = vmax.f32 %v2534, 0.0
        %v2551 = vmax.f32 %v2535, 0.0
        %v2552 = vmax.f32 %v2536, 0.0
        %v2553 = vmax.f32 %v2537, 0.0
        %v2554 = vmax.f32 %v2538, 0.0
        %v2555 = vmax.f32 %v2539, 0.0
        %v2556 = vmax.f32 %v2540, 0.0
        %v2557 = vpack.c.bf16 %v2543, %v2541
        %v2558 = vpack.c.bf16 %v2544, %v2542
        %v2559 = vpack.c.bf16 %v2547, %v2545
        %v2560 = vpack.c.bf16 %v2548, %v2546
        %v2561 = vpack.c.bf16 %v2551, %v2549
        %v2562 = vpack.c.bf16 %v2552, %v2550
        %v2563 = vpack.c.bf16 %v2555, %v2553
        %v2564 = vpack.c.bf16 %v2556, %v2554
        %v2565 = vld [vmem:[%s13] sm:$0xf]
        %v2566 = vld [vmem:[%s13 + $0x4] sm:$0xf]
        %v2567 = vld [vmem:[%s13 + $0x8] sm:$0xf]
        %v2568 = vld [vmem:[%s13 + $0xc] sm:$0x3]
        %v2573 = vunpack.c.l.b16 %v2565
        %v2574 = vunpack.c.l.b16 %v2566
        %v2575 = vunpack.c.l.b16 %v2567
        %v2576 = vunpack.c.l.b16 %v2568
        %v2577 = vpack.c.b16 %v2574, %v2573
        %v2578 = vpack.c.b16 %v2576, %v2575
        %vm2579 = vcmask 506880
        %v2581 = vsel %vm2579, %v2577, 0
        %v2584 = vsel %vm2579, %v2578, 0
        %vm2586 = vcmask 1046528
        %v2588 = vsel %vm2586, %v2563, 0
        %v2591 = vsel %vm2586, %v2564, 0
        %2593 = vmatprep.subr.bf16.mxu0 0
        %2594 = vmatpush1.bf16.msra.mxu0 0
        %2595 = vmatprep.subr.bf16.mxu0 0
        %2596 = vmatpush1.bf16.msra.mxu0 0
        %2597 = vmatprep.subr.bf16.mxu0 0
        %2598 = vmatpush1.bf16.msra.mxu0 0
        %2599 = vmatprep.subr.bf16.mxu0 0
        %2600 = vmatpush1.bf16.msra.mxu0 0
        %2601 = vmatprep.subr.bf16.mxu0 %v2591
        %2602 = vmatpush1.bf16.msra.mxu0 %v2588
        %2603 = vmatprep.subr.bf16.mxu0 %v2562
        %2604 = vmatpush1.bf16.msra.mxu0 %v2561
        %2605 = vmatprep.subr.bf16.mxu0 %v2560
        %2606 = vmatpush1.bf16.msra.mxu0 %v2559
        %2607 = vmatprep.subr.bf16.mxu0 %v2558
        %2608 = vmatpush1.bf16.msra.mxu0 %v2557
        %2609 = vmatprep.subr.bf16.mxu0 0
        %2610 = vmatpush2.bf16.msra.mxu0 0
        %2611 = vmatprep.subr.bf16.mxu0 0
        %2612 = vmatpush2.bf16.msra.mxu0 0
        %2613 = vmatprep.subr.bf16.mxu0 0
        %2614 = vmatpush2.bf16.msra.mxu0 0
        %2615 = vmatprep.subr.bf16.mxu0 0
        %2616 = vmatpush2.bf16.msra.mxu0 0
        %2617 = vmatprep.subr.bf16.mxu0 0
        %2618 = vmatpush2.bf16.msra.mxu0 0
        %2619 = vmatprep.subr.bf16.mxu0 0
        %2620 = vmatpush2.bf16.msra.mxu0 0
        %2621 = vmatprep.subr.bf16.mxu0 0
        %2622 = vmatpush2.bf16.msra.mxu0 0
        %2623 = vmatprep.subr.bf16.mxu0 0
        %2624 = vmatpush2.bf16.msra.mxu0 0
        %2625 = vmatprep.mubr.bf16.mxu0 0
        %2626 = vmatmul.mubr.bf16.gmra.mxu0 %v2581
        %v2627 = vpop.f32.mrf.mxu0
        %v2628 = vadd.f32 0.0, %v2627
        %v2629 = vpop.f32.mrf.mxu0
        %v2630 = vadd.f32 0.0, %v2629
        %v2631 = vpop.f32.mrf.mxu0
        %v2632 = vadd.f32 0.0, %v2631
        %v2633 = vpop.f32.mrf.mxu0
        %v2634 = vadd.f32 0.0, %v2633
        %2635 = vmatprep.mubr.bf16.mxu0 0
        %2636 = vmatmul.mubr.bf16.gmra.mxu0 %v2584
        %v2637 = vpop.f32.mrf.mxu0
        %v2638 = vadd.f32 0.0, %v2637
        %v2639 = vpop.f32.mrf.mxu0
        %v2640 = vadd.f32 0.0, %v2639
        %v2641 = vpop.f32.mrf.mxu0
        %v2642 = vadd.f32 0.0, %v2641
        %v2643 = vpop.f32.mrf.mxu0
        %v2644 = vadd.f32 0.0, %v2643
        %2645 = vdwg.mxu0
        %v2646 = vld [vmem:[%s14] sm:$0xf]
        %v2647 = vld [vmem:[%s14 + $0x4] sm:$0xf]
        %v2648 = vld [vmem:[%s14 + $0x8] sm:$0xf]
        %v2649 = vld [vmem:[%s14 + $0xc] sm:$0x3]
        %v2654 = vunpack.c.l.b16 %v2646
        %v2655 = vunpack.c.l.b16 %v2647
        %v2656 = vunpack.c.l.b16 %v2648
        %v2657 = vunpack.c.l.b16 %v2649
        %v2658 = vpack.c.b16 %v2655, %v2654
        %v2659 = vpack.c.b16 %v2657, %v2656
        %v2661 = vsel %vm2579, %v2658, 0
        %v2664 = vsel %vm2579, %v2659, 0
        %2666 = vmatprep.subr.bf16.mxu0 0
        %2667 = vmatpush1.bf16.msra.mxu0 0
        %2668 = vmatprep.subr.bf16.mxu0 0
        %2669 = vmatpush1.bf16.msra.mxu0 0
        %2670 = vmatprep.subr.bf16.mxu0 0
        %2671 = vmatpush1.bf16.msra.mxu0 0
        %2672 = vmatprep.subr.bf16.mxu0 0
        %2673 = vmatpush1.bf16.msra.mxu0 0
        %2674 = vmatprep.subr.bf16.mxu0 %v2591
        %2675 = vmatpush1.bf16.msra.mxu0 %v2588
        %2676 = vmatprep.subr.bf16.mxu0 %v2562
        %2677 = vmatpush1.bf16.msra.mxu0 %v2561
        %2678 = vmatprep.subr.bf16.mxu0 %v2560
        %2679 = vmatpush1.bf16.msra.mxu0 %v2559
        %2680 = vmatprep.subr.bf16.mxu0 %v2558
        %2681 = vmatpush1.bf16.msra.mxu0 %v2557
        %2682 = vmatprep.subr.bf16.mxu0 0
        %2683 = vmatpush2.bf16.msra.mxu0 0
        %2684 = vmatprep.subr.bf16.mxu0 0
        %2685 = vmatpush2.bf16.msra.mxu0 0
        %2686 = vmatprep.subr.bf16.mxu0 0
        %2687 = vmatpush2.bf16.msra.mxu0 0
        %2688 = vmatprep.subr.bf16.mxu0 0
        %2689 = vmatpush2.bf16.msra.mxu0 0
        %2690 = vmatprep.subr.bf16.mxu0 0
        %2691 = vmatpush2.bf16.msra.mxu0 0
        %2692 = vmatprep.subr.bf16.mxu0 0
        %2693 = vmatpush2.bf16.msra.mxu0 0
        %2694 = vmatprep.subr.bf16.mxu0 0
        %2695 = vmatpush2.bf16.msra.mxu0 0
        %2696 = vmatprep.subr.bf16.mxu0 0
        %2697 = vmatpush2.bf16.msra.mxu0 0
        %2698 = vmatprep.mubr.bf16.mxu0 0
        %2699 = vmatmul.mubr.bf16.gmra.mxu0 %v2661
        %v2700 = vpop.f32.mrf.mxu0
        %v2701 = vadd.f32 0.0, %v2700
        %v2702 = vpop.f32.mrf.mxu0
        %v2703 = vadd.f32 0.0, %v2702
        %v2704 = vpop.f32.mrf.mxu0
        %v2705 = vadd.f32 0.0, %v2704
        %v2706 = vpop.f32.mrf.mxu0
        %v2707 = vadd.f32 0.0, %v2706
        %2708 = vmatprep.mubr.bf16.mxu0 0
        %2709 = vmatmul.mubr.bf16.gmra.mxu0 %v2664
        %v2710 = vpop.f32.mrf.mxu0
        %v2711 = vadd.f32 0.0, %v2710
        %v2712 = vpop.f32.mrf.mxu0
        %v2713 = vadd.f32 0.0, %v2712
        %v2714 = vpop.f32.mrf.mxu0
        %v2715 = vadd.f32 0.0, %v2714
        %v2716 = vpop.f32.mrf.mxu0
        %v2717 = vadd.f32 0.0, %v2716
        %2718 = vdwg.mxu0
        %v2719 = vmax.f32 %v2628, %v2701
        %v2720 = vmax.f32 %v2630, %v2703
        %v2721 = vmax.f32 %v2632, %v2705
        %v2722 = vmax.f32 %v2634, %v2707
        %v2723 = vmax.f32 %v2638, %v2711
        %v2724 = vmax.f32 %v2640, %v2713
        %v2725 = vmax.f32 %v2642, %v2715
        %v2726 = vmax.f32 %v2644, %v2717
        %v2727 = vpack.c.bf16 %v2721, %v2719
        %v2728 = vpack.c.bf16 %v2722, %v2720
        %v2729 = vpack.c.bf16 %v2725, %v2723
        %v2730 = vpack.c.bf16 %v2726, %v2724
        %v2731 = vld [vmem:[%s15] sm:$0xf]
        %v2732 = vld [vmem:[%s15 + $0x4] sm:$0xf]
        %v2733 = vld [vmem:[%s15 + $0x8] sm:$0xf]
        %v2734 = vld [vmem:[%s15 + $0xc] sm:$0xf]
        %v2735 = vld [vmem:[%s15 + $0x10] sm:$0xf]
        %v2736 = vld [vmem:[%s15 + $0x14] sm:$0xf]
        %v2737 = vld [vmem:[%s15 + $0x18] sm:$0xf]
        %v2738 = vld [vmem:[%s15 + $0x1c] sm:$0xf]
        %v2739 = vld [vmem:[%s15 + $0x20] sm:$0xf]
        %v2740 = vld [vmem:[%s15 + $0x24] sm:$0xf]
        %v2741 = vld [vmem:[%s15 + $0x28] sm:$0xf]
        %v2742 = vld [vmem:[%s15 + $0x2c] sm:$0xf]
        %v2743 = vld [vmem:[%s15 + $0x30] sm:$0xf]
        %v2744 = vld [vmem:[%s15 + $0x34] sm:$0xf]
        %v2745 = vld [vmem:[%s15 + $0x38] sm:$0xf]
        %v2746 = vld [vmem:[%s15 + $0x3c] sm:$0xf]
        %v2747 = vld [vmem:[%s15 + $0x40] sm:$0xf]
        %v2748 = vld [vmem:[%s15 + $0x44] sm:$0xf]
        %v2749 = vld [vmem:[%s15 + $0x48] sm:$0xf]
        %v2750 = vld [vmem:[%s15 + $0x4c] sm:$0xf]
        %v2751 = vld [vmem:[%s15 + $0x50] sm:$0xf]
        %v2752 = vld [vmem:[%s15 + $0x54] sm:$0xf]
        %v2753 = vld [vmem:[%s15 + $0x58] sm:$0xf]
        %v2754 = vld [vmem:[%s15 + $0x5c] sm:$0xf]
        %v2755 = vld [vmem:[%s15 + $0x60] sm:$0xf]
        %v2756 = vld [vmem:[%s15 + $0x64] sm:$0xf]
        %v2757 = vld [vmem:[%s15 + $0x68] sm:$0xf]
        %v2758 = vld [vmem:[%s15 + $0x6c] sm:$0xf]
        %v2787 = vunpack.c.l.b16 %v2731
        %v2788 = vunpack.c.l.b16 %v2732
        %v2789 = vunpack.c.l.b16 %v2733
        %v2790 = vunpack.c.l.b16 %v2734
        %v2791 = vunpack.c.l.b16 %v2735
        %v2792 = vunpack.c.l.b16 %v2736
        %v2793 = vunpack.c.l.b16 %v2737
        %v2794 = vunpack.c.l.b16 %v2738
        %v2795 = vunpack.c.l.b16 %v2739
        %v2796 = vunpack.c.l.b16 %v2740
        %v2797 = vunpack.c.l.b16 %v2741
        %v2798 = vunpack.c.l.b16 %v2742
        %v2799 = vunpack.c.l.b16 %v2743
        %v2800 = vunpack.c.l.b16 %v2744
        %v2801 = vunpack.c.l.b16 %v2745
        %v2802 = vunpack.c.l.b16 %v2746
        %v2803 = vunpack.c.l.b16 %v2747
        %v2804 = vunpack.c.l.b16 %v2748
        %v2805 = vunpack.c.l.b16 %v2749
        %v2806 = vunpack.c.l.b16 %v2750
        %v2807 = vunpack.c.l.b16 %v2751
        %v2808 = vunpack.c.l.b16 %v2752
        %v2809 = vunpack.c.l.b16 %v2753
        %v2810 = vunpack.c.l.b16 %v2754
        %v2811 = vunpack.c.l.b16 %v2755
        %v2812 = vunpack.c.l.b16 %v2756
        %v2813 = vunpack.c.l.b16 %v2757
        %v2814 = vunpack.c.l.b16 %v2758
        %v2815 = vpack.c.b16 %v2788, %v2787
        %v2816 = vpack.c.b16 %v2790, %v2789
        %v2817 = vpack.c.b16 %v2792, %v2791
        %v2818 = vpack.c.b16 %v2794, %v2793
        %v2819 = vpack.c.b16 %v2796, %v2795
        %v2820 = vpack.c.b16 %v2798, %v2797
        %v2821 = vpack.c.b16 %v2800, %v2799
        %v2822 = vpack.c.b16 %v2802, %v2801
        %v2823 = vpack.c.b16 %v2804, %v2803
        %v2824 = vpack.c.b16 %v2806, %v2805
        %v2825 = vpack.c.b16 %v2808, %v2807
        %v2826 = vpack.c.b16 %v2810, %v2809
        %v2827 = vpack.c.b16 %v2812, %v2811
        %v2828 = vpack.c.b16 %v2814, %v2813
        %v2844 = vsel %vm1684, %v2728, 0
        %v2847 = vsel %vm1684, %v2730, 0
        %2849 = vmatprep.subr.bf16.mxu0 0
        %2850 = vmatpush1.bf16.msra.mxu0 %v2822
        %2851 = vmatprep.subr.bf16.mxu0 0
        %2852 = vmatpush1.bf16.msra.mxu0 %v2821
        %2853 = vmatprep.subr.bf16.mxu0 0
        %2854 = vmatpush1.bf16.msra.mxu0 %v2820
        %2855 = vmatprep.subr.bf16.mxu0 0
        %2856 = vmatpush1.bf16.msra.mxu0 %v2819
        %2857 = vmatprep.subr.bf16.mxu0 0
        %2858 = vmatpush1.bf16.msra.mxu0 %v2818
        %2859 = vmatprep.subr.bf16.mxu0 0
        %2860 = vmatpush1.bf16.msra.mxu0 %v2817
        %2861 = vmatprep.subr.bf16.mxu0 0
        %2862 = vmatpush1.bf16.msra.mxu0 %v2816
        %2863 = vmatprep.subr.bf16.mxu0 0
        %2864 = vmatpush1.bf16.msra.mxu0 %v2815
        %2865 = vmatprep.subr.bf16.mxu0 0
        %2866 = vmatpush2.bf16.msra.mxu0 0
        %2867 = vmatprep.subr.bf16.mxu0 0
        %2868 = vmatpush2.bf16.msra.mxu0 0
        %2869 = vmatprep.subr.bf16.mxu0 0
        %2870 = vmatpush2.bf16.msra.mxu0 %v2828
        %2871 = vmatprep.subr.bf16.mxu0 0
        %2872 = vmatpush2.bf16.msra.mxu0 %v2827
        %2873 = vmatprep.subr.bf16.mxu0 0
        %2874 = vmatpush2.bf16.msra.mxu0 %v2826
        %2875 = vmatprep.subr.bf16.mxu0 0
        %2876 = vmatpush2.bf16.msra.mxu0 %v2825
        %2877 = vmatprep.subr.bf16.mxu0 0
        %2878 = vmatpush2.bf16.msra.mxu0 %v2824
        %2879 = vmatprep.subr.bf16.mxu0 0
        %2880 = vmatpush2.bf16.msra.mxu0 %v2823
        %2881 = vmatprep.mubr.bf16.mxu0 %v2844
        %2882 = vmatmul.mubr.bf16.gmra.mxu0 %v2727
        %v2883 = vpop.f32.mrf.mxu0
        %v2884 = vadd.f32 0.0, %v2883
        %v2885 = vpop.f32.mrf.mxu0
        %v2886 = vpop.f32.mrf.mxu0
        %v2887 = vadd.f32 0.0, %v2886
        %v2888 = vpop.f32.mrf.mxu0
        %2889 = vmatprep.mubr.bf16.mxu0 %v2847
        %2890 = vmatmul.mubr.bf16.gmra.mxu0 %v2729
        %v2891 = vpop.f32.mrf.mxu0
        %v2892 = vadd.f32 0.0, %v2891
        %v2893 = vpop.f32.mrf.mxu0
        %v2894 = vpop.f32.mrf.mxu0
        %v2895 = vadd.f32 0.0, %v2894
        %v2896 = vpop.f32.mrf.mxu0
        %2897 = vdwg.mxu0
        %v2898 = vld [vmem:[%s16] sm:$0xf]
        %v2899 = vld [vmem:[%s16 + $0x4] sm:$0xf]
        %v2900 = vld [vmem:[%s16 + $0x8] sm:$0xf]
        %v2901 = vld [vmem:[%s16 + $0xc] sm:$0xf]
        %v2902 = vld [vmem:[%s16 + $0x10] sm:$0xf]
        %v2903 = vld [vmem:[%s16 + $0x14] sm:$0xf]
        %v2904 = vld [vmem:[%s16 + $0x18] sm:$0xf]
        %v2905 = vld [vmem:[%s16 + $0x1c] sm:$0xf]
        %v2906 = vld [vmem:[%s16 + $0x20] sm:$0xf]
        %v2907 = vld [vmem:[%s16 + $0x24] sm:$0xf]
        %v2908 = vld [vmem:[%s16 + $0x28] sm:$0xf]
        %v2909 = vld [vmem:[%s16 + $0x2c] sm:$0xf]
        %v2910 = vld [vmem:[%s16 + $0x30] sm:$0xf]
        %v2911 = vld [vmem:[%s16 + $0x34] sm:$0xf]
        %v2912 = vld [vmem:[%s16 + $0x38] sm:$0xf]
        %v2913 = vld [vmem:[%s16 + $0x3c] sm:$0xf]
        %v2914 = vld [vmem:[%s16 + $0x40] sm:$0xf]
        %v2915 = vld [vmem:[%s16 + $0x44] sm:$0xf]
        %v2916 = vld [vmem:[%s16 + $0x48] sm:$0xf]
        %v2917 = vld [vmem:[%s16 + $0x4c] sm:$0xf]
        %v2918 = vld [vmem:[%s16 + $0x50] sm:$0xf]
        %v2919 = vld [vmem:[%s16 + $0x54] sm:$0xf]
        %v2920 = vld [vmem:[%s16 + $0x58] sm:$0xf]
        %v2921 = vld [vmem:[%s16 + $0x5c] sm:$0xf]
        %v2922 = vld [vmem:[%s16 + $0x60] sm:$0xf]
        %v2923 = vld [vmem:[%s16 + $0x64] sm:$0xf]
        %v2924 = vld [vmem:[%s16 + $0x68] sm:$0xf]
        %v2925 = vld [vmem:[%s16 + $0x6c] sm:$0xf]
        %v2954 = vunpack.c.l.b16 %v2898
        %v2955 = vunpack.c.l.b16 %v2899
        %v2956 = vunpack.c.l.b16 %v2900
        %v2957 = vunpack.c.l.b16 %v2901
        %v2958 = vunpack.c.l.b16 %v2902
        %v2959 = vunpack.c.l.b16 %v2903
        %v2960 = vunpack.c.l.b16 %v2904
        %v2961 = vunpack.c.l.b16 %v2905
        %v2962 = vunpack.c.l.b16 %v2906
        %v2963 = vunpack.c.l.b16 %v2907
        %v2964 = vunpack.c.l.b16 %v2908
        %v2965 = vunpack.c.l.b16 %v2909
        %v2966 = vunpack.c.l.b16 %v2910
        %v2967 = vunpack.c.l.b16 %v2911
        %v2968 = vunpack.c.l.b16 %v2912
        %v2969 = vunpack.c.l.b16 %v2913
        %v2970 = vunpack.c.l.b16 %v2914
        %v2971 = vunpack.c.l.b16 %v2915
        %v2972 = vunpack.c.l.b16 %v2916
        %v2973 = vunpack.c.l.b16 %v2917
        %v2974 = vunpack.c.l.b16 %v2918
        %v2975 = vunpack.c.l.b16 %v2919
        %v2976 = vunpack.c.l.b16 %v2920
        %v2977 = vunpack.c.l.b16 %v2921
        %v2978 = vunpack.c.l.b16 %v2922
        %v2979 = vunpack.c.l.b16 %v2923
        %v2980 = vunpack.c.l.b16 %v2924
        %v2981 = vunpack.c.l.b16 %v2925
        %v2982 = vpack.c.b16 %v2955, %v2954
        %v2983 = vpack.c.b16 %v2957, %v2956
        %v2984 = vpack.c.b16 %v2959, %v2958
        %v2985 = vpack.c.b16 %v2961, %v2960
        %v2986 = vpack.c.b16 %v2963, %v2962
        %v2987 = vpack.c.b16 %v2965, %v2964
        %v2988 = vpack.c.b16 %v2967, %v2966
        %v2989 = vpack.c.b16 %v2969, %v2968
        %v2990 = vpack.c.b16 %v2971, %v2970
        %v2991 = vpack.c.b16 %v2973, %v2972
        %v2992 = vpack.c.b16 %v2975, %v2974
        %v2993 = vpack.c.b16 %v2977, %v2976
        %v2994 = vpack.c.b16 %v2979, %v2978
        %v2995 = vpack.c.b16 %v2981, %v2980
        %3010 = vmatprep.subr.bf16.mxu0 0
        %3011 = vmatpush1.bf16.msra.mxu0 %v2989
        %3012 = vmatprep.subr.bf16.mxu0 0
        %3013 = vmatpush1.bf16.msra.mxu0 %v2988
        %3014 = vmatprep.subr.bf16.mxu0 0
        %3015 = vmatpush1.bf16.msra.mxu0 %v2987
        %3016 = vmatprep.subr.bf16.mxu0 0
        %3017 = vmatpush1.bf16.msra.mxu0 %v2986
        %3018 = vmatprep.subr.bf16.mxu0 0
        %3019 = vmatpush1.bf16.msra.mxu0 %v2985
        %3020 = vmatprep.subr.bf16.mxu0 0
        %3021 = vmatpush1.bf16.msra.mxu0 %v2984
        %3022 = vmatprep.subr.bf16.mxu0 0
        %3023 = vmatpush1.bf16.msra.mxu0 %v2983
        %3024 = vmatprep.subr.bf16.mxu0 0
        %3025 = vmatpush1.bf16.msra.mxu0 %v2982
        %3026 = vmatprep.subr.bf16.mxu0 0
        %3027 = vmatpush2.bf16.msra.mxu0 0
        %3028 = vmatprep.subr.bf16.mxu0 0
        %3029 = vmatpush2.bf16.msra.mxu0 0
        %3030 = vmatprep.subr.bf16.mxu0 0
        %3031 = vmatpush2.bf16.msra.mxu0 %v2995
        %3032 = vmatprep.subr.bf16.mxu0 0
        %3033 = vmatpush2.bf16.msra.mxu0 %v2994
        %3034 = vmatprep.subr.bf16.mxu0 0
        %3035 = vmatpush2.bf16.msra.mxu0 %v2993
        %3036 = vmatprep.subr.bf16.mxu0 0
        %3037 = vmatpush2.bf16.msra.mxu0 %v2992
        %3038 = vmatprep.subr.bf16.mxu0 0
        %3039 = vmatpush2.bf16.msra.mxu0 %v2991
        %3040 = vmatprep.subr.bf16.mxu0 0
        %3041 = vmatpush2.bf16.msra.mxu0 %v2990
        %3042 = vmatprep.mubr.bf16.mxu0 %v2844
        %3043 = vmatmul.mubr.bf16.gmra.mxu0 %v2727
        %v3044 = vpop.f32.mrf.mxu0
        %v3045 = vadd.f32 0.0, %v3044
        %v3046 = vpop.f32.mrf.mxu0
        %v3047 = vpop.f32.mrf.mxu0
        %v3048 = vadd.f32 0.0, %v3047
        %v3049 = vpop.f32.mrf.mxu0
        %3050 = vmatprep.mubr.bf16.mxu0 %v2847
        %3051 = vmatmul.mubr.bf16.gmra.mxu0 %v2729
        %v3052 = vpop.f32.mrf.mxu0
        %v3053 = vadd.f32 0.0, %v3052
        %v3054 = vpop.f32.mrf.mxu0
        %v3055 = vpop.f32.mrf.mxu0
        %v3056 = vadd.f32 0.0, %v3055
        %v3057 = vpop.f32.mrf.mxu0
        %3058 = vdwg.mxu0
        %v3059 = vmax.f32 %v2884, %v3045
        %v3060 = vmax.f32 %v2887, %v3048
        %v3061 = vmax.f32 %v2892, %v3053
        %v3062 = vmax.f32 %v2895, %v3056
        %v3063 = vpack.c.bf16 %v3060, %v3059
        %v3064 = vpack.c.bf16 %v3062, %v3061
        %v3065 = vld [vmem:[%s18] sm:$0x1]
        %v3067 = vlaneseq
        %v3068 = vshrl.u32 %v3067, 7
        %v3069 = vsub.s32 0, %v3068
        %v3070 = vrot.slane %v3065, %v3069
        %v3072 = vadd.f32 %v3070, 0.0
        %v3073 = vld [vmem:[%s17] sm:$0xf]
        %v3074 = vld [vmem:[%s17 + $0x4] sm:$0xf]
        %v3075 = vld [vmem:[%s17 + $0x8] sm:$0xf]
        %v3076 = vld [vmem:[%s17 + $0xc] sm:$0xf]
        %v3077 = vld [vmem:[%s17 + $0x10] sm:$0xf]
        %v3078 = vld [vmem:[%s17 + $0x14] sm:$0xf]
        %v3079 = vld [vmem:[%s17 + $0x18] sm:$0xf]
        %v3080 = vld [vmem:[%s17 + $0x1c] sm:$0xf]
        %v3081 = vld [vmem:[%s17 + $0x20] sm:$0xf]
        %v3082 = vld [vmem:[%s17 + $0x24] sm:$0xf]
        %v3083 = vld [vmem:[%s17 + $0x28] sm:$0xf]
        %v3084 = vld [vmem:[%s17 + $0x2c] sm:$0xf]
        %v3085 = vld [vmem:[%s17 + $0x30] sm:$0xf]
        %v3086 = vld [vmem:[%s17 + $0x34] sm:$0xf]
        %v3101 = vunpack.c.l.b16 %v3073
        %v3102 = vunpack.c.l.b16 %v3074
        %v3103 = vunpack.c.l.b16 %v3075
        %v3104 = vunpack.c.l.b16 %v3076
        %v3105 = vunpack.c.l.b16 %v3077
        %v3106 = vunpack.c.l.b16 %v3078
        %v3107 = vunpack.c.l.b16 %v3079
        %v3108 = vunpack.c.l.b16 %v3080
        %v3109 = vunpack.c.l.b16 %v3081
        %v3110 = vunpack.c.l.b16 %v3082
        %v3111 = vunpack.c.l.b16 %v3083
        %v3112 = vunpack.c.l.b16 %v3084
        %v3113 = vunpack.c.l.b16 %v3085
        %v3114 = vunpack.c.l.b16 %v3086
        %v3115 = vpack.c.b16 %v3102, %v3101
        %v3116 = vpack.c.b16 %v3104, %v3103
        %v3117 = vpack.c.b16 %v3106, %v3105
        %v3118 = vpack.c.b16 %v3108, %v3107
        %v3119 = vpack.c.b16 %v3110, %v3109
        %v3120 = vpack.c.b16 %v3112, %v3111
        %v3121 = vpack.c.b16 %v3114, %v3113
        %v3130 = vsel %vm2080, %v3063, 0
        %3132 = vmatprep.subr.bf16.mxu0 0
        %3133 = vmatpush1.bf16.msra.mxu0 0
        %3134 = vmatprep.subr.bf16.mxu0 0
        %3135 = vmatpush1.bf16.msra.mxu0 %v3121
        %3136 = vmatprep.subr.bf16.mxu0 0
        %3137 = vmatpush1.bf16.msra.mxu0 %v3120
        %3138 = vmatprep.subr.bf16.mxu0 0
        %3139 = vmatpush1.bf16.msra.mxu0 %v3119
        %3140 = vmatprep.subr.bf16.mxu0 0
        %3141 = vmatpush1.bf16.msra.mxu0 %v3118
        %3142 = vmatprep.subr.bf16.mxu0 0
        %3143 = vmatpush1.bf16.msra.mxu0 %v3117
        %3144 = vmatprep.subr.bf16.mxu0 0
        %3145 = vmatpush1.bf16.msra.mxu0 %v3116
        %3146 = vmatprep.subr.bf16.mxu0 0
        %3147 = vmatpush1.bf16.msra.mxu0 %v3115
        %3148 = vmatprep.subr.bf16.mxu0 0
        %3149 = vmatpush2.bf16.msra.mxu0 0
        %3150 = vmatprep.subr.bf16.mxu0 0
        %3151 = vmatpush2.bf16.msra.mxu0 0
        %3152 = vmatprep.subr.bf16.mxu0 0
        %3153 = vmatpush2.bf16.msra.mxu0 0
        %3154 = vmatprep.subr.bf16.mxu0 0
        %3155 = vmatpush2.bf16.msra.mxu0 0
        %3156 = vmatprep.subr.bf16.mxu0 0
        %3157 = vmatpush2.bf16.msra.mxu0 0
        %3158 = vmatprep.subr.bf16.mxu0 0
        %3159 = vmatpush2.bf16.msra.mxu0 0
        %3160 = vmatprep.subr.bf16.mxu0 0
        %3161 = vmatpush2.bf16.msra.mxu0 0
        %3162 = vmatprep.subr.bf16.mxu0 0
        %3163 = vmatpush2.bf16.msra.mxu0 0
        %3164 = vmatprep.mubr.bf16.mxu0 0
        %3165 = vmatmul.mubr.bf16.gmra.mxu0 %v3130
        %v3166 = vpop.f32.mrf.mxu0
        %v3167 = vadd.f32 0.0, %v3166
        %v3168 = vpop.f32.mrf.mxu0
        %v3169 = vpop.f32.mrf.mxu0
        %v3170 = vpop.f32.mrf.mxu0
        %3171 = vdwg.mxu0
        %v3172 = vadd.f32 %v3072, %v3167
        %v3173 = vld [vmem:[%s17 + $0x38] sm:$0xf]
        %v3174 = vld [vmem:[%s17 + $0x3c] sm:$0xf]
        %v3175 = vld [vmem:[%s17 + $0x40] sm:$0xf]
        %v3176 = vld [vmem:[%s17 + $0x44] sm:$0xf]
        %v3177 = vld [vmem:[%s17 + $0x48] sm:$0xf]
        %v3178 = vld [vmem:[%s17 + $0x4c] sm:$0xf]
        %v3179 = vld [vmem:[%s17 + $0x50] sm:$0xf]
        %v3180 = vld [vmem:[%s17 + $0x54] sm:$0xf]
        %v3181 = vld [vmem:[%s17 + $0x58] sm:$0xf]
        %v3182 = vld [vmem:[%s17 + $0x5c] sm:$0xf]
        %v3183 = vld [vmem:[%s17 + $0x60] sm:$0xf]
        %v3184 = vld [vmem:[%s17 + $0x64] sm:$0xf]
        %v3185 = vld [vmem:[%s17 + $0x68] sm:$0xf]
        %v3186 = vld [vmem:[%s17 + $0x6c] sm:$0xf]
        %v3188 = vrot.slane %v3063, 2
        %v3203 = vunpack.c.l.b16 %v3173
        %v3204 = vunpack.c.l.b16 %v3174
        %v3205 = vunpack.c.l.b16 %v3175
        %v3206 = vunpack.c.l.b16 %v3176
        %v3207 = vunpack.c.l.b16 %v3177
        %v3208 = vunpack.c.l.b16 %v3178
        %v3209 = vunpack.c.l.b16 %v3179
        %v3210 = vunpack.c.l.b16 %v3180
        %v3211 = vunpack.c.l.b16 %v3181
        %v3212 = vunpack.c.l.b16 %v3182
        %v3213 = vunpack.c.l.b16 %v3183
        %v3214 = vunpack.c.l.b16 %v3184
        %v3215 = vunpack.c.l.b16 %v3185
        %v3216 = vunpack.c.l.b16 %v3186
        %v3217 = vpack.c.b16 %v3204, %v3203
        %v3218 = vpack.c.b16 %v3206, %v3205
        %v3219 = vpack.c.b16 %v3208, %v3207
        %v3220 = vpack.c.b16 %v3210, %v3209
        %v3221 = vpack.c.b16 %v3212, %v3211
        %v3222 = vpack.c.b16 %v3214, %v3213
        %v3223 = vpack.c.b16 %v3216, %v3215
        %v3232 = vsel %vm2080, %v3188, 0
        %3234 = vmatprep.subr.bf16.mxu0 0
        %3235 = vmatpush1.bf16.msra.mxu0 0
        %3236 = vmatprep.subr.bf16.mxu0 0
        %3237 = vmatpush1.bf16.msra.mxu0 %v3223
        %3238 = vmatprep.subr.bf16.mxu0 0
        %3239 = vmatpush1.bf16.msra.mxu0 %v3222
        %3240 = vmatprep.subr.bf16.mxu0 0
        %3241 = vmatpush1.bf16.msra.mxu0 %v3221
        %3242 = vmatprep.subr.bf16.mxu0 0
        %3243 = vmatpush1.bf16.msra.mxu0 %v3220
        %3244 = vmatprep.subr.bf16.mxu0 0
        %3245 = vmatpush1.bf16.msra.mxu0 %v3219
        %3246 = vmatprep.subr.bf16.mxu0 0
        %3247 = vmatpush1.bf16.msra.mxu0 %v3218
        %3248 = vmatprep.subr.bf16.mxu0 0
        %3249 = vmatpush1.bf16.msra.mxu0 %v3217
        %3250 = vmatprep.subr.bf16.mxu0 0
        %3251 = vmatpush2.bf16.msra.mxu0 0
        %3252 = vmatprep.subr.bf16.mxu0 0
        %3253 = vmatpush2.bf16.msra.mxu0 0
        %3254 = vmatprep.subr.bf16.mxu0 0
        %3255 = vmatpush2.bf16.msra.mxu0 0
        %3256 = vmatprep.subr.bf16.mxu0 0
        %3257 = vmatpush2.bf16.msra.mxu0 0
        %3258 = vmatprep.subr.bf16.mxu0 0
        %3259 = vmatpush2.bf16.msra.mxu0 0
        %3260 = vmatprep.subr.bf16.mxu0 0
        %3261 = vmatpush2.bf16.msra.mxu0 0
        %3262 = vmatprep.subr.bf16.mxu0 0
        %3263 = vmatpush2.bf16.msra.mxu0 0
        %3264 = vmatprep.subr.bf16.mxu0 0
        %3265 = vmatpush2.bf16.msra.mxu0 0
        %3266 = vmatprep.mubr.bf16.mxu0 0
        %3267 = vmatmul.mubr.bf16.gmra.mxu0 %v3232
        %v3268 = vpop.f32.mrf.mxu0
        %v3269 = vadd.f32 0.0, %v3268
        %v3270 = vpop.f32.mrf.mxu0
        %v3271 = vpop.f32.mrf.mxu0
        %v3272 = vpop.f32.mrf.mxu0
        %3273 = vdwg.mxu0
        %v3274 = vadd.f32 %v3172, %v3269
        %v3275 = vld [vmem:[%s17 + $0x70] sm:$0xf]
        %v3276 = vld [vmem:[%s17 + $0x74] sm:$0xf]
        %v3277 = vld [vmem:[%s17 + $0x78] sm:$0xf]
        %v3278 = vld [vmem:[%s17 + $0x7c] sm:$0xf]
        %v3279 = vld [vmem:[%s17 + $0x80] sm:$0xf]
        %v3280 = vld [vmem:[%s17 + $0x84] sm:$0xf]
        %v3281 = vld [vmem:[%s17 + $0x88] sm:$0xf]
        %v3282 = vld [vmem:[%s17 + $0x8c] sm:$0xf]
        %v3283 = vld [vmem:[%s17 + $0x90] sm:$0xf]
        %v3284 = vld [vmem:[%s17 + $0x94] sm:$0xf]
        %v3285 = vld [vmem:[%s17 + $0x98] sm:$0xf]
        %v3286 = vld [vmem:[%s17 + $0x9c] sm:$0xf]
        %v3287 = vld [vmem:[%s17 + $0xa0] sm:$0xf]
        %v3288 = vld [vmem:[%s17 + $0xa4] sm:$0xf]
        %v3289 = vrot.slane %v3063, 4
        %v3304 = vunpack.c.l.b16 %v3275
        %v3305 = vunpack.c.l.b16 %v3276
        %v3306 = vunpack.c.l.b16 %v3277
        %v3307 = vunpack.c.l.b16 %v3278
        %v3308 = vunpack.c.l.b16 %v3279
        %v3309 = vunpack.c.l.b16 %v3280
        %v3310 = vunpack.c.l.b16 %v3281
        %v3311 = vunpack.c.l.b16 %v3282
        %v3312 = vunpack.c.l.b16 %v3283
        %v3313 = vunpack.c.l.b16 %v3284
        %v3314 = vunpack.c.l.b16 %v3285
        %v3315 = vunpack.c.l.b16 %v3286
        %v3316 = vunpack.c.l.b16 %v3287
        %v3317 = vunpack.c.l.b16 %v3288
        %v3318 = vpack.c.b16 %v3305, %v3304
        %v3319 = vpack.c.b16 %v3307, %v3306
        %v3320 = vpack.c.b16 %v3309, %v3308
        %v3321 = vpack.c.b16 %v3311, %v3310
        %v3322 = vpack.c.b16 %v3313, %v3312
        %v3323 = vpack.c.b16 %v3315, %v3314
        %v3324 = vpack.c.b16 %v3317, %v3316
        %v3333 = vsel %vm2080, %v3289, 0
        %3335 = vmatprep.subr.bf16.mxu0 0
        %3336 = vmatpush1.bf16.msra.mxu0 0
        %3337 = vmatprep.subr.bf16.mxu0 0
        %3338 = vmatpush1.bf16.msra.mxu0 %v3324
        %3339 = vmatprep.subr.bf16.mxu0 0
        %3340 = vmatpush1.bf16.msra.mxu0 %v3323
        %3341 = vmatprep.subr.bf16.mxu0 0
        %3342 = vmatpush1.bf16.msra.mxu0 %v3322
        %3343 = vmatprep.subr.bf16.mxu0 0
        %3344 = vmatpush1.bf16.msra.mxu0 %v3321
        %3345 = vmatprep.subr.bf16.mxu0 0
        %3346 = vmatpush1.bf16.msra.mxu0 %v3320
        %3347 = vmatprep.subr.bf16.mxu0 0
        %3348 = vmatpush1.bf16.msra.mxu0 %v3319
        %3349 = vmatprep.subr.bf16.mxu0 0
        %3350 = vmatpush1.bf16.msra.mxu0 %v3318
        %3351 = vmatprep.subr.bf16.mxu0 0
        %3352 = vmatpush2.bf16.msra.mxu0 0
        %3353 = vmatprep.subr.bf16.mxu0 0
        %3354 = vmatpush2.bf16.msra.mxu0 0
        %3355 = vmatprep.subr.bf16.mxu0 0
        %3356 = vmatpush2.bf16.msra.mxu0 0
        %3357 = vmatprep.subr.bf16.mxu0 0
        %3358 = vmatpush2.bf16.msra.mxu0 0
        %3359 = vmatprep.subr.bf16.mxu0 0
        %3360 = vmatpush2.bf16.msra.mxu0 0
        %3361 = vmatprep.subr.bf16.mxu0 0
        %3362 = vmatpush2.bf16.msra.mxu0 0
        %3363 = vmatprep.subr.bf16.mxu0 0
        %3364 = vmatpush2.bf16.msra.mxu0 0
        %3365 = vmatprep.subr.bf16.mxu0 0
        %3366 = vmatpush2.bf16.msra.mxu0 0
        %3367 = vmatprep.mubr.bf16.mxu0 0
        %3368 = vmatmul.mubr.bf16.gmra.mxu0 %v3333
        %v3369 = vpop.f32.mrf.mxu0
        %v3370 = vadd.f32 0.0, %v3369
        %v3371 = vpop.f32.mrf.mxu0
        %v3372 = vpop.f32.mrf.mxu0
        %v3373 = vpop.f32.mrf.mxu0
        %3374 = vdwg.mxu0
        %v3375 = vadd.f32 %v3274, %v3370
        %v3376 = vld [vmem:[%s17 + $0xa8] sm:$0xf]
        %v3377 = vld [vmem:[%s17 + $0xac] sm:$0xf]
        %v3378 = vld [vmem:[%s17 + $0xb0] sm:$0xf]
        %v3379 = vld [vmem:[%s17 + $0xb4] sm:$0xf]
        %v3380 = vld [vmem:[%s17 + $0xb8] sm:$0xf]
        %v3381 = vld [vmem:[%s17 + $0xbc] sm:$0xf]
        %v3382 = vld [vmem:[%s17 + $0xc0] sm:$0xf]
        %v3383 = vld [vmem:[%s17 + $0xc4] sm:$0xf]
        %v3384 = vld [vmem:[%s17 + $0xc8] sm:$0xf]
        %v3385 = vld [vmem:[%s17 + $0xcc] sm:$0xf]
        %v3386 = vld [vmem:[%s17 + $0xd0] sm:$0xf]
        %v3387 = vld [vmem:[%s17 + $0xd4] sm:$0xf]
        %v3388 = vld [vmem:[%s17 + $0xd8] sm:$0xf]
        %v3389 = vld [vmem:[%s17 + $0xdc] sm:$0xf]
        %v3390 = vrot.slane %v3063, 6
        %v3405 = vunpack.c.l.b16 %v3376
        %v3406 = vunpack.c.l.b16 %v3377
        %v3407 = vunpack.c.l.b16 %v3378
        %v3408 = vunpack.c.l.b16 %v3379
        %v3409 = vunpack.c.l.b16 %v3380
        %v3410 = vunpack.c.l.b16 %v3381
        %v3411 = vunpack.c.l.b16 %v3382
        %v3412 = vunpack.c.l.b16 %v3383
        %v3413 = vunpack.c.l.b16 %v3384
        %v3414 = vunpack.c.l.b16 %v3385
        %v3415 = vunpack.c.l.b16 %v3386
        %v3416 = vunpack.c.l.b16 %v3387
        %v3417 = vunpack.c.l.b16 %v3388
        %v3418 = vunpack.c.l.b16 %v3389
        %v3419 = vpack.c.b16 %v3406, %v3405
        %v3420 = vpack.c.b16 %v3408, %v3407
        %v3421 = vpack.c.b16 %v3410, %v3409
        %v3422 = vpack.c.b16 %v3412, %v3411
        %v3423 = vpack.c.b16 %v3414, %v3413
        %v3424 = vpack.c.b16 %v3416, %v3415
        %v3425 = vpack.c.b16 %v3418, %v3417
        %v3434 = vsel %vm2080, %v3390, 0
        %3436 = vmatprep.subr.bf16.mxu0 0
        %3437 = vmatpush1.bf16.msra.mxu0 0
        %3438 = vmatprep.subr.bf16.mxu0 0
        %3439 = vmatpush1.bf16.msra.mxu0 %v3425
        %3440 = vmatprep.subr.bf16.mxu0 0
        %3441 = vmatpush1.bf16.msra.mxu0 %v3424
        %3442 = vmatprep.subr.bf16.mxu0 0
        %3443 = vmatpush1.bf16.msra.mxu0 %v3423
        %3444 = vmatprep.subr.bf16.mxu0 0
        %3445 = vmatpush1.bf16.msra.mxu0 %v3422
        %3446 = vmatprep.subr.bf16.mxu0 0
        %3447 = vmatpush1.bf16.msra.mxu0 %v3421
        %3448 = vmatprep.subr.bf16.mxu0 0
        %3449 = vmatpush1.bf16.msra.mxu0 %v3420
        %3450 = vmatprep.subr.bf16.mxu0 0
        %3451 = vmatpush1.bf16.msra.mxu0 %v3419
        %3452 = vmatprep.subr.bf16.mxu0 0
        %3453 = vmatpush2.bf16.msra.mxu0 0
        %3454 = vmatprep.subr.bf16.mxu0 0
        %3455 = vmatpush2.bf16.msra.mxu0 0
        %3456 = vmatprep.subr.bf16.mxu0 0
        %3457 = vmatpush2.bf16.msra.mxu0 0
        %3458 = vmatprep.subr.bf16.mxu0 0
        %3459 = vmatpush2.bf16.msra.mxu0 0
        %3460 = vmatprep.subr.bf16.mxu0 0
        %3461 = vmatpush2.bf16.msra.mxu0 0
        %3462 = vmatprep.subr.bf16.mxu0 0
        %3463 = vmatpush2.bf16.msra.mxu0 0
        %3464 = vmatprep.subr.bf16.mxu0 0
        %3465 = vmatpush2.bf16.msra.mxu0 0
        %3466 = vmatprep.subr.bf16.mxu0 0
        %3467 = vmatpush2.bf16.msra.mxu0 0
        %3468 = vmatprep.mubr.bf16.mxu0 0
        %3469 = vmatmul.mubr.bf16.gmra.mxu0 %v3434
        %v3470 = vpop.f32.mrf.mxu0
        %v3471 = vadd.f32 0.0, %v3470
        %v3472 = vpop.f32.mrf.mxu0
        %v3473 = vpop.f32.mrf.mxu0
        %v3474 = vpop.f32.mrf.mxu0
        %3475 = vdwg.mxu0
        %v3476 = vadd.f32 %v3375, %v3471
        %v3477 = vld [vmem:[%s17 + $0xe0] sm:$0xf]
        %v3478 = vld [vmem:[%s17 + $0xe4] sm:$0xf]
        %v3479 = vld [vmem:[%s17 + $0xe8] sm:$0xf]
        %v3480 = vld [vmem:[%s17 + $0xec] sm:$0xf]
        %v3481 = vld [vmem:[%s17 + $0xf0] sm:$0xf]
        %v3482 = vld [vmem:[%s17 + $0xf4] sm:$0xf]
        %v3483 = vld [vmem:[%s17 + $0xf8] sm:$0xf]
        %v3484 = vld [vmem:[%s17 + $0xfc] sm:$0xf]
        %v3485 = vld [vmem:[%s17 + $0x100] sm:$0xf]
        %v3486 = vld [vmem:[%s17 + $0x104] sm:$0xf]
        %v3487 = vld [vmem:[%s17 + $0x108] sm:$0xf]
        %v3488 = vld [vmem:[%s17 + $0x10c] sm:$0xf]
        %v3489 = vld [vmem:[%s17 + $0x110] sm:$0xf]
        %v3490 = vld [vmem:[%s17 + $0x114] sm:$0xf]
        %v3505 = vunpack.c.l.b16 %v3477
        %v3506 = vunpack.c.l.b16 %v3478
        %v3507 = vunpack.c.l.b16 %v3479
        %v3508 = vunpack.c.l.b16 %v3480
        %v3509 = vunpack.c.l.b16 %v3481
        %v3510 = vunpack.c.l.b16 %v3482
        %v3511 = vunpack.c.l.b16 %v3483
        %v3512 = vunpack.c.l.b16 %v3484
        %v3513 = vunpack.c.l.b16 %v3485
        %v3514 = vunpack.c.l.b16 %v3486
        %v3515 = vunpack.c.l.b16 %v3487
        %v3516 = vunpack.c.l.b16 %v3488
        %v3517 = vunpack.c.l.b16 %v3489
        %v3518 = vunpack.c.l.b16 %v3490
        %v3519 = vpack.c.b16 %v3506, %v3505
        %v3520 = vpack.c.b16 %v3508, %v3507
        %v3521 = vpack.c.b16 %v3510, %v3509
        %v3522 = vpack.c.b16 %v3512, %v3511
        %v3523 = vpack.c.b16 %v3514, %v3513
        %v3524 = vpack.c.b16 %v3516, %v3515
        %v3525 = vpack.c.b16 %v3518, %v3517
        %v3534 = vsel %vm2080, %v3064, 0
        %3536 = vmatprep.subr.bf16.mxu0 0
        %3537 = vmatpush1.bf16.msra.mxu0 0
        %3538 = vmatprep.subr.bf16.mxu0 0
        %3539 = vmatpush1.bf16.msra.mxu0 %v3525
        %3540 = vmatprep.subr.bf16.mxu0 0
        %3541 = vmatpush1.bf16.msra.mxu0 %v3524
        %3542 = vmatprep.subr.bf16.mxu0 0
        %3543 = vmatpush1.bf16.msra.mxu0 %v3523
        %3544 = vmatprep.subr.bf16.mxu0 0
        %3545 = vmatpush1.bf16.msra.mxu0 %v3522
        %3546 = vmatprep.subr.bf16.mxu0 0
        %3547 = vmatpush1.bf16.msra.mxu0 %v3521
        %3548 = vmatprep.subr.bf16.mxu0 0
        %3549 = vmatpush1.bf16.msra.mxu0 %v3520
        %3550 = vmatprep.subr.bf16.mxu0 0
        %3551 = vmatpush1.bf16.msra.mxu0 %v3519
        %3552 = vmatprep.subr.bf16.mxu0 0
        %3553 = vmatpush2.bf16.msra.mxu0 0
        %3554 = vmatprep.subr.bf16.mxu0 0
        %3555 = vmatpush2.bf16.msra.mxu0 0
        %3556 = vmatprep.subr.bf16.mxu0 0
        %3557 = vmatpush2.bf16.msra.mxu0 0
        %3558 = vmatprep.subr.bf16.mxu0 0
        %3559 = vmatpush2.bf16.msra.mxu0 0
        %3560 = vmatprep.subr.bf16.mxu0 0
        %3561 = vmatpush2.bf16.msra.mxu0 0
        %3562 = vmatprep.subr.bf16.mxu0 0
        %3563 = vmatpush2.bf16.msra.mxu0 0
        %3564 = vmatprep.subr.bf16.mxu0 0
        %3565 = vmatpush2.bf16.msra.mxu0 0
        %3566 = vmatprep.subr.bf16.mxu0 0
        %3567 = vmatpush2.bf16.msra.mxu0 0
        %3568 = vmatprep.mubr.bf16.mxu0 0
        %3569 = vmatmul.mubr.bf16.gmra.mxu0 %v3534
        %v3570 = vpop.f32.mrf.mxu0
        %v3571 = vadd.f32 0.0, %v3570
        %v3572 = vpop.f32.mrf.mxu0
        %v3573 = vpop.f32.mrf.mxu0
        %v3574 = vpop.f32.mrf.mxu0
        %3575 = vdwg.mxu0
        %v3576 = vadd.f32 %v3476, %v3571
        %v3577 = vld [vmem:[%s17 + $0x118] sm:$0xf]
        %v3578 = vld [vmem:[%s17 + $0x11c] sm:$0xf]
        %v3579 = vld [vmem:[%s17 + $0x120] sm:$0xf]
        %v3580 = vld [vmem:[%s17 + $0x124] sm:$0xf]
        %v3581 = vld [vmem:[%s17 + $0x128] sm:$0xf]
        %v3582 = vld [vmem:[%s17 + $0x12c] sm:$0xf]
        %v3583 = vld [vmem:[%s17 + $0x130] sm:$0xf]
        %v3584 = vld [vmem:[%s17 + $0x134] sm:$0xf]
        %v3585 = vld [vmem:[%s17 + $0x138] sm:$0xf]
        %v3586 = vld [vmem:[%s17 + $0x13c] sm:$0xf]
        %v3587 = vld [vmem:[%s17 + $0x140] sm:$0xf]
        %v3588 = vld [vmem:[%s17 + $0x144] sm:$0xf]
        %v3589 = vld [vmem:[%s17 + $0x148] sm:$0xf]
        %v3590 = vld [vmem:[%s17 + $0x14c] sm:$0xf]
        %v3592 = vrot.slane %v3064, 2
        %v3607 = vunpack.c.l.b16 %v3577
        %v3608 = vunpack.c.l.b16 %v3578
        %v3609 = vunpack.c.l.b16 %v3579
        %v3610 = vunpack.c.l.b16 %v3580
        %v3611 = vunpack.c.l.b16 %v3581
        %v3612 = vunpack.c.l.b16 %v3582
        %v3613 = vunpack.c.l.b16 %v3583
        %v3614 = vunpack.c.l.b16 %v3584
        %v3615 = vunpack.c.l.b16 %v3585
        %v3616 = vunpack.c.l.b16 %v3586
        %v3617 = vunpack.c.l.b16 %v3587
        %v3618 = vunpack.c.l.b16 %v3588
        %v3619 = vunpack.c.l.b16 %v3589
        %v3620 = vunpack.c.l.b16 %v3590
        %v3621 = vpack.c.b16 %v3608, %v3607
        %v3622 = vpack.c.b16 %v3610, %v3609
        %v3623 = vpack.c.b16 %v3612, %v3611
        %v3624 = vpack.c.b16 %v3614, %v3613
        %v3625 = vpack.c.b16 %v3616, %v3615
        %v3626 = vpack.c.b16 %v3618, %v3617
        %v3627 = vpack.c.b16 %v3620, %v3619
        %v3636 = vsel %vm2080, %v3592, 0
        %3638 = vmatprep.subr.bf16.mxu0 0
        %3639 = vmatpush1.bf16.msra.mxu0 0
        %3640 = vmatprep.subr.bf16.mxu0 0
        %3641 = vmatpush1.bf16.msra.mxu0 %v3627
        %3642 = vmatprep.subr.bf16.mxu0 0
        %3643 = vmatpush1.bf16.msra.mxu0 %v3626
        %3644 = vmatprep.subr.bf16.mxu0 0
        %3645 = vmatpush1.bf16.msra.mxu0 %v3625
        %3646 = vmatprep.subr.bf16.mxu0 0
        %3647 = vmatpush1.bf16.msra.mxu0 %v3624
        %3648 = vmatprep.subr.bf16.mxu0 0
        %3649 = vmatpush1.bf16.msra.mxu0 %v3623
        %3650 = vmatprep.subr.bf16.mxu0 0
        %3651 = vmatpush1.bf16.msra.mxu0 %v3622
        %3652 = vmatprep.subr.bf16.mxu0 0
        %3653 = vmatpush1.bf16.msra.mxu0 %v3621
        %3654 = vmatprep.subr.bf16.mxu0 0
        %3655 = vmatpush2.bf16.msra.mxu0 0
        %3656 = vmatprep.subr.bf16.mxu0 0
        %3657 = vmatpush2.bf16.msra.mxu0 0
        %3658 = vmatprep.subr.bf16.mxu0 0
        %3659 = vmatpush2.bf16.msra.mxu0 0
        %3660 = vmatprep.subr.bf16.mxu0 0
        %3661 = vmatpush2.bf16.msra.mxu0 0
        %3662 = vmatprep.subr.bf16.mxu0 0
        %3663 = vmatpush2.bf16.msra.mxu0 0
        %3664 = vmatprep.subr.bf16.mxu0 0
        %3665 = vmatpush2.bf16.msra.mxu0 0
        %3666 = vmatprep.subr.bf16.mxu0 0
        %3667 = vmatpush2.bf16.msra.mxu0 0
        %3668 = vmatprep.subr.bf16.mxu0 0
        %3669 = vmatpush2.bf16.msra.mxu0 0
        %3670 = vmatprep.mubr.bf16.mxu0 0
        %3671 = vmatmul.mubr.bf16.gmra.mxu0 %v3636
        %v3672 = vpop.f32.mrf.mxu0
        %v3673 = vadd.f32 0.0, %v3672
        %v3674 = vpop.f32.mrf.mxu0
        %v3675 = vpop.f32.mrf.mxu0
        %v3676 = vpop.f32.mrf.mxu0
        %3677 = vdwg.mxu0
        %v3678 = vadd.f32 %v3576, %v3673
        %v3679 = vld [vmem:[%s17 + $0x150] sm:$0xf]
        %v3680 = vld [vmem:[%s17 + $0x154] sm:$0xf]
        %v3681 = vld [vmem:[%s17 + $0x158] sm:$0xf]
        %v3682 = vld [vmem:[%s17 + $0x15c] sm:$0xf]
        %v3683 = vld [vmem:[%s17 + $0x160] sm:$0xf]
        %v3684 = vld [vmem:[%s17 + $0x164] sm:$0xf]
        %v3685 = vld [vmem:[%s17 + $0x168] sm:$0xf]
        %v3686 = vld [vmem:[%s17 + $0x16c] sm:$0xf]
        %v3687 = vld [vmem:[%s17 + $0x170] sm:$0xf]
        %v3688 = vld [vmem:[%s17 + $0x174] sm:$0xf]
        %v3689 = vld [vmem:[%s17 + $0x178] sm:$0xf]
        %v3690 = vld [vmem:[%s17 + $0x17c] sm:$0xf]
        %v3691 = vld [vmem:[%s17 + $0x180] sm:$0xf]
        %v3692 = vld [vmem:[%s17 + $0x184] sm:$0xf]
        %v3693 = vrot.slane %v3064, 4
        %v3708 = vunpack.c.l.b16 %v3679
        %v3709 = vunpack.c.l.b16 %v3680
        %v3710 = vunpack.c.l.b16 %v3681
        %v3711 = vunpack.c.l.b16 %v3682
        %v3712 = vunpack.c.l.b16 %v3683
        %v3713 = vunpack.c.l.b16 %v3684
        %v3714 = vunpack.c.l.b16 %v3685
        %v3715 = vunpack.c.l.b16 %v3686
        %v3716 = vunpack.c.l.b16 %v3687
        %v3717 = vunpack.c.l.b16 %v3688
        %v3718 = vunpack.c.l.b16 %v3689
        %v3719 = vunpack.c.l.b16 %v3690
        %v3720 = vunpack.c.l.b16 %v3691
        %v3721 = vunpack.c.l.b16 %v3692
        %v3722 = vpack.c.b16 %v3709, %v3708
        %v3723 = vpack.c.b16 %v3711, %v3710
        %v3724 = vpack.c.b16 %v3713, %v3712
        %v3725 = vpack.c.b16 %v3715, %v3714
        %v3726 = vpack.c.b16 %v3717, %v3716
        %v3727 = vpack.c.b16 %v3719, %v3718
        %v3728 = vpack.c.b16 %v3721, %v3720
        %v3737 = vsel %vm2080, %v3693, 0
        %3739 = vmatprep.subr.bf16.mxu0 0
        %3740 = vmatpush1.bf16.msra.mxu0 0
        %3741 = vmatprep.subr.bf16.mxu0 0
        %3742 = vmatpush1.bf16.msra.mxu0 %v3728
        %3743 = vmatprep.subr.bf16.mxu0 0
        %3744 = vmatpush1.bf16.msra.mxu0 %v3727
        %3745 = vmatprep.subr.bf16.mxu0 0
        %3746 = vmatpush1.bf16.msra.mxu0 %v3726
        %3747 = vmatprep.subr.bf16.mxu0 0
        %3748 = vmatpush1.bf16.msra.mxu0 %v3725
        %3749 = vmatprep.subr.bf16.mxu0 0
        %3750 = vmatpush1.bf16.msra.mxu0 %v3724
        %3751 = vmatprep.subr.bf16.mxu0 0
        %3752 = vmatpush1.bf16.msra.mxu0 %v3723
        %3753 = vmatprep.subr.bf16.mxu0 0
        %3754 = vmatpush1.bf16.msra.mxu0 %v3722
        %3755 = vmatprep.subr.bf16.mxu0 0
        %3756 = vmatpush2.bf16.msra.mxu0 0
        %3757 = vmatprep.subr.bf16.mxu0 0
        %3758 = vmatpush2.bf16.msra.mxu0 0
        %3759 = vmatprep.subr.bf16.mxu0 0
        %3760 = vmatpush2.bf16.msra.mxu0 0
        %3761 = vmatprep.subr.bf16.mxu0 0
        %3762 = vmatpush2.bf16.msra.mxu0 0
        %3763 = vmatprep.subr.bf16.mxu0 0
        %3764 = vmatpush2.bf16.msra.mxu0 0
        %3765 = vmatprep.subr.bf16.mxu0 0
        %3766 = vmatpush2.bf16.msra.mxu0 0
        %3767 = vmatprep.subr.bf16.mxu0 0
        %3768 = vmatpush2.bf16.msra.mxu0 0
        %3769 = vmatprep.subr.bf16.mxu0 0
        %3770 = vmatpush2.bf16.msra.mxu0 0
        %3771 = vmatprep.mubr.bf16.mxu0 0
        %3772 = vmatmul.mubr.bf16.gmra.mxu0 %v3737
        %v3773 = vpop.f32.mrf.mxu0
        %v3774 = vadd.f32 0.0, %v3773
        %v3775 = vpop.f32.mrf.mxu0
        %v3776 = vpop.f32.mrf.mxu0
        %v3777 = vpop.f32.mrf.mxu0
        %3778 = vdwg.mxu0
        %v3779 = vadd.f32 %v3678, %v3774
        %3780 = vst [vmem:[%s595] sm:$0xf] %v3779
        %s3781 = sand.u32 %s445, 1
        %s3782 = scalar_lea.sflag [#allocation3], %s3781
        %s3783 = sand.u32 %s445, 1
        %s3784 = smul.addr %s3783, 4
        %s3785 = scalar_lea.vmem [#allocation2], %s3784
        // Predicated region
        $region97: #{cnn_forward.1} parent=95 // pred_check
          %p3786 = pneg %p455
        $region98: #{cnn_forward.1} parent=95 // pred_check_branch
          %3788 = sbr.rel (%p3786) target = $region100
        $region99: #{cnn_forward.1} parent=95 // pred_region
          %s3790 = ssub.s32 64, 64
          %3791 = vsyncadd %s3782, %s3790
          %s3792 = smul.addr %s33, 64
          %s3793 = scalar_lea.hbm %s19, %s3792
          %s3795 = sshll.u32 %s3785, 4
          %s3796 = int_to_ptr.vmem [resolvable:$true] %s3795
          %3798 = dma.vmem_to_hbm [thread:$0]  %s3796, 64, %s3793, %s3782
        $region100: #{cnn_forward.1} parent=95 // pred_fallthru
          _
      $region96: #{cnn_forward.1} parent=5 // pred_fallthru
        _
      %p3799 = scmp.le.s32.totalorder 2, %s28
      // Predicated region
      $region101: #{cnn_forward.1} parent=5 // pred_check
        %p3800 = pneg %p3799
      $region102: #{cnn_forward.1} parent=5 // pred_check_branch
        %3802 = sbr.rel (%p3800) target = $region104
      $region103: #{cnn_forward.1} parent=5 // pred_region
        %s3803 = ssub.s32 %s28, 2
        // Predicated region
        $region105: #{cnn_forward.1} parent=103 // pred_check
          %p3804 = pneg %p461
        $region106: #{cnn_forward.1} parent=103 // pred_check_branch
          %3806 = sbr.rel (%p3804) target = $region108
        $region107: #{cnn_forward.1} parent=103 // pred_region
          %s3807 = sand.u32 %s446, 1
          %s3808 = scalar_lea.sflag [#allocation3], %s3807
          %s3809 = sand.u32 %s446, 1
          %s3810 = smul.addr %s3809, 4
          %s3811 = scalar_lea.vmem [#allocation2], %s3810
          %3812 = dma.done %s3808, 64
        $region108: #{cnn_forward.1} parent=103 // pred_fallthru
          _
      $region104: #{cnn_forward.1} parent=5 // pred_fallthru
        _
    $region6: #{cnn_forward.1} parent=1 // loop_footer
      %s32 = sadd.s32 1, %s28
    $region7: #{cnn_forward.1} parent=1 // loop_footer_branch
      %27 = sbr.rel target = $region3
    $region8: #{cnn_forward.1} parent=1 // loop_exit
      _
    %3813 = vsyncpa [#allocation3], 1
    %s3814 = scalar_lea.sflag [#allocation3], 1
    %3815 = vsyncpa %s3814, 1

</llo_original>
